<compile_context>
chip_gen: v5e
topology: v5e:2x2
jax: 0.10.0
libtpu: 0.0.40
codegen_flags: <defaults>
</compile_context>

<pallas_src>
import math
import jax
import jax.numpy as jnp
from jax import lax
from jax.experimental import pallas as pl
from jax.experimental.pallas import tpu as pltpu


def gin_kernel(node_ref, ef_ref, src_ref, dst_ref,
               wn_ref, bn_ref, w1_ref, b1_ref, w2_ref, b2_ref,
               ws_ref, bs_ref, a_ref,
               out_ref, h_scr, hb_scr, agg_scr):
    f32 = jnp.float32
    bf16 = jnp.bfloat16
    layer = pl.program_id(0)
    tile = pl.program_id(1)
    n_layers = pl.num_programs(0)
    n_tiles = pl.num_programs(1)

    TE = src_ref.shape[0]
    N = hb_scr.shape[0]

    # project_node_feats (Linear + ReLU), once at the very first grid step.
    @pl.when(jnp.logical_and(layer == 0, tile == 0))
    def _():
        h_scr[...] = jnp.maximum(
            jnp.dot(node_ref[...], wn_ref[...], preferred_element_type=f32)
            + bn_ref[...], 0.0)

    # Start of every layer: zero the aggregation accumulator and refresh the
    # bf16 shadow of H used by the MXU in the hot per-tile loop.
    @pl.when(tile == 0)
    def _():
        agg_scr[...] = jnp.zeros_like(agg_scr)
        hb_scr[...] = h_scr[...].astype(bf16)

    # Build the 0/1 gather / scatter one-hot tiles in-kernel (bf16 is exact for
    # 0/1).  Padded edges have src = dst = -1 -> all-zero rows.
    node_iota = lax.broadcasted_iota(jnp.int32, (TE, N), 1)
    g_blk = (src_ref[...] == node_iota).astype(bf16)      # (TE, N) src one-hot
    d_blk = (dst_ref[...] == node_iota).astype(bf16)      # (TE, N) dst one-hot

    # GINEConv message for this edge tile (bf16 MXU operands, f32 accumulate):
    #   msg = relu(h_src + Ef);  agg += scatter_dst(msg)
    msg = jnp.maximum(
        jnp.dot(g_blk, hb_scr[...], preferred_element_type=f32) + ef_ref[...],
        0.0)
    agg_scr[...] += lax.dot_general(
        d_blk, msg.astype(bf16),
        dimension_numbers=(((0,), (0,)), ((), ())),       # d_blk^T @ msg
        preferred_element_type=f32)

    # End of layer: GINEConv update  H <- apply_func((1+eps)*H + agg), eps = 0.
    @pl.when(tile == n_tiles - 1)
    def _():
        h_sum = h_scr[...] + agg_scr[...]
        t1 = jnp.maximum(
            jnp.dot(h_sum, w1_ref[0], preferred_element_type=f32) + b1_ref[0],
            0.0)
        h_new = jnp.dot(t1, w2_ref[0], preferred_element_type=f32) + b2_ref[0]

        @pl.when(layer < n_layers - 1)
        def _():
            # inter-layer ReLU; dropout (eval mode) is identity.
            h_scr[...] = jnp.maximum(h_new, 0.0)

        @pl.when(layer == n_layers - 1)
        def _():
            # AvgPooling readout over nodes (single graph), then Linear + PReLU.
            readout = jnp.mean(h_new, axis=0, keepdims=True)            # (1, hid)
            z = jnp.dot(readout, ws_ref[...],
                        preferred_element_type=f32) + bs_ref[...]
            a = a_ref[0, 0]                                             # SMEM scalar
            out_ref[...] = jnp.where(z >= 0.0, z, a * z)


def gin_forward(node_attr, edge_attr, src, dst, params, *, edge_tile=512):
    (wn, bn, we, be, w1, b1, w2, b2, ws, bs, a_prelu) = params
    N, node_in = node_attr.shape
    E, edge_in = edge_attr.shape
    hid = wn.shape[1]
    readout_feats = ws.shape[1]
    depth = w1.shape[0]

    # Pad edges to a multiple of the edge tile.  Padded src/dst are -1 so their
    # in-kernel one-hot rows are all-zero (they contribute nothing).
    TE = edge_tile
    E_pad = pl.cdiv(E, TE) * TE
    src_p = jnp.full((E_pad, 1), -1, jnp.int32).at[:E, 0].set(src.astype(jnp.int32))
    dst_p = jnp.full((E_pad, 1), -1, jnp.int32).at[:E, 0].set(dst.astype(jnp.int32))
    edge_p = jnp.zeros((E_pad, edge_in), edge_attr.dtype).at[:E].set(edge_attr)

    # Layer-invariant edge projection hoisted out of the kernel (K = edge_in is
    # tiny; doing it once in XLA avoids depth * n_tiles redundant MXU passes).
    Ef = (edge_p @ we + be).astype(jnp.float32)                # (E_pad, hid)

    n_tiles = E_pad // TE
    grid = (depth, n_tiles)

    in_specs = [
        pl.BlockSpec((N, node_in), lambda d, t: (0, 0)),          # node_attr
        pl.BlockSpec((TE, hid), lambda d, t: (t, 0)),             # Ef tile
        pl.BlockSpec((TE, 1), lambda d, t: (t, 0)),               # src indices
        pl.BlockSpec((TE, 1), lambda d, t: (t, 0)),               # dst indices
        pl.BlockSpec((node_in, hid), lambda d, t: (0, 0)),        # wn
        pl.BlockSpec((1, hid), lambda d, t: (0, 0)),              # bn
        pl.BlockSpec((1, hid, hid), lambda d, t: (d, 0, 0)),      # w1[layer]
        pl.BlockSpec((1, 1, hid), lambda d, t: (d, 0, 0)),        # b1[layer]
        pl.BlockSpec((1, hid, hid), lambda d, t: (d, 0, 0)),      # w2[layer]
        pl.BlockSpec((1, 1, hid), lambda d, t: (d, 0, 0)),        # b2[layer]
        pl.BlockSpec((hid, readout_feats), lambda d, t: (0, 0)),  # ws
        pl.BlockSpec((1, readout_feats), lambda d, t: (0, 0)),    # bs
        pl.BlockSpec(memory_space=pltpu.MemorySpace.SMEM),        # PReLU scalar
    ]
    out_specs = pl.BlockSpec((1, readout_feats), lambda d, t: (0, 0))

    # Cost estimate (adjacency is no longer streamed from HBM).
    flops = 2 * (N * node_in * hid
                 + depth * (2 * E_pad * N * hid + 2 * N * hid * hid)
                 + hid * readout_feats)
    streamed_bytes = depth * (E_pad * hid * 4 + 2 * E_pad * 4)
    static_bytes = sum(int(x.size) * x.dtype.itemsize
                       for x in (node_attr, wn, bn, w1, b1, w2, b2, ws, bs))
    bytes_accessed = int(streamed_bytes + static_bytes + readout_feats * 4)

    # Explicit VMEM budget (double-buffered streams + persistent scratch +
    # headroom for the in-kernel mask temporaries); clamped to v7x's 64 MiB.
    vmem_est = (
        2 * (TE * hid * 4 + 2 * TE * 4 + 2 * hid * hid * 4 + 2 * hid * 4)
        + N * node_in * 4 + node_in * hid * 4 + hid * 4
        + hid * readout_feats * 4 + readout_feats * 4
        + 2 * N * hid * 4 + N * hid * 2
        + 2 * readout_feats * 4
        + 4 * TE * N * 2)
    vmem_limit = int(max(32 * 1024 * 1024, min(64 * 1024 * 1024, 2 * vmem_est)))

    return pl.pallas_call(
        gin_kernel,
        out_shape=jax.ShapeDtypeStruct((1, readout_feats), jnp.float32),
        grid=grid,
        in_specs=in_specs,
        out_specs=out_specs,
        scratch_shapes=[pltpu.VMEM((N, hid), jnp.float32),    # H (f32 master)
                        pltpu.VMEM((N, hid), jnp.bfloat16),   # H (bf16 shadow)
                        pltpu.VMEM((N, hid), jnp.float32)],   # per-layer aggregation
        compiler_params=pltpu.CompilerParams(
            dimension_semantics=("arbitrary", "arbitrary"),
            vmem_limit_bytes=vmem_limit),
        cost_estimate=pl.CostEstimate(flops=int(flops), transcendentals=0,
                                      bytes_accessed=bytes_accessed),
    )(node_attr, Ef, src_p, dst_p, wn, bn, w1, b1, w2, b2, ws, bs, a_prelu)


def make_params(key, node_in, edge_in, hid, readout_feats, depth):
    keys = jax.random.split(key, 10)

    def lin(k, fan_in, shape):
        bound = 1.0 / math.sqrt(fan_in)
        return jax.random.uniform(k, shape, jnp.float32, -bound, bound)

    wn = lin(keys[0], node_in, (node_in, hid))
    bn = lin(keys[1], node_in, (1, hid))
    we = lin(keys[2], edge_in, (edge_in, hid))
    be = lin(keys[3], edge_in, (1, hid))
    w1 = lin(keys[4], hid, (depth, hid, hid))
    b1 = lin(keys[5], hid, (depth, 1, hid))
    w2 = lin(keys[6], hid, (depth, hid, hid))
    b2 = lin(keys[7], hid, (depth, 1, hid))
    ws = lin(keys[8], hid, (hid, readout_feats))
    bs = lin(keys[9], hid, (1, readout_feats))
    a_prelu = jnp.full((1, 1), 0.25, jnp.float32)   # nn.PReLU default init
    return (wn, bn, we, be, w1, b1, w2, b2, ws, bs, a_prelu)


def gin_reference(node_attr, edge_attr, src, dst, params):
    """Pure-JAX f32 reference using index-based gather/scatter (eval mode)."""
    (wn, bn, we, be, w1, b1, w2, b2, ws, bs, a_prelu) = params
    H = jax.nn.relu(node_attr @ wn + bn)
    Ef = edge_attr @ we + be
    depth = w1.shape[0]
    for i in range(depth):
        msg = jax.nn.relu(H[src] + Ef)
        agg = jnp.zeros_like(H).at[dst].add(msg)
        h = jax.nn.relu((H + agg) @ w1[i] + b1[i])
        H = h @ w2[i] + b2[i]
        if i < depth - 1:
            H = jax.nn.relu(H)
    r = jnp.mean(H, axis=0, keepdims=True)
    z = r @ ws + bs
    return jnp.where(z >= 0.0, z, a_prelu[0, 0] * z)


if __name__ == "__main__":
    # Small demo sizes; hid / readout_feats chosen as multiples of 256 so the
    # matmuls map onto the full 256-wide MXU on v6e/v7x (128-wide on v5e).
    N, E = 128, 300
    node_in, edge_in = 16, 8
    hid, readout_feats, depth = 256, 256, 3

    key = jax.random.PRNGKey(0)
    k_node, k_edge, k_src, k_dst, k_params = jax.random.split(key, 5)

    node_attr = jax.random.normal(k_node, (N, node_in), jnp.float32)
    edge_attr = jax.random.normal(k_edge, (E, edge_in), jnp.float32)
    src = jax.random.randint(k_src, (E,), 0, N)
    dst = jax.random.randint(k_dst, (E,), 0, N)

    params = make_params(k_params, node_in, edge_in, hid, readout_feats, depth)

    out = gin_forward(node_attr, edge_attr, src, dst, params)
    jax.block_until_ready(out)
    assert out.shape == (1, readout_feats)

    with jax.default_matmul_precision("float32"):
        ref = gin_reference(node_attr, edge_attr, src, dst, params)
    err = float(jnp.max(jnp.abs(out - ref)))
    scale = float(jnp.max(jnp.abs(ref))) + 1.0
    # bf16 operands on the edge-tile matmuls give ~1e-2 relative error vs the
    # all-f32 reference; allow 3e-2.
    assert err <= 3e-2 * scale, f"mismatch: max abs err {err}"

    print("KERNEL_OK")
</pallas_src>

<mosaic_0001>
module attributes {stable_mosaic.version = 11 : i64} {
  func.func @gin_kernel(%arg0: i32, %arg1: i32, %arg2: memref<128x16xf32, #tpu.memory_space<vmem>>, %arg3: memref<512x256xf32, #tpu.memory_space<vmem>>, %arg4: memref<512x1xi32, #tpu.memory_space<vmem>>, %arg5: memref<512x1xi32, #tpu.memory_space<vmem>>, %arg6: memref<16x256xf32, #tpu.memory_space<vmem>>, %arg7: memref<1x256xf32, #tpu.memory_space<vmem>>, %arg8: memref<1x256x256xf32, #tpu.memory_space<vmem>>, %arg9: memref<1x1x256xf32, #tpu.memory_space<vmem>>, %arg10: memref<1x256x256xf32, #tpu.memory_space<vmem>>, %arg11: memref<1x1x256xf32, #tpu.memory_space<vmem>>, %arg12: memref<256x256xf32, #tpu.memory_space<vmem>>, %arg13: memref<1x256xf32, #tpu.memory_space<vmem>>, %arg14: memref<1x1xf32, #tpu.memory_space<smem>>, %arg15: memref<1x256xf32, #tpu.memory_space<vmem>>, %arg16: memref<128x256xf32, #tpu.memory_space<vmem>>, %arg17: memref<128x256xbf16, #tpu.memory_space<vmem>>, %arg18: memref<128x256xf32, #tpu.memory_space<vmem>>) attributes {dimension_semantics = [#tpu.dimension_semantics<arbitrary>, #tpu.dimension_semantics<arbitrary>], iteration_bounds = array<i64: 3, 1>, scalar_prefetch = 0 : i64, scratch_operands = 3 : i64, tpu.core_type = #tpu.core_type<tc>, window_params = [{pipeline_mode = #tpu.pipeline_mode<synchronous>, transform_indices = @transform_0, window_bounds = array<i64: 128, 16>}, {transform_indices = @transform_1, window_bounds = array<i64: 512, 256>}, {transform_indices = @transform_2, window_bounds = array<i64: 512, 1>}, {transform_indices = @transform_3, window_bounds = array<i64: 512, 1>}, {pipeline_mode = #tpu.pipeline_mode<synchronous>, transform_indices = @transform_4, window_bounds = array<i64: 16, 256>}, {pipeline_mode = #tpu.pipeline_mode<synchronous>, transform_indices = @transform_5, window_bounds = array<i64: 1, 256>}, {transform_indices = @transform_6, window_bounds = array<i64: 1, 256, 256>}, {transform_indices = @transform_7, window_bounds = array<i64: 1, 1, 256>}, {transform_indices = @transform_8, window_bounds = array<i64: 1, 256, 256>}, {transform_indices = @transform_9, window_bounds = array<i64: 1, 1, 256>}, {pipeline_mode = #tpu.pipeline_mode<synchronous>, transform_indices = @transform_10, window_bounds = array<i64: 256, 256>}, {pipeline_mode = #tpu.pipeline_mode<synchronous>, transform_indices = @transform_11, window_bounds = array<i64: 1, 256>}, {transform_indices = @transform_12, window_bounds = array<i64: 1, 1>}, {pipeline_mode = #tpu.pipeline_mode<synchronous>, transform_indices = @transform_13, window_bounds = array<i64: 1, 256>}]} {
    %c0_i32 = arith.constant 0 : i32
    %0 = arith.cmpi eq, %arg0, %c0_i32 : i32
    %c0_i32_0 = arith.constant 0 : i32
    %1 = arith.cmpi eq, %arg1, %c0_i32_0 : i32
    %2 = arith.andi %0, %1 : i1
    %3 = arith.extui %2 : i1 to i32
    %c0_i32_1 = arith.constant 0 : i32
    %4 = arith.cmpi ne, %3, %c0_i32_1 : i32
    scf.if %4 {
      %c0_19 = arith.constant 0 : index
      %c0_20 = arith.constant 0 : index
      %35 = vector.load %arg2[%c0_19, %c0_20] : memref<128x16xf32, #tpu.memory_space<vmem>>, vector<128x16xf32>
      %c0_21 = arith.constant 0 : index
      %c0_22 = arith.constant 0 : index
      %36 = vector.load %arg6[%c0_21, %c0_22] : memref<16x256xf32, #tpu.memory_space<vmem>>, vector<16x256xf32>
      %cst_23 = arith.constant dense<0.000000e+00> : vector<128x256xf32>
      %37 = tpu.matmul %35, %36, %cst_23 {dimension_numbers = #tpu.dot_dimension_numbers<[1], [0], [0], [1], [0, 0, 1, 1], [], []>} : vector<128x16xf32>, vector<16x256xf32>, vector<128x256xf32> -> vector<128x256xf32>
      %c0_24 = arith.constant 0 : index
      %c0_25 = arith.constant 0 : index
      %38 = vector.load %arg7[%c0_24, %c0_25] : memref<1x256xf32, #tpu.memory_space<vmem>>, vector<1x256xf32>
      %39 = vector.broadcast %38 : vector<1x256xf32> to vector<128x256xf32>
      %40 = arith.addf %37, %39 : vector<128x256xf32>
      %cst_26 = arith.constant 0.000000e+00 : f32
      %41 = vector.broadcast %cst_26 : f32 to vector<128x256xf32>
      %42 = arith.maximumf %40, %41 : vector<128x256xf32>
      %c0_27 = arith.constant 0 : index
      %c0_28 = arith.constant 0 : index
      %43 = vector.load %arg16[%c0_27, %c0_28] : memref<128x256xf32, #tpu.memory_space<vmem>>, vector<128x256xf32>
      tpu.vector_store %arg16[%c0_27, %c0_28], %42 {strides = array<i32>} : memref<128x256xf32, #tpu.memory_space<vmem>>, vector<128x256xf32>,
    } else {
    }
    %c0_i32_2 = arith.constant 0 : i32
    %5 = arith.cmpi eq, %arg1, %c0_i32_2 : i32
    %6 = arith.extui %5 : i1 to i32
    %c0_i32_3 = arith.constant 0 : i32
    %7 = arith.cmpi ne, %6, %c0_i32_3 : i32
    scf.if %7 {
      %cst_19 = arith.constant 0.000000e+00 : f32
      %35 = vector.broadcast %cst_19 : f32 to vector<128x256xf32>
      %c0_20 = arith.constant 0 : index
      %c0_21 = arith.constant 0 : index
      %36 = vector.load %arg18[%c0_20, %c0_21] : memref<128x256xf32, #tpu.memory_space<vmem>>, vector<128x256xf32>
      tpu.vector_store %arg18[%c0_20, %c0_21], %35 {strides = array<i32>} : memref<128x256xf32, #tpu.memory_space<vmem>>, vector<128x256xf32>,
      %c0_22 = arith.constant 0 : index
      %c0_23 = arith.constant 0 : index
      %37 = vector.load %arg16[%c0_22, %c0_23] : memref<128x256xf32, #tpu.memory_space<vmem>>, vector<128x256xf32>
      %38 = arith.truncf %37 : vector<128x256xf32> to vector<128x256xbf16>
      %c0_24 = arith.constant 0 : index
      %c0_25 = arith.constant 0 : index
      %39 = vector.load %arg17[%c0_24, %c0_25] : memref<128x256xbf16, #tpu.memory_space<vmem>>, vector<128x256xbf16>
      tpu.vector_store %arg17[%c0_24, %c0_25], %38 {strides = array<i32>} : memref<128x256xbf16, #tpu.memory_space<vmem>>, vector<128x256xbf16>,
    } else {
    }
    %8 = tpu.iota {dimensions = array<i32: 1>} : vector<512x128xi32>
    %c0 = arith.constant 0 : index
    %c0_4 = arith.constant 0 : index
    %9 = vector.load %arg4[%c0, %c0_4] : memref<512x1xi32, #tpu.memory_space<vmem>>, vector<512x1xi32>
    %10 = vector.broadcast %9 : vector<512x1xi32> to vector<512x128xi32>
    %11 = arith.cmpi eq, %10, %8 : vector<512x128xi32>
    %12 = arith.extui %11 : vector<512x128xi1> to vector<512x128xi32>
    %13 = arith.sitofp %12 : vector<512x128xi32> to vector<512x128xf32>
    %14 = arith.truncf %13 : vector<512x128xf32> to vector<512x128xbf16>
    %c0_5 = arith.constant 0 : index
    %c0_6 = arith.constant 0 : index
    %15 = vector.load %arg5[%c0_5, %c0_6] : memref<512x1xi32, #tpu.memory_space<vmem>>, vector<512x1xi32>
    %16 = vector.broadcast %15 : vector<512x1xi32> to vector<512x128xi32>
    %17 = arith.cmpi eq, %16, %8 : vector<512x128xi32>
    %18 = arith.extui %17 : vector<512x128xi1> to vector<512x128xi32>
    %19 = arith.sitofp %18 : vector<512x128xi32> to vector<512x128xf32>
    %20 = arith.truncf %19 : vector<512x128xf32> to vector<512x128xbf16>
    %c0_7 = arith.constant 0 : index
    %c0_8 = arith.constant 0 : index
    %21 = vector.load %arg17[%c0_7, %c0_8] : memref<128x256xbf16, #tpu.memory_space<vmem>>, vector<128x256xbf16>
    %cst = arith.constant dense<0.000000e+00> : vector<512x256xf32>
    %22 = tpu.matmul %14, %21, %cst {dimension_numbers = #tpu.dot_dimension_numbers<[1], [0], [0], [1], [0, 0, 1, 1], [], []>} : vector<512x128xbf16>, vector<128x256xbf16>, vector<512x256xf32> -> vector<512x256xf32>
    %c0_9 = arith.constant 0 : index
    %c0_10 = arith.constant 0 : index
    %23 = vector.load %arg3[%c0_9, %c0_10] : memref<512x256xf32, #tpu.memory_space<vmem>>, vector<512x256xf32>
    %24 = arith.addf %22, %23 : vector<512x256xf32>
    %cst_11 = arith.constant 0.000000e+00 : f32
    %25 = vector.broadcast %cst_11 : f32 to vector<512x256xf32>
    %26 = arith.maximumf %24, %25 : vector<512x256xf32>
    %c0_12 = arith.constant 0 : index
    %c0_13 = arith.constant 0 : index
    %27 = vector.load %arg18[%c0_12, %c0_13] : memref<128x256xf32, #tpu.memory_space<vmem>>, vector<128x256xf32>
    %28 = arith.truncf %26 : vector<512x256xf32> to vector<512x256xbf16>
    %cst_14 = arith.constant dense<0.000000e+00> : vector<128x256xf32>
    %29 = tpu.matmul %20, %28, %cst_14 {dimension_numbers = #tpu.dot_dimension_numbers<[0], [0], [1], [1], [0, 1, 1, 1], [], []>} : vector<512x128xbf16>, vector<512x256xbf16>, vector<128x256xf32> -> vector<128x256xf32>
    %30 = arith.addf %27, %29 : vector<128x256xf32>
    %c0_15 = arith.constant 0 : index
    %c0_16 = arith.constant 0 : index
    %31 = vector.load %arg18[%c0_15, %c0_16] : memref<128x256xf32, #tpu.memory_space<vmem>>, vector<128x256xf32>
    tpu.vector_store %arg18[%c0_15, %c0_16], %30 {strides = array<i32>} : memref<128x256xf32, #tpu.memory_space<vmem>>, vector<128x256xf32>,
    %c0_i32_17 = arith.constant 0 : i32
    %32 = arith.cmpi eq, %arg1, %c0_i32_17 : i32
    %33 = arith.extui %32 : i1 to i32
    %c0_i32_18 = arith.constant 0 : i32
    %34 = arith.cmpi ne, %33, %c0_i32_18 : i32
    scf.if %34 {
      %c0_19 = arith.constant 0 : index
      %c0_20 = arith.constant 0 : index
      %35 = vector.load %arg16[%c0_19, %c0_20] : memref<128x256xf32, #tpu.memory_space<vmem>>, vector<128x256xf32>
      %c0_21 = arith.constant 0 : index
      %c0_22 = arith.constant 0 : index
      %36 = vector.load %arg18[%c0_21, %c0_22] : memref<128x256xf32, #tpu.memory_space<vmem>>, vector<128x256xf32>
      %37 = arith.addf %35, %36 : vector<128x256xf32>
      %c0_23 = arith.constant 0 : index
      %c0_24 = arith.constant 0 : index
      %c0_25 = arith.constant 0 : index
      %38 = vector.load %arg8[%c0_23, %c0_24, %c0_25] : memref<1x256x256xf32, #tpu.memory_space<vmem>>, vector<1x256x256xf32>
      %39 = vector.shape_cast %38 : vector<1x256x256xf32> to vector<256x256xf32>
      %cst_26 = arith.constant dense<0.000000e+00> : vector<128x256xf32>
      %40 = tpu.matmul %37, %39, %cst_26 {dimension_numbers = #tpu.dot_dimension_numbers<[1], [0], [0], [1], [0, 0, 1, 1], [], []>} : vector<128x256xf32>, vector<256x256xf32>, vector<128x256xf32> -> vector<128x256xf32>
      %c0_27 = arith.constant 0 : index
      %c0_28 = arith.constant 0 : index
      %c0_29 = arith.constant 0 : index
      %41 = vector.load %arg9[%c0_27, %c0_28, %c0_29] : memref<1x1x256xf32, #tpu.memory_space<vmem>>, vector<1x1x256xf32>
      %42 = vector.shape_cast %41 : vector<1x1x256xf32> to vector<1x256xf32>
      %43 = vector.broadcast %42 : vector<1x256xf32> to vector<128x256xf32>
      %44 = arith.addf %40, %43 : vector<128x256xf32>
      %cst_30 = arith.constant 0.000000e+00 : f32
      %45 = vector.broadcast %cst_30 : f32 to vector<128x256xf32>
      %46 = arith.maximumf %44, %45 : vector<128x256xf32>
      %c0_31 = arith.constant 0 : index
      %c0_32 = arith.constant 0 : index
      %c0_33 = arith.constant 0 : index
      %47 = vector.load %arg10[%c0_31, %c0_32, %c0_33] : memref<1x256x256xf32, #tpu.memory_space<vmem>>, vector<1x256x256xf32>
      %48 = vector.shape_cast %47 : vector<1x256x256xf32> to vector<256x256xf32>
      %cst_34 = arith.constant dense<0.000000e+00> : vector<128x256xf32>
      %49 = tpu.matmul %46, %48, %cst_34 {dimension_numbers = #tpu.dot_dimension_numbers<[1], [0], [0], [1], [0, 0, 1, 1], [], []>} : vector<128x256xf32>, vector<256x256xf32>, vector<128x256xf32> -> vector<128x256xf32>
      %c0_35 = arith.constant 0 : index
      %c0_36 = arith.constant 0 : index
      %c0_37 = arith.constant 0 : index
      %50 = vector.load %arg11[%c0_35, %c0_36, %c0_37] : memref<1x1x256xf32, #tpu.memory_space<vmem>>, vector<1x1x256xf32>
      %51 = vector.shape_cast %50 : vector<1x1x256xf32> to vector<1x256xf32>
      %52 = vector.broadcast %51 : vector<1x256xf32> to vector<128x256xf32>
      %53 = arith.addf %49, %52 : vector<128x256xf32>
      %c2_i32 = arith.constant 2 : i32
      %54 = arith.cmpi slt, %arg0, %c2_i32 : i32
      %55 = arith.extui %54 : i1 to i32
      %c0_i32_38 = arith.constant 0 : i32
      %56 = arith.cmpi ne, %55, %c0_i32_38 : i32
      scf.if %56 {
        %cst_41 = arith.constant 0.000000e+00 : f32
        %60 = vector.broadcast %cst_41 : f32 to vector<128x256xf32>
        %61 = arith.maximumf %53, %60 : vector<128x256xf32>
        %c0_42 = arith.constant 0 : index
        %c0_43 = arith.constant 0 : index
        %62 = vector.load %arg16[%c0_42, %c0_43] : memref<128x256xf32, #tpu.memory_space<vmem>>, vector<128x256xf32>
        tpu.vector_store %arg16[%c0_42, %c0_43], %61 {strides = array<i32>} : memref<128x256xf32, #tpu.memory_space<vmem>>, vector<128x256xf32>,
      } else {
      }
      %c2_i32_39 = arith.constant 2 : i32
      %57 = arith.cmpi eq, %arg0, %c2_i32_39 : i32
      %58 = arith.extui %57 : i1 to i32
      %c0_i32_40 = arith.constant 0 : i32
      %59 = arith.cmpi ne, %58, %c0_i32_40 : i32
      scf.if %59 {
        %cst_41 = arith.constant dense<0.000000e+00> : vector<256xf32>
        %60 = vector.multi_reduction <add>, %53, %cst_41 [0] : vector<128x256xf32> to vector<256xf32>
        %61 = vector.shape_cast %60 : vector<256xf32> to vector<1x256xf32>
        %cst_42 = arith.constant 1.280000e+02 : f32
        %62 = vector.broadcast %cst_42 : f32 to vector<1x256xf32>
        %63 = arith.divf %61, %62 : vector<1x256xf32>
        %c0_43 = arith.constant 0 : index
        %c0_44 = arith.constant 0 : index
        %64 = vector.load %arg12[%c0_43, %c0_44] : memref<256x256xf32, #tpu.memory_space<vmem>>, vector<256x256xf32>
        %cst_45 = arith.constant dense<0.000000e+00> : vector<1x256xf32>
        %65 = tpu.matmul %63, %64, %cst_45 {dimension_numbers = #tpu.dot_dimension_numbers<[1], [0], [0], [1], [0, 0, 1, 1], [], []>} : vector<1x256xf32>, vector<256x256xf32>, vector<1x256xf32> -> vector<1x256xf32>
        %c0_46 = arith.constant 0 : index
        %c0_47 = arith.constant 0 : index
        %66 = vector.load %arg13[%c0_46, %c0_47] : memref<1x256xf32, #tpu.memory_space<vmem>>, vector<1x256xf32>
        %67 = arith.addf %65, %66 : vector<1x256xf32>
        %c0_48 = arith.constant 0 : index
        %c0_49 = arith.constant 0 : index
        %68 = memref.load %arg14[%c0_48, %c0_49] : memref<1x1xf32, #tpu.memory_space<smem>>
        %cst_50 = arith.constant 0.000000e+00 : f32
        %69 = vector.broadcast %cst_50 : f32 to vector<1x256xf32>
        %70 = arith.cmpf oge, %67, %69 : vector<1x256xf32>
        %71 = vector.broadcast %68 : f32 to vector<1x256xf32>
        %72 = arith.mulf %71, %67 : vector<1x256xf32>
        %73 = arith.select %70, %67, %72 : vector<1x256xi1>, vector<1x256xf32>
        %c0_51 = arith.constant 0 : index
        %c0_52 = arith.constant 0 : index
        %74 = vector.load %arg15[%c0_51, %c0_52] : memref<1x256xf32, #tpu.memory_space<vmem>>, vector<1x256xf32>
        tpu.vector_store %arg15[%c0_51, %c0_52], %73 {strides = array<i32>} : memref<1x256xf32, #tpu.memory_space<vmem>>, vector<1x256xf32>,
      } else {
      }
    } else {
    }
    return
  }
  func.func @transform_0(%arg0: i32, %arg1: i32) -> (i32, i32) {
    %c0_i32 = arith.constant 0 : i32
    %c0_i32_0 = arith.constant 0 : i32
    %c0_i32_1 = arith.constant 0 : i32
    return %c0_i32, %c0_i32_0 : i32, i32
  }
  func.func @transform_1(%arg0: i32, %arg1: i32) -> (i32, i32) {
    %c0_i32 = arith.constant 0 : i32
    %c0_i32_0 = arith.constant 0 : i32
    return %arg1, %c0_i32 : i32, i32
  }
  func.func @transform_2(%arg0: i32, %arg1: i32) -> (i32, i32) {
    %c0_i32 = arith.constant 0 : i32
    %c0_i32_0 = arith.constant 0 : i32
    return %arg1, %c0_i32 : i32, i32
  }
  func.func @transform_3(%arg0: i32, %arg1: i32) -> (i32, i32) {
    %c0_i32 = arith.constant 0 : i32
    %c0_i32_0 = arith.constant 0 : i32
    return %arg1, %c0_i32 : i32, i32
  }
  func.func @transform_4(%arg0: i32, %arg1: i32) -> (i32, i32) {
    %c0_i32 = arith.constant 0 : i32
    %c0_i32_0 = arith.constant 0 : i32
    %c0_i32_1 = arith.constant 0 : i32
    return %c0_i32, %c0_i32_0 : i32, i32
  }
  func.func @transform_5(%arg0: i32, %arg1: i32) -> (i32, i32) {
    %c0_i32 = arith.constant 0 : i32
    %c0_i32_0 = arith.constant 0 : i32
    %c0_i32_1 = arith.constant 0 : i32
    return %c0_i32, %c0_i32_0 : i32, i32
  }
  func.func @transform_6(%arg0: i32, %arg1: i32) -> (i32, i32, i32) {
    %c0_i32 = arith.constant 0 : i32
    %c0_i32_0 = arith.constant 0 : i32
    %c0_i32_1 = arith.constant 0 : i32
    return %arg0, %c0_i32, %c0_i32_0 : i32, i32, i32
  }
  func.func @transform_7(%arg0: i32, %arg1: i32) -> (i32, i32, i32) {
    %c0_i32 = arith.constant 0 : i32
    %c0_i32_0 = arith.constant 0 : i32
    %c0_i32_1 = arith.constant 0 : i32
    return %arg0, %c0_i32, %c0_i32_0 : i32, i32, i32
  }
  func.func @transform_8(%arg0: i32, %arg1: i32) -> (i32, i32, i32) {
    %c0_i32 = arith.constant 0 : i32
    %c0_i32_0 = arith.constant 0 : i32
    %c0_i32_1 = arith.constant 0 : i32
    return %arg0, %c0_i32, %c0_i32_0 : i32, i32, i32
  }
  func.func @transform_9(%arg0: i32, %arg1: i32) -> (i32, i32, i32) {
    %c0_i32 = arith.constant 0 : i32
    %c0_i32_0 = arith.constant 0 : i32
    %c0_i32_1 = arith.constant 0 : i32
    return %arg0, %c0_i32, %c0_i32_0 : i32, i32, i32
  }
  func.func @transform_10(%arg0: i32, %arg1: i32) -> (i32, i32) {
    %c0_i32 = arith.constant 0 : i32
    %c0_i32_0 = arith.constant 0 : i32
    %c0_i32_1 = arith.constant 0 : i32
    return %c0_i32, %c0_i32_0 : i32, i32
  }
  func.func @transform_11(%arg0: i32, %arg1: i32) -> (i32, i32) {
    %c0_i32 = arith.constant 0 : i32
    %c0_i32_0 = arith.constant 0 : i32
    %c0_i32_1 = arith.constant 0 : i32
    return %c0_i32, %c0_i32_0 : i32, i32
  }
  func.func @transform_12(%arg0: i32, %arg1: i32) -> (i32, i32) {
    %c0_i32 = arith.constant 0 : i32
    %c0_i32_0 = arith.constant 0 : i32
    %c0_i32_1 = arith.constant 0 : i32
    return %c0_i32, %c0_i32_0 : i32, i32
  }
  func.func @transform_13(%arg0: i32, %arg1: i32) -> (i32, i32) {
    %c0_i32 = arith.constant 0 : i32
    %c0_i32_0 = arith.constant 0 : i32
    %c0_i32_1 = arith.constant 0 : i32
    return %c0_i32, %c0_i32_0 : i32, i32
  }
}

</mosaic_0001>

<llo_original>
// kernel: tpu_custom_call.1
$region0: #{tpu_custom_call.1}
  #allocation0 [shape = 'u32[]', space=smem, size = 0x4, offset = 0x4, fixed_abs, tag = 'smem constant byte address 0x4 - core index']
  #allocation1 [shape = 'u32[72,128]{1,0:T(1,128)}', space=vmem, size = 0x9000, scoped, tag = 'internal scratch']
  #allocation2 [shape = 'f32[128,256]{1,0:T(8,128)}', space=vmem, size = 0x20000, scoped, tag = 'scratch operand']
  #allocation3 [shape = 'bf16[128,256]{1,0:T(8,128)(2,1)}', space=vmem, size = 0x10000, scoped, tag = 'scratch operand']
  #allocation4 [shape = 'f32[128,256]{1,0:T(8,128)}', space=vmem, size = 0x20000, scoped, tag = 'scratch operand']
  #allocation5 [shape = 'f32[1,1]{1,0:T(1,128)S(6)}', space=smem, size = 0x200, scoped, tag = 'scoped memory for tpu_custom_call.1']
  %s0 = inlined_call_operand.vmem [shape: f32[128,16], index: 0, kind: input, shape index: {}]
  %s1 = inlined_call_operand.vmem [shape: f32[512,256], index: 1, kind: input, shape index: {}]
  %s2 = inlined_call_operand.vmem [shape: s32[512,1], index: 2, kind: input, shape index: {}]
  %s3 = inlined_call_operand.vmem [shape: s32[512,1], index: 3, kind: input, shape index: {}]
  %s4 = inlined_call_operand.vmem [shape: f32[16,256], index: 4, kind: input, shape index: {}]
  %s5 = inlined_call_operand.vmem [shape: f32[1,256], index: 5, kind: input, shape index: {}]
  %s6 = inlined_call_operand.hbm [shape: f32[3,256,256], index: 6, kind: input, shape index: {}]
  %s7 = inlined_call_operand.vmem [shape: f32[3,1,256], index: 7, kind: input, shape index: {}]
  %s8 = inlined_call_operand.hbm [shape: f32[3,256,256], index: 8, kind: input, shape index: {}]
  %s9 = inlined_call_operand.vmem [shape: f32[3,1,256], index: 9, kind: input, shape index: {}]
  %s10 = inlined_call_operand.hbm [shape: f32[256,256], index: 10, kind: input, shape index: {}]
  %s11 = inlined_call_operand.vmem [shape: f32[1,256], index: 11, kind: input, shape index: {}]
  %s12 = inlined_call_operand.<no memory space> [shape: f32[1,1], index: 12, kind: input, shape index: {}]
  %s13 = inlined_call_operand.hbm [shape: f32[1,256], index: 13, kind: output, shape index: {}]
  %s14 = sld [smem:[#allocation0]]
  $region117: #{tpu_custom_call.1} parent=0
    _
  %s16 = ssub.s32 1, %s14
  %s17 = scalar_select 0, %s16, %s14
  %18 = sst [smem:[#allocation5]] %s12
  $region1: #{tpu_custom_call.1} parent=0
    #allocation6 [shape = 'u8[524288]{0}', space=vmem, size = 0x80000, scoped, tag = 'input window, operand 6']
    #allocation7 [shape = 's32[2]{0}', space=sflag, size = 0x8, scoped, tag = 'scoped memory for tpu_custom_call.1']
    #allocation8 [shape = 's32[2]{0}', space=sflag, size = 0x8, scoped, tag = 'scoped memory for tpu_custom_call.1']
    #allocation9 [shape = 'u8[524288]{0}', space=vmem, size = 0x80000, scoped, tag = 'input window, operand 8']
    #allocation10 [shape = 's32[2]{0}', space=sflag, size = 0x8, scoped, tag = 'scoped memory for tpu_custom_call.1']
    #allocation11 [shape = 'u8[262144]{0}', space=vmem, size = 0x40000, scoped, tag = 'input window, operand 10, single buffered']
    #allocation12 [shape = 'u8[1024]{0}', space=vmem, size = 0x400, scoped, tag = 'output window, operand 0, single buffered']
    %19 = vsyncpa [#allocation7], 0
    %s20 = scalar_lea.sflag [#allocation7], 1
    %21 = vsyncpa %s20, 0
    %22 = vsyncpa [#allocation10], 0
    %s23 = scalar_lea.sflag [#allocation10], 1
    %24 = vsyncpa %s23, 0
    %25 = vsyncpa [#allocation8], 0
    loop: start=0, step=1, limit=5
    $region2: #{tpu_custom_call.1} parent=1 // loop_pre_header
      _
    $region3: #{tpu_custom_call.1} parent=1 // loop_header
      %s27 = sphi 0, %s31
      %p28 = scmp.ge.s32.totalorder %s27, 5
      %s34 = sphi 0, %s46
      %s35 = sphi 0, %s42
      %s36 = sphi 0, %s34
      %s37 = sphi 0, %s35
      %s38 = sphi 0, %s36
      %s39 = sphi 0, %s37
      %s47 = sphi 0, %s47
      %s49 = sphi 0, %s47
      %s50 = sphi 0, %s49
      %s64 = sphi 0, %s50
      %s70 = sphi 0, %s72
      %s73 = sphi 0, %s70
      %s74 = sphi 0, %s73
      %s90 = sphi 0, %s74
      %s96 = sphi 0, %s98
      %s99 = sphi 0, %s96
      %s100 = sphi 0, %s99
      %s116 = sphi 0, %s100
      %s122 = sphi 0, %s124
      %s125 = sphi 0, %s122
      %s126 = sphi 0, %s125
      %s142 = sphi 0, %s126
      %s146 = sphi 0, %s146
      %s148 = sphi 0, %s146
      %s149 = sphi 0, %s148
      %s163 = sphi 0, %s149
      %s167 = sphi 0, %s167
      %s169 = sphi 0, %s167
      %s170 = sphi 0, %s169
      %s184 = sphi 0, %s170
      %s190 = sphi 0, %s192
      %s193 = sphi 0, %s190
      %s194 = sphi 0, %s193
      %s210 = sphi 0, %s194
      %s216 = sphi 0, %s218
      %s219 = sphi 0, %s216
      %s220 = sphi 0, %s219
      %s236 = sphi 0, %s220
      %s242 = sphi 0, %s244
      %s245 = sphi 0, %s242
      %s246 = sphi 0, %s245
      %s262 = sphi 0, %s246
      %s268 = sphi 0, %s270
      %s271 = sphi 0, %s268
      %s272 = sphi 0, %s271
      %s288 = sphi 0, %s272
      %s292 = sphi 0, %s292
      %s294 = sphi 0, %s292
      %s295 = sphi 0, %s294
      %s309 = sphi 0, %s295
      %s313 = sphi 0, %s313
      %s315 = sphi 0, %s313
      %s316 = sphi 0, %s315
      %s330 = sphi 0, %s316
      %s334 = sphi 0, %s334
      %s336 = sphi 0, %s334
      %s337 = sphi 0, %s336
      %s351 = sphi 0, %s337
      %s355 = sphi 0, %s355
      %s357 = sphi 0, %s355
      %s358 = sphi 0, %s357
      %s372 = sphi 0, %s358
    $region4: #{tpu_custom_call.1} parent=1 // loop_header_branch
      %30 = sbr.rel (%p28) target = $region8
    $region5: #{tpu_custom_call.1} parent=1 // loop_body
      %s32 = ssub.s32 %s27, 1
      %s33 = ssub.s32 %s27, 2
      %s40 = sadd.s32 1, %s35
      %p41 = scmp.ge.s32.totalorder %s40, 1
      %s42 = scalar_select %p41, 0, %s40
      %s43 = sadd.s32 1, %s34
      %s44 = scalar_select %p41, %s43, %s34
      %p45 = scmp.ge.s32.totalorder %s44, 3
      %s46 = scalar_select %p45, 0, %s44
      %s48 = sadd.s32 %s47, 1
      %p51 = scmp.eq.s32.totalorder %s27, 2
      %p52 = scmp.ne.s32.totalorder %s47, %s49
      %p53 = scmp.eq.s32.totalorder %s27, 0
      %p54 = por %p52, %p53
      %p55 = scmp.ne.s32.totalorder %s47, %s49
      %p56 = scmp.eq.s32.totalorder %s32, 2
      %p57 = por %p55, %p56
      %p58 = scmp.ne.s32.totalorder %s49, %s50
      %p59 = scmp.eq.s32.totalorder %s32, 0
      %p60 = por %p58, %p59
      %p61 = scmp.ne.s32.totalorder %s49, %s50
      %p62 = scmp.eq.s32.totalorder %s33, 2
      %p63 = por %p61, %p62
      %p65 = scmp.ne.s32.totalorder %s50, %s64
      %p66 = scmp.eq.s32.totalorder %s33, 0
      %p67 = por %p65, %p66
      %s68 = ssub.s32 %s35, %s42
      %p69 = scmp.eq.s32.totalorder %s68, 0
      %s71 = sadd.s32 %s70, 1
      %s72 = scalar_select %p69, %s70, %s71
      %p75 = pneg %p69
      %p76 = scmp.eq.s32.totalorder %s27, 2
      %p77 = por %p75, %p76
      %p78 = scmp.ne.s32.totalorder %s70, %s73
      %p79 = scmp.eq.s32.totalorder %s27, 0
      %p80 = por %p78, %p79
      %p81 = scmp.ne.s32.totalorder %s70, %s73
      %p82 = scmp.eq.s32.totalorder %s32, 2
      %p83 = por %p81, %p82
      %p84 = scmp.ne.s32.totalorder %s73, %s74
      %p85 = scmp.eq.s32.totalorder %s32, 0
      %p86 = por %p84, %p85
      %p87 = scmp.ne.s32.totalorder %s73, %s74
      %p88 = scmp.eq.s32.totalorder %s33, 2
      %p89 = por %p87, %p88
      %p91 = scmp.ne.s32.totalorder %s74, %s90
      %p92 = scmp.eq.s32.totalorder %s33, 0
      %p93 = por %p91, %p92
      %s94 = ssub.s32 %s35, %s42
      %p95 = scmp.eq.s32.totalorder %s94, 0
      %s97 = sadd.s32 %s96, 1
      %s98 = scalar_select %p95, %s96, %s97
      %p101 = pneg %p95
      %p102 = scmp.eq.s32.totalorder %s27, 2
      %p103 = por %p101, %p102
      %p104 = scmp.ne.s32.totalorder %s96, %s99
      %p105 = scmp.eq.s32.totalorder %s27, 0
      %p106 = por %p104, %p105
      %p107 = scmp.ne.s32.totalorder %s96, %s99
      %p108 = scmp.eq.s32.totalorder %s32, 2
      %p109 = por %p107, %p108
      %p110 = scmp.ne.s32.totalorder %s99, %s100
      %p111 = scmp.eq.s32.totalorder %s32, 0
      %p112 = por %p110, %p111
      %p113 = scmp.ne.s32.totalorder %s99, %s100
      %p114 = scmp.eq.s32.totalorder %s33, 2
      %p115 = por %p113, %p114
      %p117 = scmp.ne.s32.totalorder %s100, %s116
      %p118 = scmp.eq.s32.totalorder %s33, 0
      %p119 = por %p117, %p118
      %s120 = ssub.s32 %s35, %s42
      %p121 = scmp.eq.s32.totalorder %s120, 0
      %s123 = sadd.s32 %s122, 1
      %s124 = scalar_select %p121, %s122, %s123
      %p127 = pneg %p121
      %p128 = scmp.eq.s32.totalorder %s27, 2
      %p129 = por %p127, %p128
      %p130 = scmp.ne.s32.totalorder %s122, %s125
      %p131 = scmp.eq.s32.totalorder %s27, 0
      %p132 = por %p130, %p131
      %p133 = scmp.ne.s32.totalorder %s122, %s125
      %p134 = scmp.eq.s32.totalorder %s32, 2
      %p135 = por %p133, %p134
      %p136 = scmp.ne.s32.totalorder %s125, %s126
      %p137 = scmp.eq.s32.totalorder %s32, 0
      %p138 = por %p136, %p137
      %p139 = scmp.ne.s32.totalorder %s125, %s126
      %p140 = scmp.eq.s32.totalorder %s33, 2
      %p141 = por %p139, %p140
      %p143 = scmp.ne.s32.totalorder %s126, %s142
      %p144 = scmp.eq.s32.totalorder %s33, 0
      %p145 = por %p143, %p144
      %s147 = sadd.s32 %s146, 1
      %p150 = scmp.eq.s32.totalorder %s27, 2
      %p151 = scmp.ne.s32.totalorder %s146, %s148
      %p152 = scmp.eq.s32.totalorder %s27, 0
      %p153 = por %p151, %p152
      %p154 = scmp.ne.s32.totalorder %s146, %s148
      %p155 = scmp.eq.s32.totalorder %s32, 2
      %p156 = por %p154, %p155
      %p157 = scmp.ne.s32.totalorder %s148, %s149
      %p158 = scmp.eq.s32.totalorder %s32, 0
      %p159 = por %p157, %p158
      %p160 = scmp.ne.s32.totalorder %s148, %s149
      %p161 = scmp.eq.s32.totalorder %s33, 2
      %p162 = por %p160, %p161
      %p164 = scmp.ne.s32.totalorder %s149, %s163
      %p165 = scmp.eq.s32.totalorder %s33, 0
      %p166 = por %p164, %p165
      %s168 = sadd.s32 %s167, 1
      %p171 = scmp.eq.s32.totalorder %s27, 2
      %p172 = scmp.ne.s32.totalorder %s167, %s169
      %p173 = scmp.eq.s32.totalorder %s27, 0
      %p174 = por %p172, %p173
      %p175 = scmp.ne.s32.totalorder %s167, %s169
      %p176 = scmp.eq.s32.totalorder %s32, 2
      %p177 = por %p175, %p176
      %p178 = scmp.ne.s32.totalorder %s169, %s170
      %p179 = scmp.eq.s32.totalorder %s32, 0
      %p180 = por %p178, %p179
      %p181 = scmp.ne.s32.totalorder %s169, %s170
      %p182 = scmp.eq.s32.totalorder %s33, 2
      %p183 = por %p181, %p182
      %p185 = scmp.ne.s32.totalorder %s170, %s184
      %p186 = scmp.eq.s32.totalorder %s33, 0
      %p187 = por %p185, %p186
      %s188 = ssub.s32 %s34, %s46
      %p189 = scmp.eq.s32.totalorder %s188, 0
      %s191 = sadd.s32 %s190, 1
      %s192 = scalar_select %p189, %s190, %s191
      %p195 = pneg %p189
      %p196 = scmp.eq.s32.totalorder %s27, 2
      %p197 = por %p195, %p196
      %p198 = scmp.ne.s32.totalorder %s190, %s193
      %p199 = scmp.eq.s32.totalorder %s27, 0
      %p200 = por %p198, %p199
      %p201 = scmp.ne.s32.totalorder %s190, %s193
      %p202 = scmp.eq.s32.totalorder %s32, 2
      %p203 = por %p201, %p202
      %p204 = scmp.ne.s32.totalorder %s193, %s194
      %p205 = scmp.eq.s32.totalorder %s32, 0
      %p206 = por %p204, %p205
      %p207 = scmp.ne.s32.totalorder %s193, %s194
      %p208 = scmp.eq.s32.totalorder %s33, 2
      %p209 = por %p207, %p208
      %p211 = scmp.ne.s32.totalorder %s194, %s210
      %p212 = scmp.eq.s32.totalorder %s33, 0
      %p213 = por %p211, %p212
      %s214 = ssub.s32 %s34, %s46
      %p215 = scmp.eq.s32.totalorder %s214, 0
      %s217 = sadd.s32 %s216, 1
      %s218 = scalar_select %p215, %s216, %s217
      %p221 = pneg %p215
      %p222 = scmp.eq.s32.totalorder %s27, 2
      %p223 = por %p221, %p222
      %p224 = scmp.ne.s32.totalorder %s216, %s219
      %p225 = scmp.eq.s32.totalorder %s27, 0
      %p226 = por %p224, %p225
      %p227 = scmp.ne.s32.totalorder %s216, %s219
      %p228 = scmp.eq.s32.totalorder %s32, 2
      %p229 = por %p227, %p228
      %p230 = scmp.ne.s32.totalorder %s219, %s220
      %p231 = scmp.eq.s32.totalorder %s32, 0
      %p232 = por %p230, %p231
      %p233 = scmp.ne.s32.totalorder %s219, %s220
      %p234 = scmp.eq.s32.totalorder %s33, 2
      %p235 = por %p233, %p234
      %p237 = scmp.ne.s32.totalorder %s220, %s236
      %p238 = scmp.eq.s32.totalorder %s33, 0
      %p239 = por %p237, %p238
      %s240 = ssub.s32 %s34, %s46
      %p241 = scmp.eq.s32.totalorder %s240, 0
      %s243 = sadd.s32 %s242, 1
      %s244 = scalar_select %p241, %s242, %s243
      %p247 = pneg %p241
      %p248 = scmp.eq.s32.totalorder %s27, 2
      %p249 = por %p247, %p248
      %p250 = scmp.ne.s32.totalorder %s242, %s245
      %p251 = scmp.eq.s32.totalorder %s27, 0
      %p252 = por %p250, %p251
      %p253 = scmp.ne.s32.totalorder %s242, %s245
      %p254 = scmp.eq.s32.totalorder %s32, 2
      %p255 = por %p253, %p254
      %p256 = scmp.ne.s32.totalorder %s245, %s246
      %p257 = scmp.eq.s32.totalorder %s32, 0
      %p258 = por %p256, %p257
      %p259 = scmp.ne.s32.totalorder %s245, %s246
      %p260 = scmp.eq.s32.totalorder %s33, 2
      %p261 = por %p259, %p260
      %p263 = scmp.ne.s32.totalorder %s246, %s262
      %p264 = scmp.eq.s32.totalorder %s33, 0
      %p265 = por %p263, %p264
      %s266 = ssub.s32 %s34, %s46
      %p267 = scmp.eq.s32.totalorder %s266, 0
      %s269 = sadd.s32 %s268, 1
      %s270 = scalar_select %p267, %s268, %s269
      %p273 = pneg %p267
      %p274 = scmp.eq.s32.totalorder %s27, 2
      %p275 = por %p273, %p274
      %p276 = scmp.ne.s32.totalorder %s268, %s271
      %p277 = scmp.eq.s32.totalorder %s27, 0
      %p278 = por %p276, %p277
      %p279 = scmp.ne.s32.totalorder %s268, %s271
      %p280 = scmp.eq.s32.totalorder %s32, 2
      %p281 = por %p279, %p280
      %p282 = scmp.ne.s32.totalorder %s271, %s272
      %p283 = scmp.eq.s32.totalorder %s32, 0
      %p284 = por %p282, %p283
      %p285 = scmp.ne.s32.totalorder %s271, %s272
      %p286 = scmp.eq.s32.totalorder %s33, 2
      %p287 = por %p285, %p286
      %p289 = scmp.ne.s32.totalorder %s272, %s288
      %p290 = scmp.eq.s32.totalorder %s33, 0
      %p291 = por %p289, %p290
      %s293 = sadd.s32 %s292, 1
      %p296 = scmp.eq.s32.totalorder %s27, 2
      %p297 = scmp.ne.s32.totalorder %s292, %s294
      %p298 = scmp.eq.s32.totalorder %s27, 0
      %p299 = por %p297, %p298
      %p300 = scmp.ne.s32.totalorder %s292, %s294
      %p301 = scmp.eq.s32.totalorder %s32, 2
      %p302 = por %p300, %p301
      %p303 = scmp.ne.s32.totalorder %s294, %s295
      %p304 = scmp.eq.s32.totalorder %s32, 0
      %p305 = por %p303, %p304
      %p306 = scmp.ne.s32.totalorder %s294, %s295
      %p307 = scmp.eq.s32.totalorder %s33, 2
      %p308 = por %p306, %p307
      %p310 = scmp.ne.s32.totalorder %s295, %s309
      %p311 = scmp.eq.s32.totalorder %s33, 0
      %p312 = por %p310, %p311
      %s314 = sadd.s32 %s313, 1
      %p317 = scmp.eq.s32.totalorder %s27, 2
      %p318 = scmp.ne.s32.totalorder %s313, %s315
      %p319 = scmp.eq.s32.totalorder %s27, 0
      %p320 = por %p318, %p319
      %p321 = scmp.ne.s32.totalorder %s313, %s315
      %p322 = scmp.eq.s32.totalorder %s32, 2
      %p323 = por %p321, %p322
      %p324 = scmp.ne.s32.totalorder %s315, %s316
      %p325 = scmp.eq.s32.totalorder %s32, 0
      %p326 = por %p324, %p325
      %p327 = scmp.ne.s32.totalorder %s315, %s316
      %p328 = scmp.eq.s32.totalorder %s33, 2
      %p329 = por %p327, %p328
      %p331 = scmp.ne.s32.totalorder %s316, %s330
      %p332 = scmp.eq.s32.totalorder %s33, 0
      %p333 = por %p331, %p332
      %s335 = sadd.s32 %s334, 1
      %p338 = scmp.eq.s32.totalorder %s27, 2
      %p339 = scmp.ne.s32.totalorder %s334, %s336
      %p340 = scmp.eq.s32.totalorder %s27, 0
      %p341 = por %p339, %p340
      %p342 = scmp.ne.s32.totalorder %s334, %s336
      %p343 = scmp.eq.s32.totalorder %s32, 2
      %p344 = por %p342, %p343
      %p345 = scmp.ne.s32.totalorder %s336, %s337
      %p346 = scmp.eq.s32.totalorder %s32, 0
      %p347 = por %p345, %p346
      %p348 = scmp.ne.s32.totalorder %s336, %s337
      %p349 = scmp.eq.s32.totalorder %s33, 2
      %p350 = por %p348, %p349
      %p352 = scmp.ne.s32.totalorder %s337, %s351
      %p353 = scmp.eq.s32.totalorder %s33, 0
      %p354 = por %p352, %p353
      %s356 = sadd.s32 %s355, 1
      %p359 = scmp.eq.s32.totalorder %s27, 2
      %p360 = scmp.ne.s32.totalorder %s355, %s357
      %p361 = scmp.eq.s32.totalorder %s27, 0
      %p362 = por %p360, %p361
      %p363 = scmp.ne.s32.totalorder %s355, %s357
      %p364 = scmp.eq.s32.totalorder %s32, 2
      %p365 = por %p363, %p364
      %p366 = scmp.ne.s32.totalorder %s357, %s358
      %p367 = scmp.eq.s32.totalorder %s32, 0
      %p368 = por %p366, %p367
      %p369 = scmp.ne.s32.totalorder %s357, %s358
      %p370 = scmp.eq.s32.totalorder %s33, 2
      %p371 = por %p369, %p370
      %p373 = scmp.ne.s32.totalorder %s358, %s372
      %p374 = scmp.eq.s32.totalorder %s33, 0
      %p375 = por %p373, %p374
      %p376 = scmp.le.s32.totalorder 1, %s27
      %p377 = scmp.lt.s32.totalorder %s27, 4
      %p378 = pnand %p376, %p377
      %p379 = pneg %p378
      // Predicated region
      $region9: #{tpu_custom_call.1} parent=5 // pred_check
        _
      $region10: #{tpu_custom_call.1} parent=5 // pred_check_branch
        %381 = sbr.rel (%p378) target = $region12
      $region11: #{tpu_custom_call.1} parent=5 // pred_region
        %s382 = ssub.s32 %s27, 1
        // Predicated region
        $region13: #{tpu_custom_call.1} parent=11 // pred_check
          %p383 = pneg %p60
        $region14: #{tpu_custom_call.1} parent=11 // pred_check_branch
          %385 = sbr.rel (%p383) target = $region16
        $region15: #{tpu_custom_call.1} parent=11 // pred_region
          _
        $region16: #{tpu_custom_call.1} parent=11 // pred_fallthru
          _
        // Predicated region
        $region17: #{tpu_custom_call.1} parent=11 // pred_check
          %p386 = pneg %p86
        $region18: #{tpu_custom_call.1} parent=11 // pred_check_branch
          %388 = sbr.rel (%p386) target = $region20
        $region19: #{tpu_custom_call.1} parent=11 // pred_region
          %s389 = smul.u32 64, %s37
          %p390 = scmp.lt.s32.totalorder %s389, 63
          %s391 = scalar_select %p390, %s389, 63
          %s392 = smul.addr %s391, 2
          %s393 = smul.addr %s392, 8
          %s394 = scalar_lea.vmem %s1, %s393
          %s395 = smul.u32 64, %s37
        $region20: #{tpu_custom_call.1} parent=11 // pred_fallthru
          _
        // Predicated region
        $region21: #{tpu_custom_call.1} parent=11 // pred_check
          %p396 = pneg %p112
        $region22: #{tpu_custom_call.1} parent=11 // pred_check_branch
          %398 = sbr.rel (%p396) target = $region24
        $region23: #{tpu_custom_call.1} parent=11 // pred_region
          %s399 = smul.u32 64, %s37
          %p400 = scmp.lt.s32.totalorder %s399, 63
          %s401 = scalar_select %p400, %s399, 63
          %s402 = smul.addr %s401, 8
          %s403 = scalar_lea.vmem %s2, %s402
          %s404 = smul.u32 64, %s37
        $region24: #{tpu_custom_call.1} parent=11 // pred_fallthru
          _
        // Predicated region
        $region25: #{tpu_custom_call.1} parent=11 // pred_check
          %p405 = pneg %p138
        $region26: #{tpu_custom_call.1} parent=11 // pred_check_branch
          %407 = sbr.rel (%p405) target = $region28
        $region27: #{tpu_custom_call.1} parent=11 // pred_region
          %s408 = smul.u32 64, %s37
          %p409 = scmp.lt.s32.totalorder %s408, 63
          %s410 = scalar_select %p409, %s408, 63
          %s411 = smul.addr %s410, 8
          %s412 = scalar_lea.vmem %s3, %s411
          %s413 = smul.u32 64, %s37
        $region28: #{tpu_custom_call.1} parent=11 // pred_fallthru
          _
        // Predicated region
        $region29: #{tpu_custom_call.1} parent=11 // pred_check
          %p414 = pneg %p159
        $region30: #{tpu_custom_call.1} parent=11 // pred_check_branch
          %416 = sbr.rel (%p414) target = $region32
        $region31: #{tpu_custom_call.1} parent=11 // pred_region
          _
        $region32: #{tpu_custom_call.1} parent=11 // pred_fallthru
          _
        // Predicated region
        $region33: #{tpu_custom_call.1} parent=11 // pred_check
          %p417 = pneg %p180
        $region34: #{tpu_custom_call.1} parent=11 // pred_check_branch
          %419 = sbr.rel (%p417) target = $region36
        $region35: #{tpu_custom_call.1} parent=11 // pred_region
          _
        $region36: #{tpu_custom_call.1} parent=11 // pred_fallthru
          _
        // Predicated region
        $region37: #{tpu_custom_call.1} parent=11 // pred_check
          %p420 = pneg %p305
        $region38: #{tpu_custom_call.1} parent=11 // pred_check_branch
          %422 = sbr.rel (%p420) target = $region40
        $region39: #{tpu_custom_call.1} parent=11 // pred_region
          %424 = vsyncadd [#allocation10], 0
          %s425 = sshll.u32 %s10, 4
          %s426 = int_to_ptr.hbm [resolvable:$true] %s425
          %s427 = sshll.u32 [#allocation11], 4
          %s428 = int_to_ptr.vmem [resolvable:$true] %s427
          %433 = dma.hbm_to_vmem [thread:$0]  %s426, 8192, %s428, [#allocation10], 256, 256, 16
        $region40: #{tpu_custom_call.1} parent=11 // pred_fallthru
          _
        // Predicated region
        $region41: #{tpu_custom_call.1} parent=11 // pred_check
          %p434 = pneg %p326
        $region42: #{tpu_custom_call.1} parent=11 // pred_check_branch
          %436 = sbr.rel (%p434) target = $region44
        $region43: #{tpu_custom_call.1} parent=11 // pred_region
          _
        $region44: #{tpu_custom_call.1} parent=11 // pred_fallthru
          _
        // Predicated region
        $region45: #{tpu_custom_call.1} parent=11 // pred_check
          %p437 = pneg %p347
        $region46: #{tpu_custom_call.1} parent=11 // pred_check_branch
          %439 = sbr.rel (%p437) target = $region48
        $region47: #{tpu_custom_call.1} parent=11 // pred_region
          _
        $region48: #{tpu_custom_call.1} parent=11 // pred_fallthru
          _
      $region12: #{tpu_custom_call.1} parent=5 // pred_fallthru
        _
      %p440 = scmp.lt.s32.totalorder %s27, 3
      // Predicated region
      $region49: #{tpu_custom_call.1} parent=5 // pred_check
        %p441 = pneg %p440
      $region50: #{tpu_custom_call.1} parent=5 // pred_check_branch
        %443 = sbr.rel (%p441) target = $region52
      $region51: #{tpu_custom_call.1} parent=5 // pred_region
        // Predicated region
        $region53: #{tpu_custom_call.1} parent=51 // pred_check
          %p444 = pneg %p200
        $region54: #{tpu_custom_call.1} parent=51 // pred_check_branch
          %446 = sbr.rel (%p444) target = $region56
        $region55: #{tpu_custom_call.1} parent=51 // pred_region
          %s447 = sand.u32 %s190, 1
          %s448 = scalar_lea.sflag [#allocation7], %s447
          %s449 = sand.u32 %s190, 1
          %s450 = smul.addr %s449, 512
          %s451 = scalar_lea.vmem [#allocation6], %s450
          %453 = vsyncadd %s448, 0
          %s454 = smul.addr %s34, 64
          %s455 = smul.addr %s454, 8
          %s456 = scalar_lea.hbm %s6, %s455
          %s457 = sshll.u32 %s456, 4
          %s458 = int_to_ptr.hbm [resolvable:$true] %s457
          %s459 = sshll.u32 %s451, 4
          %s460 = int_to_ptr.vmem [resolvable:$true] %s459
          %465 = dma.hbm_to_vmem [thread:$0]  %s458, 8192, %s460, %s448, 256, 256, 16
        $region56: #{tpu_custom_call.1} parent=51 // pred_fallthru
          _
        // Predicated region
        $region57: #{tpu_custom_call.1} parent=51 // pred_check
          %p466 = pneg %p226
        $region58: #{tpu_custom_call.1} parent=51 // pred_check_branch
          %468 = sbr.rel (%p466) target = $region60
        $region59: #{tpu_custom_call.1} parent=51 // pred_region
          %p469 = scmp.lt.s32.totalorder %s34, 2
          %s470 = scalar_select %p469, %s34, 2
          %s471 = smul.addr %s470, 2
          %s472 = scalar_lea.vmem %s7, %s471
        $region60: #{tpu_custom_call.1} parent=51 // pred_fallthru
          _
        // Predicated region
        $region61: #{tpu_custom_call.1} parent=51 // pred_check
          %p473 = pneg %p252
        $region62: #{tpu_custom_call.1} parent=51 // pred_check_branch
          %475 = sbr.rel (%p473) target = $region64
        $region63: #{tpu_custom_call.1} parent=51 // pred_region
          %s476 = sand.u32 %s27, 1
          %s477 = scalar_lea.sflag [#allocation10], %s476
          %s478 = sand.u32 %s242, 1
          %s479 = smul.addr %s478, 512
          %s480 = scalar_lea.vmem [#allocation9], %s479
          %482 = vsyncadd %s477, 0
          %s483 = smul.addr %s34, 64
          %s484 = smul.addr %s483, 8
          %s485 = scalar_lea.hbm %s8, %s484
          %s486 = sshll.u32 %s485, 4
          %s487 = int_to_ptr.hbm [resolvable:$true] %s486
          %s488 = sshll.u32 %s480, 4
          %s489 = int_to_ptr.vmem [resolvable:$true] %s488
          %494 = dma.hbm_to_vmem [thread:$0]  %s487, 8192, %s489, %s477, 256, 256, 16
        $region64: #{tpu_custom_call.1} parent=51 // pred_fallthru
          _
        // Predicated region
        $region65: #{tpu_custom_call.1} parent=51 // pred_check
          %p495 = pneg %p278
        $region66: #{tpu_custom_call.1} parent=51 // pred_check_branch
          %497 = sbr.rel (%p495) target = $region68
        $region67: #{tpu_custom_call.1} parent=51 // pred_region
          %p498 = scmp.lt.s32.totalorder %s34, 2
          %s499 = scalar_select %p498, %s34, 2
          %s500 = smul.addr %s499, 2
          %s501 = scalar_lea.vmem %s9, %s500
        $region68: #{tpu_custom_call.1} parent=51 // pred_fallthru
          _
      $region52: #{tpu_custom_call.1} parent=5 // pred_fallthru
        _
      %p502 = scmp.le.s32.totalorder 1, %s27
      %p503 = scmp.lt.s32.totalorder %s27, 4
      %p504 = pnand %p502, %p503
      %p505 = pneg %p504
      // Predicated region
      $region69: #{tpu_custom_call.1} parent=5 // pred_check
        _
      $region70: #{tpu_custom_call.1} parent=5 // pred_check_branch
        %507 = sbr.rel (%p504) target = $region72
      $region71: #{tpu_custom_call.1} parent=5 // pred_region
        %s508 = ssub.s32 %s27, 1
        %s509 = sand.u32 %s193, 1
        %s510 = scalar_lea.sflag [#allocation7], %s509
        %s511 = sand.u32 %s193, 1
        %s512 = smul.addr %s511, 512
        %s513 = scalar_lea.vmem [#allocation6], %s512
        // Predicated region
        $region73: #{tpu_custom_call.1} parent=71 // pred_check
          %p514 = pneg %p206
        $region74: #{tpu_custom_call.1} parent=71 // pred_check_branch
          %516 = sbr.rel (%p514) target = $region76
        $region75: #{tpu_custom_call.1} parent=71 // pred_region
          %518 = dma.done %s510, 8192
        $region76: #{tpu_custom_call.1} parent=71 // pred_fallthru
          _
        %s519 = sand.u32 %s32, 1
        %s520 = scalar_lea.sflag [#allocation10], %s519
        %s521 = sand.u32 %s245, 1
        %s522 = smul.addr %s521, 512
        %s523 = scalar_lea.vmem [#allocation9], %s522
        // Predicated region
        $region77: #{tpu_custom_call.1} parent=71 // pred_check
          %p524 = pneg %p258
        $region78: #{tpu_custom_call.1} parent=71 // pred_check_branch
          %526 = sbr.rel (%p524) target = $region80
        $region79: #{tpu_custom_call.1} parent=71 // pred_region
          %528 = dma.done %s520, 8192
        $region80: #{tpu_custom_call.1} parent=71 // pred_fallthru
          _
        // Predicated region
        $region81: #{tpu_custom_call.1} parent=71 // pred_check
          %p529 = pneg %p305
        $region82: #{tpu_custom_call.1} parent=71 // pred_check_branch
          %531 = sbr.rel (%p529) target = $region84
        $region83: #{tpu_custom_call.1} parent=71 // pred_region
          %533 = dma.done [#allocation10], 8192
        $region84: #{tpu_custom_call.1} parent=71 // pred_fallthru
          _
        %p534 = pneg %p60
        %p535 = pneg %p57
        %s536 = smul.u32 64, %s37
        %p537 = scmp.lt.s32.totalorder %s536, 63
        %s538 = scalar_select %p537, %s536, 63
        %s539 = smul.addr %s538, 2
        %s540 = smul.addr %s539, 8
        %s541 = scalar_lea.vmem %s1, %s540
        %p542 = pneg %p86
        %p543 = pneg %p83
        %s544 = smul.u32 64, %s37
        %p545 = scmp.lt.s32.totalorder %s544, 63
        %s546 = scalar_select %p545, %s544, 63
        %s547 = smul.addr %s546, 8
        %s548 = scalar_lea.vmem %s2, %s547
        %p549 = pneg %p112
        %p550 = pneg %p109
        %s551 = smul.u32 64, %s37
        %p552 = scmp.lt.s32.totalorder %s551, 63
        %s553 = scalar_select %p552, %s551, 63
        %s554 = smul.addr %s553, 8
        %s555 = scalar_lea.vmem %s3, %s554
        %p556 = pneg %p138
        %p557 = pneg %p135
        %p558 = pneg %p159
        %p559 = pneg %p156
        %p560 = pneg %p180
        %p561 = pneg %p177
        %s562 = sand.u32 %s193, 1
        %s563 = scalar_lea.sflag [#allocation7], %s562
        %s564 = sand.u32 %s193, 1
        %s565 = smul.addr %s564, 512
        %s566 = scalar_lea.vmem [#allocation6], %s565
        %p567 = pneg %p206
        %p568 = pneg %p203
        %p569 = scmp.lt.s32.totalorder %s36, 2
        %s570 = scalar_select %p569, %s36, 2
        %s571 = smul.addr %s570, 2
        %s572 = scalar_lea.vmem %s7, %s571
        %p573 = pneg %p232
        %p574 = pneg %p229
        %s575 = sand.u32 %s32, 1
        %s576 = scalar_lea.sflag [#allocation10], %s575
        %s577 = sand.u32 %s245, 1
        %s578 = smul.addr %s577, 512
        %s579 = scalar_lea.vmem [#allocation9], %s578
        %p580 = pneg %p258
        %p581 = pneg %p255
        %p582 = scmp.lt.s32.totalorder %s36, 2
        %s583 = scalar_select %p582, %s36, 2
        %s584 = smul.addr %s583, 2
        %s585 = scalar_lea.vmem %s9, %s584
        %p586 = pneg %p284
        %p587 = pneg %p281
        %p588 = pneg %p305
        %p589 = pneg %p302
        %p590 = pneg %p326
        %p591 = pneg %p323
        %p592 = pneg %p347
        %p593 = pneg %p344
        %p594 = pneg %p368
        %p595 = pneg %p365
        %s596 = smul.u32 64, %s37
        %p597 = scmp.lt.s32.totalorder %s596, 63
        %s598 = scalar_select %p597, %s596, 63
        %s599 = smul.addr %s598, 2
        %s600 = smul.addr %s599, 8
        %s601 = scalar_lea.vmem %s1, %s600
        %s602 = smul.u32 64, %s37
        %s603 = smul.u32 64, %s37
        %p604 = scmp.lt.s32.totalorder %s603, 63
        %s605 = scalar_select %p604, %s603, 63
        %s606 = smul.addr %s605, 8
        %s607 = scalar_lea.vmem %s2, %s606
        %s608 = smul.u32 64, %s37
        %s609 = smul.u32 64, %s37
        %p610 = scmp.lt.s32.totalorder %s609, 63
        %s611 = scalar_select %p610, %s609, 63
        %s612 = smul.addr %s611, 8
        %s613 = scalar_lea.vmem %s3, %s612
        %s614 = smul.u32 64, %s37
        %p615 = scmp.lt.s32.totalorder %s36, 2
        %s616 = scalar_select %p615, %s36, 2
        %s617 = smul.addr %s616, 2
        %s618 = scalar_lea.vmem %s7, %s617
        %p619 = scmp.lt.s32.totalorder %s36, 2
        %s620 = scalar_select %p619, %s36, 2
        %s621 = smul.addr %s620, 2
        %s622 = scalar_lea.vmem %s9, %s621
        %p623 = scmp.eq.s32.totalorder %s36, 0
        %p624 = scmp.eq.s32.totalorder %s37, 0
        %p625 = pnand %p623, %p624
        %p626 = pneg %p625
        // Predicated region
        $region85: #{tpu_custom_call.1} parent=71 // pred_check
          _
        $region86: #{tpu_custom_call.1} parent=71 // pred_check_branch
          %628 = sbr.rel (%p625) target = $region88
        $region87: #{tpu_custom_call.1} parent=71 // pred_region
          %v629 = vld [vmem:[%s0] sm:$0xff]
          %v630 = vld [vmem:[%s0 + $0x8] sm:$0xff]
          %v631 = vld [vmem:[%s0 + $0x10] sm:$0xff]
          %v632 = vld [vmem:[%s0 + $0x18] sm:$0xff]
          %v633 = vld [vmem:[%s0 + $0x20] sm:$0xff]
          %v634 = vld [vmem:[%s0 + $0x28] sm:$0xff]
          %v635 = vld [vmem:[%s0 + $0x30] sm:$0xff]
          %v636 = vld [vmem:[%s0 + $0x38] sm:$0xff]
          %v637 = vld [vmem:[%s0 + $0x40] sm:$0xff]
          %v638 = vld [vmem:[%s0 + $0x48] sm:$0xff]
          %v639 = vld [vmem:[%s0 + $0x50] sm:$0xff]
          %v640 = vld [vmem:[%s0 + $0x58] sm:$0xff]
          %v641 = vld [vmem:[%s0 + $0x60] sm:$0xff]
          %v642 = vld [vmem:[%s0 + $0x68] sm:$0xff]
          %v643 = vld [vmem:[%s0 + $0x70] sm:$0xff]
          %v644 = vld [vmem:[%s0 + $0x78] sm:$0xff]
          %v645 = vld [vmem:[%s4] sm:$0xff]
          %v646 = vld [vmem:[%s4 + $0x8] sm:$0xff]
          %v647 = vld [vmem:[%s4 + $0x10] sm:$0xff]
          %v648 = vld [vmem:[%s4 + $0x18] sm:$0xff]
          %v649 = vld [vmem:[%s5] sm:$0x3]
          %v651 = vperm.slane %v649, 0
          %v652 = vperm.slane %v649, 1
          %vm655 = vcmask 130048
          %v657 = vsel %vm655, %v629, 0
          %v660 = vsel %vm655, %v630, 0
          %v663 = vsel %vm655, %v631, 0
          %v666 = vsel %vm655, %v632, 0
          %v669 = vsel %vm655, %v633, 0
          %v672 = vsel %vm655, %v634, 0
          %v675 = vsel %vm655, %v635, 0
          %v678 = vsel %vm655, %v636, 0
          %v681 = vsel %vm655, %v637, 0
          %v684 = vsel %vm655, %v638, 0
          %v687 = vsel %vm655, %v639, 0
          %v690 = vsel %vm655, %v640, 0
          %v693 = vsel %vm655, %v641, 0
          %v696 = vsel %vm655, %v642, 0
          %v699 = vsel %vm655, %v643, 0
          %v702 = vsel %vm655, %v644, 0
          %704 = vmatpush.msra.mxu0 0.0
          %705 = vmatpush.msra.mxu0 0.0
          %706 = vmatpush.msra.mxu0 0.0
          %707 = vmatpush.msra.mxu0 0.0
          %708 = vmatpush.msra.mxu0 0.0
          %709 = vmatpush.msra.mxu0 0.0
          %710 = vmatpush.msra.mxu0 0.0
          %711 = vmatpush.msra.mxu0 0.0
          %712 = vmatpush.msra.mxu0 0.0
          %713 = vmatpush.msra.mxu0 0.0
          %714 = vmatpush.msra.mxu0 0.0
          %715 = vmatpush.msra.mxu0 0.0
          %716 = vmatpush.msra.mxu0 0.0
          %717 = vmatpush.msra.mxu0 0.0
          %718 = vmatpush.msra.mxu0 %v647
          %719 = vmatpush.msra.mxu0 %v645
          %720 = vmatmul.f32.gmra.mxu0 %v657
          %v721 = vpop.f32.mrf.mxu0
          %v722 = vadd.f32 %v651, %v721
          %723 = vmatmul.f32.gmra.mxu0 %v660
          %v724 = vpop.f32.mrf.mxu0
          %v725 = vadd.f32 %v651, %v724
          %726 = vmatmul.f32.gmra.mxu0 %v663
          %v727 = vpop.f32.mrf.mxu0
          %v728 = vadd.f32 %v651, %v727
          %729 = vmatmul.f32.gmra.mxu0 %v666
          %v730 = vpop.f32.mrf.mxu0
          %v731 = vadd.f32 %v651, %v730
          %732 = vmatmul.f32.gmra.mxu0 %v669
          %v733 = vpop.f32.mrf.mxu0
          %v734 = vadd.f32 %v651, %v733
          %735 = vmatmul.f32.gmra.mxu0 %v672
          %v736 = vpop.f32.mrf.mxu0
          %v737 = vadd.f32 %v651, %v736
          %738 = vmatmul.f32.gmra.mxu0 %v675
          %v739 = vpop.f32.mrf.mxu0
          %v740 = vadd.f32 %v651, %v739
          %741 = vmatmul.f32.gmra.mxu0 %v678
          %v742 = vpop.f32.mrf.mxu0
          %v743 = vadd.f32 %v651, %v742
          %744 = vmatmul.f32.gmra.mxu0 %v681
          %v745 = vpop.f32.mrf.mxu0
          %v746 = vadd.f32 %v651, %v745
          %747 = vmatmul.f32.gmra.mxu0 %v684
          %v748 = vpop.f32.mrf.mxu0
          %v749 = vadd.f32 %v651, %v748
          %750 = vmatmul.f32.gmra.mxu0 %v687
          %v751 = vpop.f32.mrf.mxu0
          %v752 = vadd.f32 %v651, %v751
          %753 = vmatmul.f32.gmra.mxu0 %v690
          %v754 = vpop.f32.mrf.mxu0
          %v755 = vadd.f32 %v651, %v754
          %756 = vmatmul.f32.gmra.mxu0 %v693
          %v757 = vpop.f32.mrf.mxu0
          %v758 = vadd.f32 %v651, %v757
          %759 = vmatmul.f32.gmra.mxu0 %v696
          %v760 = vpop.f32.mrf.mxu0
          %v761 = vadd.f32 %v651, %v760
          %762 = vmatmul.f32.gmra.mxu0 %v699
          %v763 = vpop.f32.mrf.mxu0
          %v764 = vadd.f32 %v651, %v763
          %765 = vmatmul.f32.gmra.mxu0 %v702
          %v766 = vpop.f32.mrf.mxu0
          %v767 = vadd.f32 %v651, %v766
          %768 = vdwg.mxu0
          %769 = vmatpush.msra.mxu0 0.0
          %770 = vmatpush.msra.mxu0 0.0
          %771 = vmatpush.msra.mxu0 0.0
          %772 = vmatpush.msra.mxu0 0.0
          %773 = vmatpush.msra.mxu0 0.0
          %774 = vmatpush.msra.mxu0 0.0
          %775 = vmatpush.msra.mxu0 0.0
          %776 = vmatpush.msra.mxu0 0.0
          %777 = vmatpush.msra.mxu0 0.0
          %778 = vmatpush.msra.mxu0 0.0
          %779 = vmatpush.msra.mxu0 0.0
          %780 = vmatpush.msra.mxu0 0.0
          %781 = vmatpush.msra.mxu0 0.0
          %782 = vmatpush.msra.mxu0 0.0
          %783 = vmatpush.msra.mxu0 %v648
          %784 = vmatpush.msra.mxu0 %v646
          %785 = vmatmul.f32.gmra.mxu0 %v657
          %v786 = vpop.f32.mrf.mxu0
          %v787 = vadd.f32 %v652, %v786
          %788 = vmatmul.f32.gmra.mxu0 %v660
          %v789 = vpop.f32.mrf.mxu0
          %v790 = vadd.f32 %v652, %v789
          %791 = vmatmul.f32.gmra.mxu0 %v663
          %v792 = vpop.f32.mrf.mxu0
          %v793 = vadd.f32 %v652, %v792
          %794 = vmatmul.f32.gmra.mxu0 %v666
          %v795 = vpop.f32.mrf.mxu0
          %v796 = vadd.f32 %v652, %v795
          %797 = vmatmul.f32.gmra.mxu0 %v669
          %v798 = vpop.f32.mrf.mxu0
          %v799 = vadd.f32 %v652, %v798
          %800 = vmatmul.f32.gmra.mxu0 %v672
          %v801 = vpop.f32.mrf.mxu0
          %v802 = vadd.f32 %v652, %v801
          %803 = vmatmul.f32.gmra.mxu0 %v675
          %v804 = vpop.f32.mrf.mxu0
          %v805 = vadd.f32 %v652, %v804
          %806 = vmatmul.f32.gmra.mxu0 %v678
          %v807 = vpop.f32.mrf.mxu0
          %v808 = vadd.f32 %v652, %v807
          %809 = vmatmul.f32.gmra.mxu0 %v681
          %v810 = vpop.f32.mrf.mxu0
          %v811 = vadd.f32 %v652, %v810
          %812 = vmatmul.f32.gmra.mxu0 %v684
          %v813 = vpop.f32.mrf.mxu0
          %v814 = vadd.f32 %v652, %v813
          %815 = vmatmul.f32.gmra.mxu0 %v687
          %v816 = vpop.f32.mrf.mxu0
          %v817 = vadd.f32 %v652, %v816
          %818 = vmatmul.f32.gmra.mxu0 %v690
          %v819 = vpop.f32.mrf.mxu0
          %v820 = vadd.f32 %v652, %v819
          %821 = vmatmul.f32.gmra.mxu0 %v693
          %v822 = vpop.f32.mrf.mxu0
          %v823 = vadd.f32 %v652, %v822
          %824 = vmatmul.f32.gmra.mxu0 %v696
          %v825 = vpop.f32.mrf.mxu0
          %v826 = vadd.f32 %v652, %v825
          %827 = vmatmul.f32.gmra.mxu0 %v699
          %v828 = vpop.f32.mrf.mxu0
          %v829 = vadd.f32 %v652, %v828
          %830 = vmatmul.f32.gmra.mxu0 %v702
          %v831 = vpop.f32.mrf.mxu0
          %v832 = vadd.f32 %v652, %v831
          %833 = vdwg.mxu0
          %v834 = vmax.f32 %v722, 0.0
          %v835 = vmax.f32 %v787, 0.0
          %v836 = vmax.f32 %v725, 0.0
          %v837 = vmax.f32 %v790, 0.0
          %v838 = vmax.f32 %v728, 0.0
          %v839 = vmax.f32 %v793, 0.0
          %v840 = vmax.f32 %v731, 0.0
          %v841 = vmax.f32 %v796, 0.0
          %v842 = vmax.f32 %v734, 0.0
          %v843 = vmax.f32 %v799, 0.0
          %v844 = vmax.f32 %v737, 0.0
          %v845 = vmax.f32 %v802, 0.0
          %v846 = vmax.f32 %v740, 0.0
          %v847 = vmax.f32 %v805, 0.0
          %v848 = vmax.f32 %v743, 0.0
          %v849 = vmax.f32 %v808, 0.0
          %v850 = vmax.f32 %v746, 0.0
          %v851 = vmax.f32 %v811, 0.0
          %v852 = vmax.f32 %v749, 0.0
          %v853 = vmax.f32 %v814, 0.0
          %v854 = vmax.f32 %v752, 0.0
          %v855 = vmax.f32 %v817, 0.0
          %v856 = vmax.f32 %v755, 0.0
          %v857 = vmax.f32 %v820, 0.0
          %v858 = vmax.f32 %v758, 0.0
          %v859 = vmax.f32 %v823, 0.0
          %v860 = vmax.f32 %v761, 0.0
          %v861 = vmax.f32 %v826, 0.0
          %v862 = vmax.f32 %v764, 0.0
          %v863 = vmax.f32 %v829, 0.0
          %v864 = vmax.f32 %v767, 0.0
          %v865 = vmax.f32 %v832, 0.0
          %866 = vst [vmem:[#allocation2] sm:$0xff] %v834
          %867 = vst [vmem:[#allocation2 + $0x8] sm:$0xff] %v835
          %868 = vst [vmem:[#allocation2 + $0x10] sm:$0xff] %v836
          %869 = vst [vmem:[#allocation2 + $0x18] sm:$0xff] %v837
          %870 = vst [vmem:[#allocation2 + $0x20] sm:$0xff] %v838
          %871 = vst [vmem:[#allocation2 + $0x28] sm:$0xff] %v839
          %872 = vst [vmem:[#allocation2 + $0x30] sm:$0xff] %v840
          %873 = vst [vmem:[#allocation2 + $0x38] sm:$0xff] %v841
          %874 = vst [vmem:[#allocation2 + $0x40] sm:$0xff] %v842
          %875 = vst [vmem:[#allocation2 + $0x48] sm:$0xff] %v843
          %876 = vst [vmem:[#allocation2 + $0x50] sm:$0xff] %v844
          %877 = vst [vmem:[#allocation2 + $0x58] sm:$0xff] %v845
          %878 = vst [vmem:[#allocation2 + $0x60] sm:$0xff] %v846
          %879 = vst [vmem:[#allocation2 + $0x68] sm:$0xff] %v847
          %880 = vst [vmem:[#allocation2 + $0x70] sm:$0xff] %v848
          %881 = vst [vmem:[#allocation2 + $0x78] sm:$0xff] %v849
          %882 = vst [vmem:[#allocation2 + $0x80] sm:$0xff] %v850
          %883 = vst [vmem:[#allocation2 + $0x88] sm:$0xff] %v851
          %884 = vst [vmem:[#allocation2 + $0x90] sm:$0xff] %v852
          %885 = vst [vmem:[#allocation2 + $0x98] sm:$0xff] %v853
          %886 = vst [vmem:[#allocation2 + $0xa0] sm:$0xff] %v854
          %887 = vst [vmem:[#allocation2 + $0xa8] sm:$0xff] %v855
          %888 = vst [vmem:[#allocation2 + $0xb0] sm:$0xff] %v856
          %889 = vst [vmem:[#allocation2 + $0xb8] sm:$0xff] %v857
          %890 = vst [vmem:[#allocation2 + $0xc0] sm:$0xff] %v858
          %891 = vst [vmem:[#allocation2 + $0xc8] sm:$0xff] %v859
          %892 = vst [vmem:[#allocation2 + $0xd0] sm:$0xff] %v860
          %893 = vst [vmem:[#allocation2 + $0xd8] sm:$0xff] %v861
          %894 = vst [vmem:[#allocation2 + $0xe0] sm:$0xff] %v862
          %895 = vst [vmem:[#allocation2 + $0xe8] sm:$0xff] %v863
          %896 = vst [vmem:[#allocation2 + $0xf0] sm:$0xff] %v864
          %897 = vst [vmem:[#allocation2 + $0xf8] sm:$0xff] %v865
        $region88: #{tpu_custom_call.1} parent=71 // pred_fallthru
          _
        // Predicated region
        $region89: #{tpu_custom_call.1} parent=71 // pred_check
          %p898 = pneg %p624
        $region90: #{tpu_custom_call.1} parent=71 // pred_check_branch
          %900 = sbr.rel (%p898) target = $region92
        $region91: #{tpu_custom_call.1} parent=71 // pred_region
          %901 = vst [vmem:[#allocation4] sm:$0xff] 0.0
          %902 = vst [vmem:[#allocation4 + $0x8] sm:$0xff] 0.0
          %903 = vst [vmem:[#allocation4 + $0x10] sm:$0xff] 0.0
          %904 = vst [vmem:[#allocation4 + $0x18] sm:$0xff] 0.0
          %905 = vst [vmem:[#allocation4 + $0x20] sm:$0xff] 0.0
          %906 = vst [vmem:[#allocation4 + $0x28] sm:$0xff] 0.0
          %907 = vst [vmem:[#allocation4 + $0x30] sm:$0xff] 0.0
          %908 = vst [vmem:[#allocation4 + $0x38] sm:$0xff] 0.0
          %909 = vst [vmem:[#allocation4 + $0x40] sm:$0xff] 0.0
          %910 = vst [vmem:[#allocation4 + $0x48] sm:$0xff] 0.0
          %911 = vst [vmem:[#allocation4 + $0x50] sm:$0xff] 0.0
          %912 = vst [vmem:[#allocation4 + $0x58] sm:$0xff] 0.0
          %913 = vst [vmem:[#allocation4 + $0x60] sm:$0xff] 0.0
          %914 = vst [vmem:[#allocation4 + $0x68] sm:$0xff] 0.0
          %915 = vst [vmem:[#allocation4 + $0x70] sm:$0xff] 0.0
          %916 = vst [vmem:[#allocation4 + $0x78] sm:$0xff] 0.0
          %917 = vst [vmem:[#allocation4 + $0x80] sm:$0xff] 0.0
          %918 = vst [vmem:[#allocation4 + $0x88] sm:$0xff] 0.0
          %919 = vst [vmem:[#allocation4 + $0x90] sm:$0xff] 0.0
          %920 = vst [vmem:[#allocation4 + $0x98] sm:$0xff] 0.0
          %921 = vst [vmem:[#allocation4 + $0xa0] sm:$0xff] 0.0
          %922 = vst [vmem:[#allocation4 + $0xa8] sm:$0xff] 0.0
          %923 = vst [vmem:[#allocation4 + $0xb0] sm:$0xff] 0.0
          %924 = vst [vmem:[#allocation4 + $0xb8] sm:$0xff] 0.0
          %925 = vst [vmem:[#allocation4 + $0xc0] sm:$0xff] 0.0
          %926 = vst [vmem:[#allocation4 + $0xc8] sm:$0xff] 0.0
          %927 = vst [vmem:[#allocation4 + $0xd0] sm:$0xff] 0.0
          %928 = vst [vmem:[#allocation4 + $0xd8] sm:$0xff] 0.0
          %929 = vst [vmem:[#allocation4 + $0xe0] sm:$0xff] 0.0
          %930 = vst [vmem:[#allocation4 + $0xe8] sm:$0xff] 0.0
          %931 = vst [vmem:[#allocation4 + $0xf0] sm:$0xff] 0.0
          %932 = vst [vmem:[#allocation4 + $0xf8] sm:$0xff] 0.0
          %v933 = vld [vmem:[#allocation2] sm:$0xff]
          %v934 = vld [vmem:[#allocation2 + $0x8] sm:$0xff]
          %v935 = vld [vmem:[#allocation2 + $0x10] sm:$0xff]
          %v936 = vld [vmem:[#allocation2 + $0x18] sm:$0xff]
          %v937 = vld [vmem:[#allocation2 + $0x20] sm:$0xff]
          %v938 = vld [vmem:[#allocation2 + $0x28] sm:$0xff]
          %v939 = vld [vmem:[#allocation2 + $0x30] sm:$0xff]
          %v940 = vld [vmem:[#allocation2 + $0x38] sm:$0xff]
          %v941 = vld [vmem:[#allocation2 + $0x40] sm:$0xff]
          %v942 = vld [vmem:[#allocation2 + $0x48] sm:$0xff]
          %v943 = vld [vmem:[#allocation2 + $0x50] sm:$0xff]
          %v944 = vld [vmem:[#allocation2 + $0x58] sm:$0xff]
          %v945 = vld [vmem:[#allocation2 + $0x60] sm:$0xff]
          %v946 = vld [vmem:[#allocation2 + $0x68] sm:$0xff]
          %v947 = vld [vmem:[#allocation2 + $0x70] sm:$0xff]
          %v948 = vld [vmem:[#allocation2 + $0x78] sm:$0xff]
          %v949 = vld [vmem:[#allocation2 + $0x80] sm:$0xff]
          %v950 = vld [vmem:[#allocation2 + $0x88] sm:$0xff]
          %v951 = vld [vmem:[#allocation2 + $0x90] sm:$0xff]
          %v952 = vld [vmem:[#allocation2 + $0x98] sm:$0xff]
          %v953 = vld [vmem:[#allocation2 + $0xa0] sm:$0xff]
          %v954 = vld [vmem:[#allocation2 + $0xa8] sm:$0xff]
          %v955 = vld [vmem:[#allocation2 + $0xb0] sm:$0xff]
          %v956 = vld [vmem:[#allocation2 + $0xb8] sm:$0xff]
          %v957 = vld [vmem:[#allocation2 + $0xc0] sm:$0xff]
          %v958 = vld [vmem:[#allocation2 + $0xc8] sm:$0xff]
          %v959 = vld [vmem:[#allocation2 + $0xd0] sm:$0xff]
          %v960 = vld [vmem:[#allocation2 + $0xd8] sm:$0xff]
          %v961 = vld [vmem:[#allocation2 + $0xe0] sm:$0xff]
          %v962 = vld [vmem:[#allocation2 + $0xe8] sm:$0xff]
          %v963 = vld [vmem:[#allocation2 + $0xf0] sm:$0xff]
          %v964 = vld [vmem:[#allocation2 + $0xf8] sm:$0xff]
          %v965 = vpack.c.bf16 %v934, %v933
          %v966 = vpack.c.bf16 %v936, %v935
          %v967 = vpack.c.bf16 %v938, %v937
          %v968 = vpack.c.bf16 %v940, %v939
          %v969 = vpack.c.bf16 %v942, %v941
          %v970 = vpack.c.bf16 %v944, %v943
          %v971 = vpack.c.bf16 %v946, %v945
          %v972 = vpack.c.bf16 %v948, %v947
          %v973 = vpack.c.bf16 %v950, %v949
          %v974 = vpack.c.bf16 %v952, %v951
          %v975 = vpack.c.bf16 %v954, %v953
          %v976 = vpack.c.bf16 %v956, %v955
          %v977 = vpack.c.bf16 %v958, %v957
          %v978 = vpack.c.bf16 %v960, %v959
          %v979 = vpack.c.bf16 %v962, %v961
          %v980 = vpack.c.bf16 %v964, %v963
          %981 = vst [vmem:[#allocation3] sm:$0xff] %v965
          %982 = vst [vmem:[#allocation3 + $0x8] sm:$0xff] %v966
          %983 = vst [vmem:[#allocation3 + $0x10] sm:$0xff] %v967
          %984 = vst [vmem:[#allocation3 + $0x18] sm:$0xff] %v968
          %985 = vst [vmem:[#allocation3 + $0x20] sm:$0xff] %v969
          %986 = vst [vmem:[#allocation3 + $0x28] sm:$0xff] %v970
          %987 = vst [vmem:[#allocation3 + $0x30] sm:$0xff] %v971
          %988 = vst [vmem:[#allocation3 + $0x38] sm:$0xff] %v972
          %989 = vst [vmem:[#allocation3 + $0x40] sm:$0xff] %v973
          %990 = vst [vmem:[#allocation3 + $0x48] sm:$0xff] %v974
          %991 = vst [vmem:[#allocation3 + $0x50] sm:$0xff] %v975
          %992 = vst [vmem:[#allocation3 + $0x58] sm:$0xff] %v976
          %993 = vst [vmem:[#allocation3 + $0x60] sm:$0xff] %v977
          %994 = vst [vmem:[#allocation3 + $0x68] sm:$0xff] %v978
          %995 = vst [vmem:[#allocation3 + $0x70] sm:$0xff] %v979
          %996 = vst [vmem:[#allocation3 + $0x78] sm:$0xff] %v980
        $region92: #{tpu_custom_call.1} parent=71 // pred_fallthru
          _
        %v997 = vlaneseq
        %v998 = vand.u32 %v997, 127
        %v999 = vld [vmem:[%s607] sm:$0xff]
        %v1000 = vld [vmem:[%s607 + $0x8] sm:$0xff]
        %v1001 = vld [vmem:[%s607 + $0x10] sm:$0xff]
        %v1002 = vld [vmem:[%s607 + $0x18] sm:$0xff]
        %v1003 = vld [vmem:[%s607 + $0x20] sm:$0xff]
        %v1004 = vld [vmem:[%s607 + $0x28] sm:$0xff]
        %v1005 = vld [vmem:[%s607 + $0x30] sm:$0xff]
        %v1006 = vld [vmem:[%s607 + $0x38] sm:$0xff]
        %v1007 = vld [vmem:[%s607 + $0x40] sm:$0xff]
        %v1008 = vld [vmem:[%s607 + $0x48] sm:$0xff]
        %v1009 = vld [vmem:[%s607 + $0x50] sm:$0xff]
        %v1010 = vld [vmem:[%s607 + $0x58] sm:$0xff]
        %v1011 = vld [vmem:[%s607 + $0x60] sm:$0xff]
        %v1012 = vld [vmem:[%s607 + $0x68] sm:$0xff]
        %v1013 = vld [vmem:[%s607 + $0x70] sm:$0xff]
        %v1014 = vld [vmem:[%s607 + $0x78] sm:$0xff]
        %v1015 = vld [vmem:[%s607 + $0x80] sm:$0xff]
        %v1016 = vld [vmem:[%s607 + $0x88] sm:$0xff]
        %v1017 = vld [vmem:[%s607 + $0x90] sm:$0xff]
        %v1018 = vld [vmem:[%s607 + $0x98] sm:$0xff]
        %v1019 = vld [vmem:[%s607 + $0xa0] sm:$0xff]
        %v1020 = vld [vmem:[%s607 + $0xa8] sm:$0xff]
        %v1021 = vld [vmem:[%s607 + $0xb0] sm:$0xff]
        %v1022 = vld [vmem:[%s607 + $0xb8] sm:$0xff]
        %v1023 = vld [vmem:[%s607 + $0xc0] sm:$0xff]
        %v1024 = vld [vmem:[%s607 + $0xc8] sm:$0xff]
        %v1025 = vld [vmem:[%s607 + $0xd0] sm:$0xff]
        %v1026 = vld [vmem:[%s607 + $0xd8] sm:$0xff]
        %v1027 = vld [vmem:[%s607 + $0xe0] sm:$0xff]
        %v1028 = vld [vmem:[%s607 + $0xe8] sm:$0xff]
        %v1029 = vld [vmem:[%s607 + $0xf0] sm:$0xff]
        %v1030 = vld [vmem:[%s607 + $0xf8] sm:$0xff]
        %v1031 = vld [vmem:[%s607 + $0x100] sm:$0xff]
        %v1032 = vld [vmem:[%s607 + $0x108] sm:$0xff]
        %v1033 = vld [vmem:[%s607 + $0x110] sm:$0xff]
        %v1034 = vld [vmem:[%s607 + $0x118] sm:$0xff]
        %v1035 = vld [vmem:[%s607 + $0x120] sm:$0xff]
        %v1036 = vld [vmem:[%s607 + $0x128] sm:$0xff]
        %v1037 = vld [vmem:[%s607 + $0x130] sm:$0xff]
        %v1038 = vld [vmem:[%s607 + $0x138] sm:$0xff]
        %v1039 = vld [vmem:[%s607 + $0x140] sm:$0xff]
        %v1040 = vld [vmem:[%s607 + $0x148] sm:$0xff]
        %v1041 = vld [vmem:[%s607 + $0x150] sm:$0xff]
        %v1042 = vld [vmem:[%s607 + $0x158] sm:$0xff]
        %v1043 = vld [vmem:[%s607 + $0x160] sm:$0xff]
        %v1044 = vld [vmem:[%s607 + $0x168] sm:$0xff]
        %v1045 = vld [vmem:[%s607 + $0x170] sm:$0xff]
        %v1046 = vld [vmem:[%s607 + $0x178] sm:$0xff]
        %v1047 = vld [vmem:[%s607 + $0x180] sm:$0xff]
        %v1048 = vld [vmem:[%s607 + $0x188] sm:$0xff]
        %v1049 = vld [vmem:[%s607 + $0x190] sm:$0xff]
        %v1050 = vld [vmem:[%s607 + $0x198] sm:$0xff]
        %v1051 = vld [vmem:[%s607 + $0x1a0] sm:$0xff]
        %v1052 = vld [vmem:[%s607 + $0x1a8] sm:$0xff]
        %v1053 = vld [vmem:[%s607 + $0x1b0] sm:$0xff]
        %v1054 = vld [vmem:[%s607 + $0x1b8] sm:$0xff]
        %v1055 = vld [vmem:[%s607 + $0x1c0] sm:$0xff]
        %v1056 = vld [vmem:[%s607 + $0x1c8] sm:$0xff]
        %v1057 = vld [vmem:[%s607 + $0x1d0] sm:$0xff]
        %v1058 = vld [vmem:[%s607 + $0x1d8] sm:$0xff]
        %v1059 = vld [vmem:[%s607 + $0x1e0] sm:$0xff]
        %v1060 = vld [vmem:[%s607 + $0x1e8] sm:$0xff]
        %v1061 = vld [vmem:[%s607 + $0x1f0] sm:$0xff]
        %v1062 = vld [vmem:[%s607 + $0x1f8] sm:$0xff]
        %1063 = vset.pattern.permute.xlu0 0
        %1064 = vperm.xlu0 %1063, %v999
        %v1065 = vpop.permute.xlu0 %1064
        %1066 = vset.pattern.permute.xlu0 0
        %1067 = vperm.xlu0 %1066, %v1000
        %v1068 = vpop.permute.xlu0 %1067
        %1069 = vset.pattern.permute.xlu0 0
        %1070 = vperm.xlu0 %1069, %v1001
        %v1071 = vpop.permute.xlu0 %1070
        %1072 = vset.pattern.permute.xlu0 0
        %1073 = vperm.xlu0 %1072, %v1002
        %v1074 = vpop.permute.xlu0 %1073
        %1075 = vset.pattern.permute.xlu0 0
        %1076 = vperm.xlu0 %1075, %v1003
        %v1077 = vpop.permute.xlu0 %1076
        %1078 = vset.pattern.permute.xlu0 0
        %1079 = vperm.xlu0 %1078, %v1004
        %v1080 = vpop.permute.xlu0 %1079
        %1081 = vset.pattern.permute.xlu0 0
        %1082 = vperm.xlu0 %1081, %v1005
        %v1083 = vpop.permute.xlu0 %1082
        %1084 = vset.pattern.permute.xlu0 0
        %1085 = vperm.xlu0 %1084, %v1006
        %v1086 = vpop.permute.xlu0 %1085
        %1087 = vset.pattern.permute.xlu0 0
        %1088 = vperm.xlu0 %1087, %v1007
        %v1089 = vpop.permute.xlu0 %1088
        %1090 = vset.pattern.permute.xlu0 0
        %1091 = vperm.xlu0 %1090, %v1008
        %v1092 = vpop.permute.xlu0 %1091
        %1093 = vset.pattern.permute.xlu0 0
        %1094 = vperm.xlu0 %1093, %v1009
        %v1095 = vpop.permute.xlu0 %1094
        %1096 = vset.pattern.permute.xlu0 0
        %1097 = vperm.xlu0 %1096, %v1010
        %v1098 = vpop.permute.xlu0 %1097
        %1099 = vset.pattern.permute.xlu0 0
        %1100 = vperm.xlu0 %1099, %v1011
        %v1101 = vpop.permute.xlu0 %1100
        %1102 = vset.pattern.permute.xlu0 0
        %1103 = vperm.xlu0 %1102, %v1012
        %v1104 = vpop.permute.xlu0 %1103
        %1105 = vset.pattern.permute.xlu0 0
        %1106 = vperm.xlu0 %1105, %v1013
        %v1107 = vpop.permute.xlu0 %1106
        %1108 = vset.pattern.permute.xlu0 0
        %1109 = vperm.xlu0 %1108, %v1014
        %v1110 = vpop.permute.xlu0 %1109
        %1111 = vset.pattern.permute.xlu0 0
        %1112 = vperm.xlu0 %1111, %v1015
        %v1113 = vpop.permute.xlu0 %1112
        %1114 = vset.pattern.permute.xlu0 0
        %1115 = vperm.xlu0 %1114, %v1016
        %v1116 = vpop.permute.xlu0 %1115
        %1117 = vset.pattern.permute.xlu0 0
        %1118 = vperm.xlu0 %1117, %v1017
        %v1119 = vpop.permute.xlu0 %1118
        %1120 = vset.pattern.permute.xlu0 0
        %1121 = vperm.xlu0 %1120, %v1018
        %v1122 = vpop.permute.xlu0 %1121
        %1123 = vset.pattern.permute.xlu0 0
        %1124 = vperm.xlu0 %1123, %v1019
        %v1125 = vpop.permute.xlu0 %1124
        %1126 = vset.pattern.permute.xlu0 0
        %1127 = vperm.xlu0 %1126, %v1020
        %v1128 = vpop.permute.xlu0 %1127
        %1129 = vset.pattern.permute.xlu0 0
        %1130 = vperm.xlu0 %1129, %v1021
        %v1131 = vpop.permute.xlu0 %1130
        %1132 = vset.pattern.permute.xlu0 0
        %1133 = vperm.xlu0 %1132, %v1022
        %v1134 = vpop.permute.xlu0 %1133
        %1135 = vset.pattern.permute.xlu0 0
        %1136 = vperm.xlu0 %1135, %v1023
        %v1137 = vpop.permute.xlu0 %1136
        %1138 = vset.pattern.permute.xlu0 0
        %1139 = vperm.xlu0 %1138, %v1024
        %v1140 = vpop.permute.xlu0 %1139
        %1141 = vset.pattern.permute.xlu0 0
        %1142 = vperm.xlu0 %1141, %v1025
        %v1143 = vpop.permute.xlu0 %1142
        %1144 = vset.pattern.permute.xlu0 0
        %1145 = vperm.xlu0 %1144, %v1026
        %v1146 = vpop.permute.xlu0 %1145
        %1147 = vset.pattern.permute.xlu0 0
        %1148 = vperm.xlu0 %1147, %v1027
        %v1149 = vpop.permute.xlu0 %1148
        %1150 = vset.pattern.permute.xlu0 0
        %1151 = vperm.xlu0 %1150, %v1028
        %v1152 = vpop.permute.xlu0 %1151
        %1153 = vset.pattern.permute.xlu0 0
        %1154 = vperm.xlu0 %1153, %v1029
        %v1155 = vpop.permute.xlu0 %1154
        %1156 = vset.pattern.permute.xlu0 0
        %1157 = vperm.xlu0 %1156, %v1030
        %v1158 = vpop.permute.xlu0 %1157
        %1159 = vset.pattern.permute.xlu0 0
        %1160 = vperm.xlu0 %1159, %v1031
        %v1161 = vpop.permute.xlu0 %1160
        %1162 = vset.pattern.permute.xlu0 0
        %1163 = vperm.xlu0 %1162, %v1032
        %v1164 = vpop.permute.xlu0 %1163
        %1165 = vset.pattern.permute.xlu0 0
        %1166 = vperm.xlu0 %1165, %v1033
        %v1167 = vpop.permute.xlu0 %1166
        %1168 = vset.pattern.permute.xlu0 0
        %1169 = vperm.xlu0 %1168, %v1034
        %v1170 = vpop.permute.xlu0 %1169
        %1171 = vset.pattern.permute.xlu0 0
        %1172 = vperm.xlu0 %1171, %v1035
        %v1173 = vpop.permute.xlu0 %1172
        %1174 = vset.pattern.permute.xlu0 0
        %1175 = vperm.xlu0 %1174, %v1036
        %v1176 = vpop.permute.xlu0 %1175
        %1177 = vset.pattern.permute.xlu0 0
        %1178 = vperm.xlu0 %1177, %v1037
        %v1179 = vpop.permute.xlu0 %1178
        %1180 = vset.pattern.permute.xlu0 0
        %1181 = vperm.xlu0 %1180, %v1038
        %v1182 = vpop.permute.xlu0 %1181
        %1183 = vset.pattern.permute.xlu0 0
        %1184 = vperm.xlu0 %1183, %v1039
        %v1185 = vpop.permute.xlu0 %1184
        %1186 = vset.pattern.permute.xlu0 0
        %1187 = vperm.xlu0 %1186, %v1040
        %v1188 = vpop.permute.xlu0 %1187
        %1189 = vset.pattern.permute.xlu0 0
        %1190 = vperm.xlu0 %1189, %v1041
        %v1191 = vpop.permute.xlu0 %1190
        %1192 = vset.pattern.permute.xlu0 0
        %1193 = vperm.xlu0 %1192, %v1042
        %v1194 = vpop.permute.xlu0 %1193
        %1195 = vset.pattern.permute.xlu0 0
        %1196 = vperm.xlu0 %1195, %v1043
        %v1197 = vpop.permute.xlu0 %1196
        %1198 = vset.pattern.permute.xlu0 0
        %1199 = vperm.xlu0 %1198, %v1044
        %v1200 = vpop.permute.xlu0 %1199
        %1201 = vset.pattern.permute.xlu0 0
        %1202 = vperm.xlu0 %1201, %v1045
        %v1203 = vpop.permute.xlu0 %1202
        %1204 = vset.pattern.permute.xlu0 0
        %1205 = vperm.xlu0 %1204, %v1046
        %v1206 = vpop.permute.xlu0 %1205
        %1207 = vset.pattern.permute.xlu0 0
        %1208 = vperm.xlu0 %1207, %v1047
        %v1209 = vpop.permute.xlu0 %1208
        %1210 = vset.pattern.permute.xlu0 0
        %1211 = vperm.xlu0 %1210, %v1048
        %v1212 = vpop.permute.xlu0 %1211
        %1213 = vset.pattern.permute.xlu0 0
        %1214 = vperm.xlu0 %1213, %v1049
        %v1215 = vpop.permute.xlu0 %1214
        %1216 = vset.pattern.permute.xlu0 0
        %1217 = vperm.xlu0 %1216, %v1050
        %v1218 = vpop.permute.xlu0 %1217
        %1219 = vset.pattern.permute.xlu0 0
        %1220 = vperm.xlu0 %1219, %v1051
        %v1221 = vpop.permute.xlu0 %1220
        %1222 = vset.pattern.permute.xlu0 0
        %1223 = vperm.xlu0 %1222, %v1052
        %v1224 = vpop.permute.xlu0 %1223
        %1225 = vset.pattern.permute.xlu0 0
        %1226 = vperm.xlu0 %1225, %v1053
        %v1227 = vpop.permute.xlu0 %1226
        %1228 = vset.pattern.permute.xlu0 0
        %1229 = vperm.xlu0 %1228, %v1054
        %v1230 = vpop.permute.xlu0 %1229
        %1231 = vset.pattern.permute.xlu0 0
        %1232 = vperm.xlu0 %1231, %v1055
        %v1233 = vpop.permute.xlu0 %1232
        %1234 = vset.pattern.permute.xlu0 0
        %1235 = vperm.xlu0 %1234, %v1056
        %v1236 = vpop.permute.xlu0 %1235
        %1237 = vset.pattern.permute.xlu0 0
        %1238 = vperm.xlu0 %1237, %v1057
        %v1239 = vpop.permute.xlu0 %1238
        %1240 = vset.pattern.permute.xlu0 0
        %1241 = vperm.xlu0 %1240, %v1058
        %v1242 = vpop.permute.xlu0 %1241
        %1243 = vset.pattern.permute.xlu0 0
        %1244 = vperm.xlu0 %1243, %v1059
        %v1245 = vpop.permute.xlu0 %1244
        %1246 = vset.pattern.permute.xlu0 0
        %1247 = vperm.xlu0 %1246, %v1060
        %v1248 = vpop.permute.xlu0 %1247
        %1249 = vset.pattern.permute.xlu0 0
        %1250 = vperm.xlu0 %1249, %v1061
        %v1251 = vpop.permute.xlu0 %1250
        %1252 = vset.pattern.permute.xlu0 0
        %1253 = vperm.xlu0 %1252, %v1062
        %v1254 = vpop.permute.xlu0 %1253
        %vm1255 = vcmp.eq.s32.totalorder %v1065, %v998
        %vm1256 = vcmp.eq.s32.totalorder %v1068, %v998
        %vm1257 = vcmp.eq.s32.totalorder %v1071, %v998
        %vm1258 = vcmp.eq.s32.totalorder %v1074, %v998
        %vm1259 = vcmp.eq.s32.totalorder %v1077, %v998
        %vm1260 = vcmp.eq.s32.totalorder %v1080, %v998
        %vm1261 = vcmp.eq.s32.totalorder %v1083, %v998
        %vm1262 = vcmp.eq.s32.totalorder %v1086, %v998
        %vm1263 = vcmp.eq.s32.totalorder %v1089, %v998
        %vm1264 = vcmp.eq.s32.totalorder %v1092, %v998
        %vm1265 = vcmp.eq.s32.totalorder %v1095, %v998
        %vm1266 = vcmp.eq.s32.totalorder %v1098, %v998
        %vm1267 = vcmp.eq.s32.totalorder %v1101, %v998
        %vm1268 = vcmp.eq.s32.totalorder %v1104, %v998
        %vm1269 = vcmp.eq.s32.totalorder %v1107, %v998
        %vm1270 = vcmp.eq.s32.totalorder %v1110, %v998
        %vm1271 = vcmp.eq.s32.totalorder %v1113, %v998
        %vm1272 = vcmp.eq.s32.totalorder %v1116, %v998
        %vm1273 = vcmp.eq.s32.totalorder %v1119, %v998
        %vm1274 = vcmp.eq.s32.totalorder %v1122, %v998
        %vm1275 = vcmp.eq.s32.totalorder %v1125, %v998
        %vm1276 = vcmp.eq.s32.totalorder %v1128, %v998
        %vm1277 = vcmp.eq.s32.totalorder %v1131, %v998
        %vm1278 = vcmp.eq.s32.totalorder %v1134, %v998
        %vm1279 = vcmp.eq.s32.totalorder %v1137, %v998
        %vm1280 = vcmp.eq.s32.totalorder %v1140, %v998
        %vm1281 = vcmp.eq.s32.totalorder %v1143, %v998
        %vm1282 = vcmp.eq.s32.totalorder %v1146, %v998
        %vm1283 = vcmp.eq.s32.totalorder %v1149, %v998
        %vm1284 = vcmp.eq.s32.totalorder %v1152, %v998
        %vm1285 = vcmp.eq.s32.totalorder %v1155, %v998
        %vm1286 = vcmp.eq.s32.totalorder %v1158, %v998
        %vm1287 = vcmp.eq.s32.totalorder %v1161, %v998
        %vm1288 = vcmp.eq.s32.totalorder %v1164, %v998
        %vm1289 = vcmp.eq.s32.totalorder %v1167, %v998
        %vm1290 = vcmp.eq.s32.totalorder %v1170, %v998
        %vm1291 = vcmp.eq.s32.totalorder %v1173, %v998
        %vm1292 = vcmp.eq.s32.totalorder %v1176, %v998
        %vm1293 = vcmp.eq.s32.totalorder %v1179, %v998
        %vm1294 = vcmp.eq.s32.totalorder %v1182, %v998
        %vm1295 = vcmp.eq.s32.totalorder %v1185, %v998
        %vm1296 = vcmp.eq.s32.totalorder %v1188, %v998
        %vm1297 = vcmp.eq.s32.totalorder %v1191, %v998
        %vm1298 = vcmp.eq.s32.totalorder %v1194, %v998
        %vm1299 = vcmp.eq.s32.totalorder %v1197, %v998
        %vm1300 = vcmp.eq.s32.totalorder %v1200, %v998
        %vm1301 = vcmp.eq.s32.totalorder %v1203, %v998
        %vm1302 = vcmp.eq.s32.totalorder %v1206, %v998
        %vm1303 = vcmp.eq.s32.totalorder %v1209, %v998
        %vm1304 = vcmp.eq.s32.totalorder %v1212, %v998
        %vm1305 = vcmp.eq.s32.totalorder %v1215, %v998
        %vm1306 = vcmp.eq.s32.totalorder %v1218, %v998
        %vm1307 = vcmp.eq.s32.totalorder %v1221, %v998
        %vm1308 = vcmp.eq.s32.totalorder %v1224, %v998
        %vm1309 = vcmp.eq.s32.totalorder %v1227, %v998
        %vm1310 = vcmp.eq.s32.totalorder %v1230, %v998
        %vm1311 = vcmp.eq.s32.totalorder %v1233, %v998
        %vm1312 = vcmp.eq.s32.totalorder %v1236, %v998
        %vm1313 = vcmp.eq.s32.totalorder %v1239, %v998
        %vm1314 = vcmp.eq.s32.totalorder %v1242, %v998
        %vm1315 = vcmp.eq.s32.totalorder %v1245, %v998
        %vm1316 = vcmp.eq.s32.totalorder %v1248, %v998
        %vm1317 = vcmp.eq.s32.totalorder %v1251, %v998
        %vm1318 = vcmp.eq.s32.totalorder %v1254, %v998
        %v1319 = vsel %vm1255, 1, 0
        %v1320 = vsel %vm1256, 1, 0
        %v1321 = vsel %vm1257, 1, 0
        %v1322 = vsel %vm1258, 1, 0
        %v1323 = vsel %vm1259, 1, 0
        %v1324 = vsel %vm1260, 1, 0
        %v1325 = vsel %vm1261, 1, 0
        %v1326 = vsel %vm1262, 1, 0
        %v1327 = vsel %vm1263, 1, 0
        %v1328 = vsel %vm1264, 1, 0
        %v1329 = vsel %vm1265, 1, 0
        %v1330 = vsel %vm1266, 1, 0
        %v1331 = vsel %vm1267, 1, 0
        %v1332 = vsel %vm1268, 1, 0
        %v1333 = vsel %vm1269, 1, 0
        %v1334 = vsel %vm1270, 1, 0
        %v1335 = vsel %vm1271, 1, 0
        %v1336 = vsel %vm1272, 1, 0
        %v1337 = vsel %vm1273, 1, 0
        %v1338 = vsel %vm1274, 1, 0
        %v1339 = vsel %vm1275, 1, 0
        %v1340 = vsel %vm1276, 1, 0
        %v1341 = vsel %vm1277, 1, 0
        %v1342 = vsel %vm1278, 1, 0
        %v1343 = vsel %vm1279, 1, 0
        %v1344 = vsel %vm1280, 1, 0
        %v1345 = vsel %vm1281, 1, 0
        %v1346 = vsel %vm1282, 1, 0
        %v1347 = vsel %vm1283, 1, 0
        %v1348 = vsel %vm1284, 1, 0
        %v1349 = vsel %vm1285, 1, 0
        %v1350 = vsel %vm1286, 1, 0
        %v1351 = vsel %vm1287, 1, 0
        %v1352 = vsel %vm1288, 1, 0
        %v1353 = vsel %vm1289, 1, 0
        %v1354 = vsel %vm1290, 1, 0
        %v1355 = vsel %vm1291, 1, 0
        %v1356 = vsel %vm1292, 1, 0
        %v1357 = vsel %vm1293, 1, 0
        %v1358 = vsel %vm1294, 1, 0
        %v1359 = vsel %vm1295, 1, 0
        %v1360 = vsel %vm1296, 1, 0
        %v1361 = vsel %vm1297, 1, 0
        %v1362 = vsel %vm1298, 1, 0
        %v1363 = vsel %vm1299, 1, 0
        %v1364 = vsel %vm1300, 1, 0
        %v1365 = vsel %vm1301, 1, 0
        %v1366 = vsel %vm1302, 1, 0
        %v1367 = vsel %vm1303, 1, 0
        %v1368 = vsel %vm1304, 1, 0
        %v1369 = vsel %vm1305, 1, 0
        %v1370 = vsel %vm1306, 1, 0
        %v1371 = vsel %vm1307, 1, 0
        %v1372 = vsel %vm1308, 1, 0
        %v1373 = vsel %vm1309, 1, 0
        %v1374 = vsel %vm1310, 1, 0
        %v1375 = vsel %vm1311, 1, 0
        %v1376 = vsel %vm1312, 1, 0
        %v1377 = vsel %vm1313, 1, 0
        %v1378 = vsel %vm1314, 1, 0
        %v1379 = vsel %vm1315, 1, 0
        %v1380 = vsel %vm1316, 1, 0
        %v1381 = vsel %vm1317, 1, 0
        %v1382 = vsel %vm1318, 1, 0
        %v1383 = vcvt.s32.f32 %v1319
        %v1384 = vcvt.s32.f32 %v1320
        %v1385 = vcvt.s32.f32 %v1321
        %v1386 = vcvt.s32.f32 %v1322
        %v1387 = vcvt.s32.f32 %v1323
        %v1388 = vcvt.s32.f32 %v1324
        %v1389 = vcvt.s32.f32 %v1325
        %v1390 = vcvt.s32.f32 %v1326
        %v1391 = vcvt.s32.f32 %v1327
        %v1392 = vcvt.s32.f32 %v1328
        %v1393 = vcvt.s32.f32 %v1329
        %v1394 = vcvt.s32.f32 %v1330
        %v1395 = vcvt.s32.f32 %v1331
        %v1396 = vcvt.s32.f32 %v1332
        %v1397 = vcvt.s32.f32 %v1333
        %v1398 = vcvt.s32.f32 %v1334
        %v1399 = vcvt.s32.f32 %v1335
        %v1400 = vcvt.s32.f32 %v1336
        %v1401 = vcvt.s32.f32 %v1337
        %v1402 = vcvt.s32.f32 %v1338
        %v1403 = vcvt.s32.f32 %v1339
        %v1404 = vcvt.s32.f32 %v1340
        %v1405 = vcvt.s32.f32 %v1341
        %v1406 = vcvt.s32.f32 %v1342
        %v1407 = vcvt.s32.f32 %v1343
        %v1408 = vcvt.s32.f32 %v1344
        %v1409 = vcvt.s32.f32 %v1345
        %v1410 = vcvt.s32.f32 %v1346
        %v1411 = vcvt.s32.f32 %v1347
        %v1412 = vcvt.s32.f32 %v1348
        %v1413 = vcvt.s32.f32 %v1349
        %v1414 = vcvt.s32.f32 %v1350
        %v1415 = vcvt.s32.f32 %v1351
        %v1416 = vcvt.s32.f32 %v1352
        %v1417 = vcvt.s32.f32 %v1353
        %v1418 = vcvt.s32.f32 %v1354
        %v1419 = vcvt.s32.f32 %v1355
        %v1420 = vcvt.s32.f32 %v1356
        %v1421 = vcvt.s32.f32 %v1357
        %v1422 = vcvt.s32.f32 %v1358
        %v1423 = vcvt.s32.f32 %v1359
        %v1424 = vcvt.s32.f32 %v1360
        %v1425 = vcvt.s32.f32 %v1361
        %v1426 = vcvt.s32.f32 %v1362
        %v1427 = vcvt.s32.f32 %v1363
        %v1428 = vcvt.s32.f32 %v1364
        %v1429 = vcvt.s32.f32 %v1365
        %v1430 = vcvt.s32.f32 %v1366
        %v1431 = vcvt.s32.f32 %v1367
        %v1432 = vcvt.s32.f32 %v1368
        %v1433 = vcvt.s32.f32 %v1369
        %v1434 = vcvt.s32.f32 %v1370
        %v1435 = vcvt.s32.f32 %v1371
        %v1436 = vcvt.s32.f32 %v1372
        %v1437 = vcvt.s32.f32 %v1373
        %v1438 = vcvt.s32.f32 %v1374
        %v1439 = vcvt.s32.f32 %v1375
        %v1440 = vcvt.s32.f32 %v1376
        %v1441 = vcvt.s32.f32 %v1377
        %v1442 = vcvt.s32.f32 %v1378
        %v1443 = vcvt.s32.f32 %v1379
        %v1444 = vcvt.s32.f32 %v1380
        %v1445 = vcvt.s32.f32 %v1381
        %v1446 = vcvt.s32.f32 %v1382
        %v1447 = vpack.c.bf16 %v1384, %v1383
        %v1448 = vpack.c.bf16 %v1386, %v1385
        %v1449 = vpack.c.bf16 %v1388, %v1387
        %v1450 = vpack.c.bf16 %v1390, %v1389
        %v1451 = vpack.c.bf16 %v1392, %v1391
        %v1452 = vpack.c.bf16 %v1394, %v1393
        %v1453 = vpack.c.bf16 %v1396, %v1395
        %v1454 = vpack.c.bf16 %v1398, %v1397
        %v1455 = vpack.c.bf16 %v1400, %v1399
        %v1456 = vpack.c.bf16 %v1402, %v1401
        %v1457 = vpack.c.bf16 %v1404, %v1403
        %v1458 = vpack.c.bf16 %v1406, %v1405
        %v1459 = vpack.c.bf16 %v1408, %v1407
        %v1460 = vpack.c.bf16 %v1410, %v1409
        %v1461 = vpack.c.bf16 %v1412, %v1411
        %v1462 = vpack.c.bf16 %v1414, %v1413
        %v1463 = vpack.c.bf16 %v1416, %v1415
        %v1464 = vpack.c.bf16 %v1418, %v1417
        %v1465 = vpack.c.bf16 %v1420, %v1419
        %v1466 = vpack.c.bf16 %v1422, %v1421
        %v1467 = vpack.c.bf16 %v1424, %v1423
        %v1468 = vpack.c.bf16 %v1426, %v1425
        %v1469 = vpack.c.bf16 %v1428, %v1427
        %v1470 = vpack.c.bf16 %v1430, %v1429
        %v1471 = vpack.c.bf16 %v1432, %v1431
        %v1472 = vpack.c.bf16 %v1434, %v1433
        %v1473 = vpack.c.bf16 %v1436, %v1435
        %v1474 = vpack.c.bf16 %v1438, %v1437
        %v1475 = vpack.c.bf16 %v1440, %v1439
        %v1476 = vpack.c.bf16 %v1442, %v1441
        %v1477 = vpack.c.bf16 %v1444, %v1443
        %v1478 = vpack.c.bf16 %v1446, %v1445
        %v1479 = vld [vmem:[%s613] sm:$0xff]
        %v1480 = vld [vmem:[%s613 + $0x8] sm:$0xff]
        %v1481 = vld [vmem:[%s613 + $0x10] sm:$0xff]
        %v1482 = vld [vmem:[%s613 + $0x18] sm:$0xff]
        %v1483 = vld [vmem:[%s613 + $0x20] sm:$0xff]
        %v1484 = vld [vmem:[%s613 + $0x28] sm:$0xff]
        %v1485 = vld [vmem:[%s613 + $0x30] sm:$0xff]
        %v1486 = vld [vmem:[%s613 + $0x38] sm:$0xff]
        %v1487 = vld [vmem:[%s613 + $0x40] sm:$0xff]
        %v1488 = vld [vmem:[%s613 + $0x48] sm:$0xff]
        %v1489 = vld [vmem:[%s613 + $0x50] sm:$0xff]
        %v1490 = vld [vmem:[%s613 + $0x58] sm:$0xff]
        %v1491 = vld [vmem:[%s613 + $0x60] sm:$0xff]
        %v1492 = vld [vmem:[%s613 + $0x68] sm:$0xff]
        %v1493 = vld [vmem:[%s613 + $0x70] sm:$0xff]
        %v1494 = vld [vmem:[%s613 + $0x78] sm:$0xff]
        %v1495 = vld [vmem:[%s613 + $0x80] sm:$0xff]
        %v1496 = vld [vmem:[%s613 + $0x88] sm:$0xff]
        %v1497 = vld [vmem:[%s613 + $0x90] sm:$0xff]
        %v1498 = vld [vmem:[%s613 + $0x98] sm:$0xff]
        %v1499 = vld [vmem:[%s613 + $0xa0] sm:$0xff]
        %v1500 = vld [vmem:[%s613 + $0xa8] sm:$0xff]
        %v1501 = vld [vmem:[%s613 + $0xb0] sm:$0xff]
        %v1502 = vld [vmem:[%s613 + $0xb8] sm:$0xff]
        %v1503 = vld [vmem:[%s613 + $0xc0] sm:$0xff]
        %v1504 = vld [vmem:[%s613 + $0xc8] sm:$0xff]
        %v1505 = vld [vmem:[%s613 + $0xd0] sm:$0xff]
        %v1506 = vld [vmem:[%s613 + $0xd8] sm:$0xff]
        %v1507 = vld [vmem:[%s613 + $0xe0] sm:$0xff]
        %v1508 = vld [vmem:[%s613 + $0xe8] sm:$0xff]
        %v1509 = vld [vmem:[%s613 + $0xf0] sm:$0xff]
        %v1510 = vld [vmem:[%s613 + $0xf8] sm:$0xff]
        %v1511 = vld [vmem:[%s613 + $0x100] sm:$0xff]
        %v1512 = vld [vmem:[%s613 + $0x108] sm:$0xff]
        %v1513 = vld [vmem:[%s613 + $0x110] sm:$0xff]
        %v1514 = vld [vmem:[%s613 + $0x118] sm:$0xff]
        %v1515 = vld [vmem:[%s613 + $0x120] sm:$0xff]
        %v1516 = vld [vmem:[%s613 + $0x128] sm:$0xff]
        %v1517 = vld [vmem:[%s613 + $0x130] sm:$0xff]
        %v1518 = vld [vmem:[%s613 + $0x138] sm:$0xff]
        %v1519 = vld [vmem:[%s613 + $0x140] sm:$0xff]
        %v1520 = vld [vmem:[%s613 + $0x148] sm:$0xff]
        %v1521 = vld [vmem:[%s613 + $0x150] sm:$0xff]
        %v1522 = vld [vmem:[%s613 + $0x158] sm:$0xff]
        %v1523 = vld [vmem:[%s613 + $0x160] sm:$0xff]
        %v1524 = vld [vmem:[%s613 + $0x168] sm:$0xff]
        %v1525 = vld [vmem:[%s613 + $0x170] sm:$0xff]
        %v1526 = vld [vmem:[%s613 + $0x178] sm:$0xff]
        %v1527 = vld [vmem:[%s613 + $0x180] sm:$0xff]
        %v1528 = vld [vmem:[%s613 + $0x188] sm:$0xff]
        %v1529 = vld [vmem:[%s613 + $0x190] sm:$0xff]
        %v1530 = vld [vmem:[%s613 + $0x198] sm:$0xff]
        %v1531 = vld [vmem:[%s613 + $0x1a0] sm:$0xff]
        %v1532 = vld [vmem:[%s613 + $0x1a8] sm:$0xff]
        %v1533 = vld [vmem:[%s613 + $0x1b0] sm:$0xff]
        %v1534 = vld [vmem:[%s613 + $0x1b8] sm:$0xff]
        %v1535 = vld [vmem:[%s613 + $0x1c0] sm:$0xff]
        %v1536 = vld [vmem:[%s613 + $0x1c8] sm:$0xff]
        %v1537 = vld [vmem:[%s613 + $0x1d0] sm:$0xff]
        %v1538 = vld [vmem:[%s613 + $0x1d8] sm:$0xff]
        %v1539 = vld [vmem:[%s613 + $0x1e0] sm:$0xff]
        %v1540 = vld [vmem:[%s613 + $0x1e8] sm:$0xff]
        %v1541 = vld [vmem:[%s613 + $0x1f0] sm:$0xff]
        %v1542 = vld [vmem:[%s613 + $0x1f8] sm:$0xff]
        %1543 = vset.pattern.permute.xlu0 0
        %1544 = vperm.xlu0 %1543, %v1479
        %v1545 = vpop.permute.xlu0 %1544
        %1546 = vset.pattern.permute.xlu0 0
        %1547 = vperm.xlu0 %1546, %v1480
        %v1548 = vpop.permute.xlu0 %1547
        %1549 = vset.pattern.permute.xlu0 0
        %1550 = vperm.xlu0 %1549, %v1481
        %v1551 = vpop.permute.xlu0 %1550
        %1552 = vset.pattern.permute.xlu0 0
        %1553 = vperm.xlu0 %1552, %v1482
        %v1554 = vpop.permute.xlu0 %1553
        %1555 = vset.pattern.permute.xlu0 0
        %1556 = vperm.xlu0 %1555, %v1483
        %v1557 = vpop.permute.xlu0 %1556
        %1558 = vset.pattern.permute.xlu0 0
        %1559 = vperm.xlu0 %1558, %v1484
        %v1560 = vpop.permute.xlu0 %1559
        %1561 = vset.pattern.permute.xlu0 0
        %1562 = vperm.xlu0 %1561, %v1485
        %v1563 = vpop.permute.xlu0 %1562
        %1564 = vset.pattern.permute.xlu0 0
        %1565 = vperm.xlu0 %1564, %v1486
        %v1566 = vpop.permute.xlu0 %1565
        %1567 = vset.pattern.permute.xlu0 0
        %1568 = vperm.xlu0 %1567, %v1487
        %v1569 = vpop.permute.xlu0 %1568
        %1570 = vset.pattern.permute.xlu0 0
        %1571 = vperm.xlu0 %1570, %v1488
        %v1572 = vpop.permute.xlu0 %1571
        %1573 = vset.pattern.permute.xlu0 0
        %1574 = vperm.xlu0 %1573, %v1489
        %v1575 = vpop.permute.xlu0 %1574
        %1576 = vset.pattern.permute.xlu0 0
        %1577 = vperm.xlu0 %1576, %v1490
        %v1578 = vpop.permute.xlu0 %1577
        %1579 = vset.pattern.permute.xlu0 0
        %1580 = vperm.xlu0 %1579, %v1491
        %v1581 = vpop.permute.xlu0 %1580
        %1582 = vset.pattern.permute.xlu0 0
        %1583 = vperm.xlu0 %1582, %v1492
        %v1584 = vpop.permute.xlu0 %1583
        %1585 = vset.pattern.permute.xlu0 0
        %1586 = vperm.xlu0 %1585, %v1493
        %v1587 = vpop.permute.xlu0 %1586
        %1588 = vset.pattern.permute.xlu0 0
        %1589 = vperm.xlu0 %1588, %v1494
        %v1590 = vpop.permute.xlu0 %1589
        %1591 = vset.pattern.permute.xlu0 0
        %1592 = vperm.xlu0 %1591, %v1495
        %v1593 = vpop.permute.xlu0 %1592
        %1594 = vset.pattern.permute.xlu0 0
        %1595 = vperm.xlu0 %1594, %v1496
        %v1596 = vpop.permute.xlu0 %1595
        %1597 = vset.pattern.permute.xlu0 0
        %1598 = vperm.xlu0 %1597, %v1497
        %v1599 = vpop.permute.xlu0 %1598
        %1600 = vset.pattern.permute.xlu0 0
        %1601 = vperm.xlu0 %1600, %v1498
        %v1602 = vpop.permute.xlu0 %1601
        %1603 = vset.pattern.permute.xlu0 0
        %1604 = vperm.xlu0 %1603, %v1499
        %v1605 = vpop.permute.xlu0 %1604
        %1606 = vset.pattern.permute.xlu0 0
        %1607 = vperm.xlu0 %1606, %v1500
        %v1608 = vpop.permute.xlu0 %1607
        %1609 = vset.pattern.permute.xlu0 0
        %1610 = vperm.xlu0 %1609, %v1501
        %v1611 = vpop.permute.xlu0 %1610
        %1612 = vset.pattern.permute.xlu0 0
        %1613 = vperm.xlu0 %1612, %v1502
        %v1614 = vpop.permute.xlu0 %1613
        %1615 = vset.pattern.permute.xlu0 0
        %1616 = vperm.xlu0 %1615, %v1503
        %v1617 = vpop.permute.xlu0 %1616
        %1618 = vset.pattern.permute.xlu0 0
        %1619 = vperm.xlu0 %1618, %v1504
        %v1620 = vpop.permute.xlu0 %1619
        %1621 = vset.pattern.permute.xlu0 0
        %1622 = vperm.xlu0 %1621, %v1505
        %v1623 = vpop.permute.xlu0 %1622
        %1624 = vset.pattern.permute.xlu0 0
        %1625 = vperm.xlu0 %1624, %v1506
        %v1626 = vpop.permute.xlu0 %1625
        %1627 = vset.pattern.permute.xlu0 0
        %1628 = vperm.xlu0 %1627, %v1507
        %v1629 = vpop.permute.xlu0 %1628
        %1630 = vset.pattern.permute.xlu0 0
        %1631 = vperm.xlu0 %1630, %v1508
        %v1632 = vpop.permute.xlu0 %1631
        %1633 = vset.pattern.permute.xlu0 0
        %1634 = vperm.xlu0 %1633, %v1509
        %v1635 = vpop.permute.xlu0 %1634
        %1636 = vset.pattern.permute.xlu0 0
        %1637 = vperm.xlu0 %1636, %v1510
        %v1638 = vpop.permute.xlu0 %1637
        %1639 = vset.pattern.permute.xlu0 0
        %1640 = vperm.xlu0 %1639, %v1511
        %v1641 = vpop.permute.xlu0 %1640
        %1642 = vset.pattern.permute.xlu0 0
        %1643 = vperm.xlu0 %1642, %v1512
        %v1644 = vpop.permute.xlu0 %1643
        %1645 = vset.pattern.permute.xlu0 0
        %1646 = vperm.xlu0 %1645, %v1513
        %v1647 = vpop.permute.xlu0 %1646
        %1648 = vset.pattern.permute.xlu0 0
        %1649 = vperm.xlu0 %1648, %v1514
        %v1650 = vpop.permute.xlu0 %1649
        %1651 = vset.pattern.permute.xlu0 0
        %1652 = vperm.xlu0 %1651, %v1515
        %v1653 = vpop.permute.xlu0 %1652
        %1654 = vset.pattern.permute.xlu0 0
        %1655 = vperm.xlu0 %1654, %v1516
        %v1656 = vpop.permute.xlu0 %1655
        %1657 = vset.pattern.permute.xlu0 0
        %1658 = vperm.xlu0 %1657, %v1517
        %v1659 = vpop.permute.xlu0 %1658
        %1660 = vset.pattern.permute.xlu0 0
        %1661 = vperm.xlu0 %1660, %v1518
        %v1662 = vpop.permute.xlu0 %1661
        %1663 = vset.pattern.permute.xlu0 0
        %1664 = vperm.xlu0 %1663, %v1519
        %v1665 = vpop.permute.xlu0 %1664
        %1666 = vset.pattern.permute.xlu0 0
        %1667 = vperm.xlu0 %1666, %v1520
        %v1668 = vpop.permute.xlu0 %1667
        %1669 = vset.pattern.permute.xlu0 0
        %1670 = vperm.xlu0 %1669, %v1521
        %v1671 = vpop.permute.xlu0 %1670
        %1672 = vset.pattern.permute.xlu0 0
        %1673 = vperm.xlu0 %1672, %v1522
        %v1674 = vpop.permute.xlu0 %1673
        %1675 = vset.pattern.permute.xlu0 0
        %1676 = vperm.xlu0 %1675, %v1523
        %v1677 = vpop.permute.xlu0 %1676
        %1678 = vset.pattern.permute.xlu0 0
        %1679 = vperm.xlu0 %1678, %v1524
        %v1680 = vpop.permute.xlu0 %1679
        %1681 = vset.pattern.permute.xlu0 0
        %1682 = vperm.xlu0 %1681, %v1525
        %v1683 = vpop.permute.xlu0 %1682
        %1684 = vset.pattern.permute.xlu0 0
        %1685 = vperm.xlu0 %1684, %v1526
        %v1686 = vpop.permute.xlu0 %1685
        %1687 = vset.pattern.permute.xlu0 0
        %1688 = vperm.xlu0 %1687, %v1527
        %v1689 = vpop.permute.xlu0 %1688
        %1690 = vset.pattern.permute.xlu0 0
        %1691 = vperm.xlu0 %1690, %v1528
        %v1692 = vpop.permute.xlu0 %1691
        %1693 = vset.pattern.permute.xlu0 0
        %1694 = vperm.xlu0 %1693, %v1529
        %v1695 = vpop.permute.xlu0 %1694
        %1696 = vset.pattern.permute.xlu0 0
        %1697 = vperm.xlu0 %1696, %v1530
        %v1698 = vpop.permute.xlu0 %1697
        %1699 = vset.pattern.permute.xlu0 0
        %1700 = vperm.xlu0 %1699, %v1531
        %v1701 = vpop.permute.xlu0 %1700
        %1702 = vset.pattern.permute.xlu0 0
        %1703 = vperm.xlu0 %1702, %v1532
        %v1704 = vpop.permute.xlu0 %1703
        %1705 = vset.pattern.permute.xlu0 0
        %1706 = vperm.xlu0 %1705, %v1533
        %v1707 = vpop.permute.xlu0 %1706
        %1708 = vset.pattern.permute.xlu0 0
        %1709 = vperm.xlu0 %1708, %v1534
        %v1710 = vpop.permute.xlu0 %1709
        %1711 = vset.pattern.permute.xlu0 0
        %1712 = vperm.xlu0 %1711, %v1535
        %v1713 = vpop.permute.xlu0 %1712
        %1714 = vset.pattern.permute.xlu0 0
        %1715 = vperm.xlu0 %1714, %v1536
        %v1716 = vpop.permute.xlu0 %1715
        %1717 = vset.pattern.permute.xlu0 0
        %1718 = vperm.xlu0 %1717, %v1537
        %v1719 = vpop.permute.xlu0 %1718
        %1720 = vset.pattern.permute.xlu0 0
        %1721 = vperm.xlu0 %1720, %v1538
        %v1722 = vpop.permute.xlu0 %1721
        %1723 = vset.pattern.permute.xlu0 0
        %1724 = vperm.xlu0 %1723, %v1539
        %v1725 = vpop.permute.xlu0 %1724
        %1726 = vset.pattern.permute.xlu0 0
        %1727 = vperm.xlu0 %1726, %v1540
        %v1728 = vpop.permute.xlu0 %1727
        %1729 = vset.pattern.permute.xlu0 0
        %1730 = vperm.xlu0 %1729, %v1541
        %v1731 = vpop.permute.xlu0 %1730
        %1732 = vset.pattern.permute.xlu0 0
        %1733 = vperm.xlu0 %1732, %v1542
        %v1734 = vpop.permute.xlu0 %1733
        %vm1735 = vcmp.eq.s32.totalorder %v1545, %v998
        %vm1736 = vcmp.eq.s32.totalorder %v1548, %v998
        %vm1737 = vcmp.eq.s32.totalorder %v1551, %v998
        %vm1738 = vcmp.eq.s32.totalorder %v1554, %v998
        %vm1739 = vcmp.eq.s32.totalorder %v1557, %v998
        %vm1740 = vcmp.eq.s32.totalorder %v1560, %v998
        %vm1741 = vcmp.eq.s32.totalorder %v1563, %v998
        %vm1742 = vcmp.eq.s32.totalorder %v1566, %v998
        %vm1743 = vcmp.eq.s32.totalorder %v1569, %v998
        %vm1744 = vcmp.eq.s32.totalorder %v1572, %v998
        %vm1745 = vcmp.eq.s32.totalorder %v1575, %v998
        %vm1746 = vcmp.eq.s32.totalorder %v1578, %v998
        %vm1747 = vcmp.eq.s32.totalorder %v1581, %v998
        %vm1748 = vcmp.eq.s32.totalorder %v1584, %v998
        %vm1749 = vcmp.eq.s32.totalorder %v1587, %v998
        %vm1750 = vcmp.eq.s32.totalorder %v1590, %v998
        %vm1751 = vcmp.eq.s32.totalorder %v1593, %v998
        %vm1752 = vcmp.eq.s32.totalorder %v1596, %v998
        %vm1753 = vcmp.eq.s32.totalorder %v1599, %v998
        %vm1754 = vcmp.eq.s32.totalorder %v1602, %v998
        %vm1755 = vcmp.eq.s32.totalorder %v1605, %v998
        %vm1756 = vcmp.eq.s32.totalorder %v1608, %v998
        %vm1757 = vcmp.eq.s32.totalorder %v1611, %v998
        %vm1758 = vcmp.eq.s32.totalorder %v1614, %v998
        %vm1759 = vcmp.eq.s32.totalorder %v1617, %v998
        %vm1760 = vcmp.eq.s32.totalorder %v1620, %v998
        %vm1761 = vcmp.eq.s32.totalorder %v1623, %v998
        %vm1762 = vcmp.eq.s32.totalorder %v1626, %v998
        %vm1763 = vcmp.eq.s32.totalorder %v1629, %v998
        %vm1764 = vcmp.eq.s32.totalorder %v1632, %v998
        %vm1765 = vcmp.eq.s32.totalorder %v1635, %v998
        %vm1766 = vcmp.eq.s32.totalorder %v1638, %v998
        %vm1767 = vcmp.eq.s32.totalorder %v1641, %v998
        %vm1768 = vcmp.eq.s32.totalorder %v1644, %v998
        %vm1769 = vcmp.eq.s32.totalorder %v1647, %v998
        %vm1770 = vcmp.eq.s32.totalorder %v1650, %v998
        %vm1771 = vcmp.eq.s32.totalorder %v1653, %v998
        %vm1772 = vcmp.eq.s32.totalorder %v1656, %v998
        %vm1773 = vcmp.eq.s32.totalorder %v1659, %v998
        %vm1774 = vcmp.eq.s32.totalorder %v1662, %v998
        %vm1775 = vcmp.eq.s32.totalorder %v1665, %v998
        %vm1776 = vcmp.eq.s32.totalorder %v1668, %v998
        %vm1777 = vcmp.eq.s32.totalorder %v1671, %v998
        %vm1778 = vcmp.eq.s32.totalorder %v1674, %v998
        %vm1779 = vcmp.eq.s32.totalorder %v1677, %v998
        %vm1780 = vcmp.eq.s32.totalorder %v1680, %v998
        %vm1781 = vcmp.eq.s32.totalorder %v1683, %v998
        %vm1782 = vcmp.eq.s32.totalorder %v1686, %v998
        %vm1783 = vcmp.eq.s32.totalorder %v1689, %v998
        %vm1784 = vcmp.eq.s32.totalorder %v1692, %v998
        %vm1785 = vcmp.eq.s32.totalorder %v1695, %v998
        %vm1786 = vcmp.eq.s32.totalorder %v1698, %v998
        %vm1787 = vcmp.eq.s32.totalorder %v1701, %v998
        %vm1788 = vcmp.eq.s32.totalorder %v1704, %v998
        %vm1789 = vcmp.eq.s32.totalorder %v1707, %v998
        %vm1790 = vcmp.eq.s32.totalorder %v1710, %v998
        %vm1791 = vcmp.eq.s32.totalorder %v1713, %v998
        %vm1792 = vcmp.eq.s32.totalorder %v1716, %v998
        %vm1793 = vcmp.eq.s32.totalorder %v1719, %v998
        %vm1794 = vcmp.eq.s32.totalorder %v1722, %v998
        %vm1795 = vcmp.eq.s32.totalorder %v1725, %v998
        %vm1796 = vcmp.eq.s32.totalorder %v1728, %v998
        %vm1797 = vcmp.eq.s32.totalorder %v1731, %v998
        %vm1798 = vcmp.eq.s32.totalorder %v1734, %v998
        %v1799 = vsel %vm1735, 1, 0
        %v1800 = vsel %vm1736, 1, 0
        %v1801 = vsel %vm1737, 1, 0
        %v1802 = vsel %vm1738, 1, 0
        %v1803 = vsel %vm1739, 1, 0
        %v1804 = vsel %vm1740, 1, 0
        %v1805 = vsel %vm1741, 1, 0
        %v1806 = vsel %vm1742, 1, 0
        %v1807 = vsel %vm1743, 1, 0
        %v1808 = vsel %vm1744, 1, 0
        %v1809 = vsel %vm1745, 1, 0
        %v1810 = vsel %vm1746, 1, 0
        %v1811 = vsel %vm1747, 1, 0
        %v1812 = vsel %vm1748, 1, 0
        %v1813 = vsel %vm1749, 1, 0
        %v1814 = vsel %vm1750, 1, 0
        %v1815 = vsel %vm1751, 1, 0
        %v1816 = vsel %vm1752, 1, 0
        %v1817 = vsel %vm1753, 1, 0
        %v1818 = vsel %vm1754, 1, 0
        %v1819 = vsel %vm1755, 1, 0
        %v1820 = vsel %vm1756, 1, 0
        %v1821 = vsel %vm1757, 1, 0
        %v1822 = vsel %vm1758, 1, 0
        %v1823 = vsel %vm1759, 1, 0
        %v1824 = vsel %vm1760, 1, 0
        %v1825 = vsel %vm1761, 1, 0
        %v1826 = vsel %vm1762, 1, 0
        %v1827 = vsel %vm1763, 1, 0
        %v1828 = vsel %vm1764, 1, 0
        %v1829 = vsel %vm1765, 1, 0
        %v1830 = vsel %vm1766, 1, 0
        %v1831 = vsel %vm1767, 1, 0
        %v1832 = vsel %vm1768, 1, 0
        %v1833 = vsel %vm1769, 1, 0
        %v1834 = vsel %vm1770, 1, 0
        %v1835 = vsel %vm1771, 1, 0
        %v1836 = vsel %vm1772, 1, 0
        %v1837 = vsel %vm1773, 1, 0
        %v1838 = vsel %vm1774, 1, 0
        %v1839 = vsel %vm1775, 1, 0
        %v1840 = vsel %vm1776, 1, 0
        %v1841 = vsel %vm1777, 1, 0
        %v1842 = vsel %vm1778, 1, 0
        %v1843 = vsel %vm1779, 1, 0
        %v1844 = vsel %vm1780, 1, 0
        %v1845 = vsel %vm1781, 1, 0
        %v1846 = vsel %vm1782, 1, 0
        %v1847 = vsel %vm1783, 1, 0
        %v1848 = vsel %vm1784, 1, 0
        %v1849 = vsel %vm1785, 1, 0
        %v1850 = vsel %vm1786, 1, 0
        %v1851 = vsel %vm1787, 1, 0
        %v1852 = vsel %vm1788, 1, 0
        %v1853 = vsel %vm1789, 1, 0
        %v1854 = vsel %vm1790, 1, 0
        %v1855 = vsel %vm1791, 1, 0
        %v1856 = vsel %vm1792, 1, 0
        %v1857 = vsel %vm1793, 1, 0
        %v1858 = vsel %vm1794, 1, 0
        %v1859 = vsel %vm1795, 1, 0
        %v1860 = vsel %vm1796, 1, 0
        %v1861 = vsel %vm1797, 1, 0
        %v1862 = vsel %vm1798, 1, 0
        %v1863 = vcvt.s32.f32 %v1799
        %v1864 = vcvt.s32.f32 %v1800
        %v1865 = vcvt.s32.f32 %v1801
        %v1866 = vcvt.s32.f32 %v1802
        %v1867 = vcvt.s32.f32 %v1803
        %v1868 = vcvt.s32.f32 %v1804
        %v1869 = vcvt.s32.f32 %v1805
        %v1870 = vcvt.s32.f32 %v1806
        %v1871 = vcvt.s32.f32 %v1807
        %v1872 = vcvt.s32.f32 %v1808
        %v1873 = vcvt.s32.f32 %v1809
        %v1874 = vcvt.s32.f32 %v1810
        %v1875 = vcvt.s32.f32 %v1811
        %v1876 = vcvt.s32.f32 %v1812
        %v1877 = vcvt.s32.f32 %v1813
        %v1878 = vcvt.s32.f32 %v1814
        %v1879 = vcvt.s32.f32 %v1815
        %v1880 = vcvt.s32.f32 %v1816
        %v1881 = vcvt.s32.f32 %v1817
        %v1882 = vcvt.s32.f32 %v1818
        %v1883 = vcvt.s32.f32 %v1819
        %v1884 = vcvt.s32.f32 %v1820
        %v1885 = vcvt.s32.f32 %v1821
        %v1886 = vcvt.s32.f32 %v1822
        %v1887 = vcvt.s32.f32 %v1823
        %v1888 = vcvt.s32.f32 %v1824
        %v1889 = vcvt.s32.f32 %v1825
        %v1890 = vcvt.s32.f32 %v1826
        %v1891 = vcvt.s32.f32 %v1827
        %v1892 = vcvt.s32.f32 %v1828
        %v1893 = vcvt.s32.f32 %v1829
        %v1894 = vcvt.s32.f32 %v1830
        %v1895 = vcvt.s32.f32 %v1831
        %v1896 = vcvt.s32.f32 %v1832
        %v1897 = vcvt.s32.f32 %v1833
        %v1898 = vcvt.s32.f32 %v1834
        %v1899 = vcvt.s32.f32 %v1835
        %v1900 = vcvt.s32.f32 %v1836
        %v1901 = vcvt.s32.f32 %v1837
        %v1902 = vcvt.s32.f32 %v1838
        %v1903 = vcvt.s32.f32 %v1839
        %v1904 = vcvt.s32.f32 %v1840
        %v1905 = vcvt.s32.f32 %v1841
        %v1906 = vcvt.s32.f32 %v1842
        %v1907 = vcvt.s32.f32 %v1843
        %v1908 = vcvt.s32.f32 %v1844
        %v1909 = vcvt.s32.f32 %v1845
        %v1910 = vcvt.s32.f32 %v1846
        %v1911 = vcvt.s32.f32 %v1847
        %v1912 = vcvt.s32.f32 %v1848
        %v1913 = vcvt.s32.f32 %v1849
        %v1914 = vcvt.s32.f32 %v1850
        %v1915 = vcvt.s32.f32 %v1851
        %v1916 = vcvt.s32.f32 %v1852
        %v1917 = vcvt.s32.f32 %v1853
        %v1918 = vcvt.s32.f32 %v1854
        %v1919 = vcvt.s32.f32 %v1855
        %v1920 = vcvt.s32.f32 %v1856
        %v1921 = vcvt.s32.f32 %v1857
        %v1922 = vcvt.s32.f32 %v1858
        %v1923 = vcvt.s32.f32 %v1859
        %v1924 = vcvt.s32.f32 %v1860
        %v1925 = vcvt.s32.f32 %v1861
        %v1926 = vcvt.s32.f32 %v1862
        %v1927 = vpack.c.bf16 %v1864, %v1863
        %v1928 = vpack.c.bf16 %v1866, %v1865
        %v1929 = vpack.c.bf16 %v1868, %v1867
        %v1930 = vpack.c.bf16 %v1870, %v1869
        %v1931 = vpack.c.bf16 %v1872, %v1871
        %v1932 = vpack.c.bf16 %v1874, %v1873
        %v1933 = vpack.c.bf16 %v1876, %v1875
        %v1934 = vpack.c.bf16 %v1878, %v1877
        %v1935 = vpack.c.bf16 %v1880, %v1879
        %v1936 = vpack.c.bf16 %v1882, %v1881
        %v1937 = vpack.c.bf16 %v1884, %v1883
        %v1938 = vpack.c.bf16 %v1886, %v1885
        %v1939 = vpack.c.bf16 %v1888, %v1887
        %v1940 = vpack.c.bf16 %v1890, %v1889
        %v1941 = vpack.c.bf16 %v1892, %v1891
        %v1942 = vpack.c.bf16 %v1894, %v1893
        %v1943 = vpack.c.bf16 %v1896, %v1895
        %v1944 = vpack.c.bf16 %v1898, %v1897
        %v1945 = vpack.c.bf16 %v1900, %v1899
        %v1946 = vpack.c.bf16 %v1902, %v1901
        %v1947 = vpack.c.bf16 %v1904, %v1903
        %v1948 = vpack.c.bf16 %v1906, %v1905
        %v1949 = vpack.c.bf16 %v1908, %v1907
        %v1950 = vpack.c.bf16 %v1910, %v1909
        %v1951 = vpack.c.bf16 %v1912, %v1911
        %v1952 = vpack.c.bf16 %v1914, %v1913
        %v1953 = vpack.c.bf16 %v1916, %v1915
        %v1954 = vpack.c.bf16 %v1918, %v1917
        %v1955 = vpack.c.bf16 %v1920, %v1919
        %v1956 = vpack.c.bf16 %v1922, %v1921
        %v1957 = vpack.c.bf16 %v1924, %v1923
        %v1958 = vpack.c.bf16 %v1926, %v1925
        %v1959 = vld [vmem:[#allocation3] sm:$0xff]
        %v1960 = vld [vmem:[#allocation3 + $0x8] sm:$0xff]
        %v1961 = vld [vmem:[#allocation3 + $0x10] sm:$0xff]
        %v1962 = vld [vmem:[#allocation3 + $0x18] sm:$0xff]
        %v1963 = vld [vmem:[#allocation3 + $0x20] sm:$0xff]
        %v1964 = vld [vmem:[#allocation3 + $0x28] sm:$0xff]
        %v1965 = vld [vmem:[#allocation3 + $0x30] sm:$0xff]
        %v1966 = vld [vmem:[#allocation3 + $0x38] sm:$0xff]
        %v1967 = vld [vmem:[#allocation3 + $0x40] sm:$0xff]
        %v1968 = vld [vmem:[#allocation3 + $0x48] sm:$0xff]
        %v1969 = vld [vmem:[#allocation3 + $0x50] sm:$0xff]
        %v1970 = vld [vmem:[#allocation3 + $0x58] sm:$0xff]
        %v1971 = vld [vmem:[#allocation3 + $0x60] sm:$0xff]
        %v1972 = vld [vmem:[#allocation3 + $0x68] sm:$0xff]
        %v1973 = vld [vmem:[#allocation3 + $0x70] sm:$0xff]
        %v1974 = vld [vmem:[#allocation3 + $0x78] sm:$0xff]
        %v1975 = vld [vmem:[%s601] sm:$0xff]
        %v1976 = vld [vmem:[%s601 + $0x8] sm:$0xff]
        %v1977 = vld [vmem:[%s601 + $0x10] sm:$0xff]
        %v1978 = vld [vmem:[%s601 + $0x18] sm:$0xff]
        %v1979 = vld [vmem:[%s601 + $0x20] sm:$0xff]
        %v1980 = vld [vmem:[%s601 + $0x28] sm:$0xff]
        %v1981 = vld [vmem:[%s601 + $0x30] sm:$0xff]
        %v1982 = vld [vmem:[%s601 + $0x38] sm:$0xff]
        %v1983 = vld [vmem:[%s601 + $0x40] sm:$0xff]
        %v1984 = vld [vmem:[%s601 + $0x48] sm:$0xff]
        %v1985 = vld [vmem:[%s601 + $0x50] sm:$0xff]
        %v1986 = vld [vmem:[%s601 + $0x58] sm:$0xff]
        %v1987 = vld [vmem:[%s601 + $0x60] sm:$0xff]
        %v1988 = vld [vmem:[%s601 + $0x68] sm:$0xff]
        %v1989 = vld [vmem:[%s601 + $0x70] sm:$0xff]
        %v1990 = vld [vmem:[%s601 + $0x78] sm:$0xff]
        %v1991 = vld [vmem:[%s601 + $0x80] sm:$0xff]
        %v1992 = vld [vmem:[%s601 + $0x88] sm:$0xff]
        %v1993 = vld [vmem:[%s601 + $0x90] sm:$0xff]
        %v1994 = vld [vmem:[%s601 + $0x98] sm:$0xff]
        %v1995 = vld [vmem:[%s601 + $0xa0] sm:$0xff]
        %v1996 = vld [vmem:[%s601 + $0xa8] sm:$0xff]
        %v1997 = vld [vmem:[%s601 + $0xb0] sm:$0xff]
        %v1998 = vld [vmem:[%s601 + $0xb8] sm:$0xff]
        %v1999 = vld [vmem:[%s601 + $0xc0] sm:$0xff]
        %v2000 = vld [vmem:[%s601 + $0xc8] sm:$0xff]
        %v2001 = vld [vmem:[%s601 + $0xd0] sm:$0xff]
        %v2002 = vld [vmem:[%s601 + $0xd8] sm:$0xff]
        %v2003 = vld [vmem:[%s601 + $0xe0] sm:$0xff]
        %v2004 = vld [vmem:[%s601 + $0xe8] sm:$0xff]
        %v2005 = vld [vmem:[%s601 + $0xf0] sm:$0xff]
        %v2006 = vld [vmem:[%s601 + $0xf8] sm:$0xff]
        %v2007 = vld [vmem:[%s601 + $0x100] sm:$0xff]
        %v2008 = vld [vmem:[%s601 + $0x108] sm:$0xff]
        %v2009 = vld [vmem:[%s601 + $0x110] sm:$0xff]
        %v2010 = vld [vmem:[%s601 + $0x118] sm:$0xff]
        %v2011 = vld [vmem:[%s601 + $0x120] sm:$0xff]
        %v2012 = vld [vmem:[%s601 + $0x128] sm:$0xff]
        %v2013 = vld [vmem:[%s601 + $0x130] sm:$0xff]
        %v2014 = vld [vmem:[%s601 + $0x138] sm:$0xff]
        %v2015 = vld [vmem:[%s601 + $0x140] sm:$0xff]
        %v2016 = vld [vmem:[%s601 + $0x148] sm:$0xff]
        %v2017 = vld [vmem:[%s601 + $0x150] sm:$0xff]
        %v2018 = vld [vmem:[%s601 + $0x158] sm:$0xff]
        %v2019 = vld [vmem:[%s601 + $0x160] sm:$0xff]
        %v2020 = vld [vmem:[%s601 + $0x168] sm:$0xff]
        %v2021 = vld [vmem:[%s601 + $0x170] sm:$0xff]
        %v2022 = vld [vmem:[%s601 + $0x178] sm:$0xff]
        %v2023 = vld [vmem:[%s601 + $0x180] sm:$0xff]
        %v2024 = vld [vmem:[%s601 + $0x188] sm:$0xff]
        %v2025 = vld [vmem:[%s601 + $0x190] sm:$0xff]
        %v2026 = vld [vmem:[%s601 + $0x198] sm:$0xff]
        %v2027 = vld [vmem:[%s601 + $0x1a0] sm:$0xff]
        %v2028 = vld [vmem:[%s601 + $0x1a8] sm:$0xff]
        %v2029 = vld [vmem:[%s601 + $0x1b0] sm:$0xff]
        %v2030 = vld [vmem:[%s601 + $0x1b8] sm:$0xff]
        %v2031 = vld [vmem:[%s601 + $0x1c0] sm:$0xff]
        %v2032 = vld [vmem:[%s601 + $0x1c8] sm:$0xff]
        %v2033 = vld [vmem:[%s601 + $0x1d0] sm:$0xff]
        %v2034 = vld [vmem:[%s601 + $0x1d8] sm:$0xff]
        %v2035 = vld [vmem:[%s601 + $0x1e0] sm:$0xff]
        %v2036 = vld [vmem:[%s601 + $0x1e8] sm:$0xff]
        %v2037 = vld [vmem:[%s601 + $0x1f0] sm:$0xff]
        %v2038 = vld [vmem:[%s601 + $0x1f8] sm:$0xff]
        %v2039 = vld [vmem:[%s601 + $0x200] sm:$0xff]
        %v2040 = vld [vmem:[%s601 + $0x208] sm:$0xff]
        %v2041 = vld [vmem:[%s601 + $0x210] sm:$0xff]
        %v2042 = vld [vmem:[%s601 + $0x218] sm:$0xff]
        %v2043 = vld [vmem:[%s601 + $0x220] sm:$0xff]
        %v2044 = vld [vmem:[%s601 + $0x228] sm:$0xff]
        %v2045 = vld [vmem:[%s601 + $0x230] sm:$0xff]
        %v2046 = vld [vmem:[%s601 + $0x238] sm:$0xff]
        %v2047 = vld [vmem:[%s601 + $0x240] sm:$0xff]
        %v2048 = vld [vmem:[%s601 + $0x248] sm:$0xff]
        %v2049 = vld [vmem:[%s601 + $0x250] sm:$0xff]
        %v2050 = vld [vmem:[%s601 + $0x258] sm:$0xff]
        %v2051 = vld [vmem:[%s601 + $0x260] sm:$0xff]
        %v2052 = vld [vmem:[%s601 + $0x268] sm:$0xff]
        %v2053 = vld [vmem:[%s601 + $0x270] sm:$0xff]
        %v2054 = vld [vmem:[%s601 + $0x278] sm:$0xff]
        %v2055 = vld [vmem:[%s601 + $0x280] sm:$0xff]
        %v2056 = vld [vmem:[%s601 + $0x288] sm:$0xff]
        %v2057 = vld [vmem:[%s601 + $0x290] sm:$0xff]
        %v2058 = vld [vmem:[%s601 + $0x298] sm:$0xff]
        %v2059 = vld [vmem:[%s601 + $0x2a0] sm:$0xff]
        %v2060 = vld [vmem:[%s601 + $0x2a8] sm:$0xff]
        %v2061 = vld [vmem:[%s601 + $0x2b0] sm:$0xff]
        %v2062 = vld [vmem:[%s601 + $0x2b8] sm:$0xff]
        %v2063 = vld [vmem:[%s601 + $0x2c0] sm:$0xff]
        %v2064 = vld [vmem:[%s601 + $0x2c8] sm:$0xff]
        %v2065 = vld [vmem:[%s601 + $0x2d0] sm:$0xff]
        %v2066 = vld [vmem:[%s601 + $0x2d8] sm:$0xff]
        %v2067 = vld [vmem:[%s601 + $0x2e0] sm:$0xff]
        %v2068 = vld [vmem:[%s601 + $0x2e8] sm:$0xff]
        %v2069 = vld [vmem:[%s601 + $0x2f0] sm:$0xff]
        %v2070 = vld [vmem:[%s601 + $0x2f8] sm:$0xff]
        %v2071 = vld [vmem:[%s601 + $0x300] sm:$0xff]
        %v2072 = vld [vmem:[%s601 + $0x308] sm:$0xff]
        %v2073 = vld [vmem:[%s601 + $0x310] sm:$0xff]
        %v2074 = vld [vmem:[%s601 + $0x318] sm:$0xff]
        %v2075 = vld [vmem:[%s601 + $0x320] sm:$0xff]
        %v2076 = vld [vmem:[%s601 + $0x328] sm:$0xff]
        %v2077 = vld [vmem:[%s601 + $0x330] sm:$0xff]
        %v2078 = vld [vmem:[%s601 + $0x338] sm:$0xff]
        %v2079 = vld [vmem:[%s601 + $0x340] sm:$0xff]
        %v2080 = vld [vmem:[%s601 + $0x348] sm:$0xff]
        %v2081 = vld [vmem:[%s601 + $0x350] sm:$0xff]
        %v2082 = vld [vmem:[%s601 + $0x358] sm:$0xff]
        %v2083 = vld [vmem:[%s601 + $0x360] sm:$0xff]
        %v2084 = vld [vmem:[%s601 + $0x368] sm:$0xff]
        %v2085 = vld [vmem:[%s601 + $0x370] sm:$0xff]
        %v2086 = vld [vmem:[%s601 + $0x378] sm:$0xff]
        %v2087 = vld [vmem:[%s601 + $0x380] sm:$0xff]
        %v2088 = vld [vmem:[%s601 + $0x388] sm:$0xff]
        %v2089 = vld [vmem:[%s601 + $0x390] sm:$0xff]
        %v2090 = vld [vmem:[%s601 + $0x398] sm:$0xff]
        %v2091 = vld [vmem:[%s601 + $0x3a0] sm:$0xff]
        %v2092 = vld [vmem:[%s601 + $0x3a8] sm:$0xff]
        %v2093 = vld [vmem:[%s601 + $0x3b0] sm:$0xff]
        %v2094 = vld [vmem:[%s601 + $0x3b8] sm:$0xff]
        %v2095 = vld [vmem:[%s601 + $0x3c0] sm:$0xff]
        %v2096 = vld [vmem:[%s601 + $0x3c8] sm:$0xff]
        %v2097 = vld [vmem:[%s601 + $0x3d0] sm:$0xff]
        %v2098 = vld [vmem:[%s601 + $0x3d8] sm:$0xff]
        %v2099 = vld [vmem:[%s601 + $0x3e0] sm:$0xff]
        %v2100 = vld [vmem:[%s601 + $0x3e8] sm:$0xff]
        %v2101 = vld [vmem:[%s601 + $0x3f0] sm:$0xff]
        %v2102 = vld [vmem:[%s601 + $0x3f8] sm:$0xff]
        %v2119 = vunpack.c.l.b16 %v1959
        %v2120 = vunpack.c.h.b16 %v1959
        %v2121 = vunpack.c.l.b16 %v1960
        %v2122 = vunpack.c.h.b16 %v1960
        %v2123 = vunpack.c.l.b16 %v1961
        %v2124 = vunpack.c.h.b16 %v1961
        %v2125 = vunpack.c.l.b16 %v1962
        %v2126 = vunpack.c.h.b16 %v1962
        %v2127 = vunpack.c.l.b16 %v1963
        %v2128 = vunpack.c.h.b16 %v1963
        %v2129 = vunpack.c.l.b16 %v1964
        %v2130 = vunpack.c.h.b16 %v1964
        %v2131 = vunpack.c.l.b16 %v1965
        %v2132 = vunpack.c.h.b16 %v1965
        %v2133 = vunpack.c.l.b16 %v1966
        %v2134 = vunpack.c.h.b16 %v1966
        %v2135 = vunpack.c.l.b16 %v1967
        %v2136 = vunpack.c.h.b16 %v1967
        %v2137 = vunpack.c.l.b16 %v1968
        %v2138 = vunpack.c.h.b16 %v1968
        %v2139 = vunpack.c.l.b16 %v1969
        %v2140 = vunpack.c.h.b16 %v1969
        %v2141 = vunpack.c.l.b16 %v1970
        %v2142 = vunpack.c.h.b16 %v1970
        %v2143 = vunpack.c.l.b16 %v1971
        %v2144 = vunpack.c.h.b16 %v1971
        %v2145 = vunpack.c.l.b16 %v1972
        %v2146 = vunpack.c.h.b16 %v1972
        %v2147 = vunpack.c.l.b16 %v1973
        %v2148 = vunpack.c.h.b16 %v1973
        %v2149 = vunpack.c.l.b16 %v1974
        %v2150 = vunpack.c.h.b16 %v1974
        %v2151 = vpack.c.b16 %v2121, %v2119
        %v2152 = vpack.c.b16 %v2122, %v2120
        %v2153 = vpack.c.b16 %v2125, %v2123
        %v2154 = vpack.c.b16 %v2126, %v2124
        %v2155 = vpack.c.b16 %v2129, %v2127
        %v2156 = vpack.c.b16 %v2130, %v2128
        %v2157 = vpack.c.b16 %v2133, %v2131
        %v2158 = vpack.c.b16 %v2134, %v2132
        %v2159 = vpack.c.b16 %v2137, %v2135
        %v2160 = vpack.c.b16 %v2138, %v2136
        %v2161 = vpack.c.b16 %v2141, %v2139
        %v2162 = vpack.c.b16 %v2142, %v2140
        %v2163 = vpack.c.b16 %v2145, %v2143
        %v2164 = vpack.c.b16 %v2146, %v2144
        %v2165 = vpack.c.b16 %v2149, %v2147
        %v2166 = vpack.c.b16 %v2150, %v2148
        %2183 = vmatpush.bf16.msra.mxu0 %v2165
        %2184 = vmatpush.bf16.msra.mxu0 %v2163
        %2185 = vmatpush.bf16.msra.mxu0 %v2161
        %2186 = vmatpush.bf16.msra.mxu0 %v2159
        %2187 = vmatpush.bf16.msra.mxu0 %v2157
        %2188 = vmatpush.bf16.msra.mxu0 %v2155
        %2189 = vmatpush.bf16.msra.mxu0 %v2153
        %2190 = vmatpush.bf16.msra.mxu0 %v2151
        %2191 = vmatmul.bf16.gmra.mxu0 %v1447
        %v2192 = vpop.f32.mrf.mxu0
        %v2193 = vadd.f32 %v1975, %v2192
        %v2194 = vpop.f32.mrf.mxu0
        %v2195 = vadd.f32 %v1977, %v2194
        %2196 = vmatmul.bf16.gmra.mxu0 %v1448
        %v2197 = vpop.f32.mrf.mxu0
        %v2198 = vadd.f32 %v1979, %v2197
        %v2199 = vpop.f32.mrf.mxu0
        %v2200 = vadd.f32 %v1981, %v2199
        %2201 = vmatmul.bf16.gmra.mxu0 %v1449
        %v2202 = vpop.f32.mrf.mxu0
        %v2203 = vadd.f32 %v1983, %v2202
        %v2204 = vpop.f32.mrf.mxu0
        %v2205 = vadd.f32 %v1985, %v2204
        %2206 = vmatmul.bf16.gmra.mxu0 %v1450
        %v2207 = vpop.f32.mrf.mxu0
        %v2208 = vadd.f32 %v1987, %v2207
        %v2209 = vpop.f32.mrf.mxu0
        %v2210 = vadd.f32 %v1989, %v2209
        %2211 = vmatmul.bf16.gmra.mxu0 %v1451
        %v2212 = vpop.f32.mrf.mxu0
        %v2213 = vadd.f32 %v1991, %v2212
        %v2214 = vpop.f32.mrf.mxu0
        %v2215 = vadd.f32 %v1993, %v2214
        %2216 = vmatmul.bf16.gmra.mxu0 %v1452
        %v2217 = vpop.f32.mrf.mxu0
        %v2218 = vadd.f32 %v1995, %v2217
        %v2219 = vpop.f32.mrf.mxu0
        %v2220 = vadd.f32 %v1997, %v2219
        %2221 = vmatmul.bf16.gmra.mxu0 %v1453
        %v2222 = vpop.f32.mrf.mxu0
        %v2223 = vadd.f32 %v1999, %v2222
        %v2224 = vpop.f32.mrf.mxu0
        %v2225 = vadd.f32 %v2001, %v2224
        %2226 = vmatmul.bf16.gmra.mxu0 %v1454
        %v2227 = vpop.f32.mrf.mxu0
        %v2228 = vadd.f32 %v2003, %v2227
        %v2229 = vpop.f32.mrf.mxu0
        %v2230 = vadd.f32 %v2005, %v2229
        %2231 = vmatmul.bf16.gmra.mxu0 %v1455
        %v2232 = vpop.f32.mrf.mxu0
        %v2233 = vadd.f32 %v2007, %v2232
        %v2234 = vpop.f32.mrf.mxu0
        %v2235 = vadd.f32 %v2009, %v2234
        %2236 = vmatmul.bf16.gmra.mxu0 %v1456
        %v2237 = vpop.f32.mrf.mxu0
        %v2238 = vadd.f32 %v2011, %v2237
        %v2239 = vpop.f32.mrf.mxu0
        %v2240 = vadd.f32 %v2013, %v2239
        %2241 = vmatmul.bf16.gmra.mxu0 %v1457
        %v2242 = vpop.f32.mrf.mxu0
        %v2243 = vadd.f32 %v2015, %v2242
        %v2244 = vpop.f32.mrf.mxu0
        %v2245 = vadd.f32 %v2017, %v2244
        %2246 = vmatmul.bf16.gmra.mxu0 %v1458
        %v2247 = vpop.f32.mrf.mxu0
        %v2248 = vadd.f32 %v2019, %v2247
        %v2249 = vpop.f32.mrf.mxu0
        %v2250 = vadd.f32 %v2021, %v2249
        %2251 = vmatmul.bf16.gmra.mxu0 %v1459
        %v2252 = vpop.f32.mrf.mxu0
        %v2253 = vadd.f32 %v2023, %v2252
        %v2254 = vpop.f32.mrf.mxu0
        %v2255 = vadd.f32 %v2025, %v2254
        %2256 = vmatmul.bf16.gmra.mxu0 %v1460
        %v2257 = vpop.f32.mrf.mxu0
        %v2258 = vadd.f32 %v2027, %v2257
        %v2259 = vpop.f32.mrf.mxu0
        %v2260 = vadd.f32 %v2029, %v2259
        %2261 = vmatmul.bf16.gmra.mxu0 %v1461
        %v2262 = vpop.f32.mrf.mxu0
        %v2263 = vadd.f32 %v2031, %v2262
        %v2264 = vpop.f32.mrf.mxu0
        %v2265 = vadd.f32 %v2033, %v2264
        %2266 = vmatmul.bf16.gmra.mxu0 %v1462
        %v2267 = vpop.f32.mrf.mxu0
        %v2268 = vadd.f32 %v2035, %v2267
        %v2269 = vpop.f32.mrf.mxu0
        %v2270 = vadd.f32 %v2037, %v2269
        %2271 = vmatmul.bf16.gmra.mxu0 %v1463
        %v2272 = vpop.f32.mrf.mxu0
        %v2273 = vadd.f32 %v2039, %v2272
        %v2274 = vpop.f32.mrf.mxu0
        %v2275 = vadd.f32 %v2041, %v2274
        %2276 = vmatmul.bf16.gmra.mxu0 %v1464
        %v2277 = vpop.f32.mrf.mxu0
        %v2278 = vadd.f32 %v2043, %v2277
        %v2279 = vpop.f32.mrf.mxu0
        %v2280 = vadd.f32 %v2045, %v2279
        %2281 = vmatmul.bf16.gmra.mxu0 %v1465
        %v2282 = vpop.f32.mrf.mxu0
        %v2283 = vadd.f32 %v2047, %v2282
        %v2284 = vpop.f32.mrf.mxu0
        %v2285 = vadd.f32 %v2049, %v2284
        %2286 = vmatmul.bf16.gmra.mxu0 %v1466
        %v2287 = vpop.f32.mrf.mxu0
        %v2288 = vadd.f32 %v2051, %v2287
        %v2289 = vpop.f32.mrf.mxu0
        %v2290 = vadd.f32 %v2053, %v2289
        %2291 = vmatmul.bf16.gmra.mxu0 %v1467
        %v2292 = vpop.f32.mrf.mxu0
        %v2293 = vadd.f32 %v2055, %v2292
        %v2294 = vpop.f32.mrf.mxu0
        %v2295 = vadd.f32 %v2057, %v2294
        %2296 = vmatmul.bf16.gmra.mxu0 %v1468
        %v2297 = vpop.f32.mrf.mxu0
        %v2298 = vadd.f32 %v2059, %v2297
        %v2299 = vpop.f32.mrf.mxu0
        %v2300 = vadd.f32 %v2061, %v2299
        %2301 = vmatmul.bf16.gmra.mxu0 %v1469
        %v2302 = vpop.f32.mrf.mxu0
        %v2303 = vadd.f32 %v2063, %v2302
        %v2304 = vpop.f32.mrf.mxu0
        %v2305 = vadd.f32 %v2065, %v2304
        %2306 = vmatmul.bf16.gmra.mxu0 %v1470
        %v2307 = vpop.f32.mrf.mxu0
        %v2308 = vadd.f32 %v2067, %v2307
        %v2309 = vpop.f32.mrf.mxu0
        %v2310 = vadd.f32 %v2069, %v2309
        %2311 = vmatmul.bf16.gmra.mxu0 %v1471
        %v2312 = vpop.f32.mrf.mxu0
        %v2313 = vadd.f32 %v2071, %v2312
        %v2314 = vpop.f32.mrf.mxu0
        %v2315 = vadd.f32 %v2073, %v2314
        %2316 = vmatmul.bf16.gmra.mxu0 %v1472
        %v2317 = vpop.f32.mrf.mxu0
        %v2318 = vadd.f32 %v2075, %v2317
        %v2319 = vpop.f32.mrf.mxu0
        %v2320 = vadd.f32 %v2077, %v2319
        %2321 = vmatmul.bf16.gmra.mxu0 %v1473
        %v2322 = vpop.f32.mrf.mxu0
        %v2323 = vadd.f32 %v2079, %v2322
        %v2324 = vpop.f32.mrf.mxu0
        %v2325 = vadd.f32 %v2081, %v2324
        %2326 = vmatmul.bf16.gmra.mxu0 %v1474
        %v2327 = vpop.f32.mrf.mxu0
        %v2328 = vadd.f32 %v2083, %v2327
        %v2329 = vpop.f32.mrf.mxu0
        %v2330 = vadd.f32 %v2085, %v2329
        %2331 = vmatmul.bf16.gmra.mxu0 %v1475
        %v2332 = vpop.f32.mrf.mxu0
        %v2333 = vadd.f32 %v2087, %v2332
        %v2334 = vpop.f32.mrf.mxu0
        %v2335 = vadd.f32 %v2089, %v2334
        %2336 = vmatmul.bf16.gmra.mxu0 %v1476
        %v2337 = vpop.f32.mrf.mxu0
        %v2338 = vadd.f32 %v2091, %v2337
        %v2339 = vpop.f32.mrf.mxu0
        %v2340 = vadd.f32 %v2093, %v2339
        %2341 = vmatmul.bf16.gmra.mxu0 %v1477
        %v2342 = vpop.f32.mrf.mxu0
        %v2343 = vadd.f32 %v2095, %v2342
        %v2344 = vpop.f32.mrf.mxu0
        %v2345 = vadd.f32 %v2097, %v2344
        %2346 = vmatmul.bf16.gmra.mxu0 %v1478
        %v2347 = vpop.f32.mrf.mxu0
        %v2348 = vadd.f32 %v2099, %v2347
        %v2349 = vpop.f32.mrf.mxu0
        %v2350 = vadd.f32 %v2101, %v2349
        %2351 = vdwg.mxu0
        %2352 = vmatpush.bf16.msra.mxu0 %v2166
        %2353 = vmatpush.bf16.msra.mxu0 %v2164
        %2354 = vmatpush.bf16.msra.mxu0 %v2162
        %2355 = vmatpush.bf16.msra.mxu0 %v2160
        %2356 = vmatpush.bf16.msra.mxu0 %v2158
        %2357 = vmatpush.bf16.msra.mxu0 %v2156
        %2358 = vmatpush.bf16.msra.mxu0 %v2154
        %2359 = vmatpush.bf16.msra.mxu0 %v2152
        %2360 = vmatmul.bf16.gmra.mxu0 %v1447
        %v2361 = vpop.f32.mrf.mxu0
        %v2362 = vadd.f32 %v1976, %v2361
        %v2363 = vpop.f32.mrf.mxu0
        %v2364 = vadd.f32 %v1978, %v2363
        %2365 = vmatmul.bf16.gmra.mxu0 %v1448
        %v2366 = vpop.f32.mrf.mxu0
        %v2367 = vadd.f32 %v1980, %v2366
        %v2368 = vpop.f32.mrf.mxu0
        %v2369 = vadd.f32 %v1982, %v2368
        %2370 = vmatmul.bf16.gmra.mxu0 %v1449
        %v2371 = vpop.f32.mrf.mxu0
        %v2372 = vadd.f32 %v1984, %v2371
        %v2373 = vpop.f32.mrf.mxu0
        %v2374 = vadd.f32 %v1986, %v2373
        %2375 = vmatmul.bf16.gmra.mxu0 %v1450
        %v2376 = vpop.f32.mrf.mxu0
        %v2377 = vadd.f32 %v1988, %v2376
        %v2378 = vpop.f32.mrf.mxu0
        %v2379 = vadd.f32 %v1990, %v2378
        %2380 = vmatmul.bf16.gmra.mxu0 %v1451
        %v2381 = vpop.f32.mrf.mxu0
        %v2382 = vadd.f32 %v1992, %v2381
        %v2383 = vpop.f32.mrf.mxu0
        %v2384 = vadd.f32 %v1994, %v2383
        %2385 = vmatmul.bf16.gmra.mxu0 %v1452
        %v2386 = vpop.f32.mrf.mxu0
        %v2387 = vadd.f32 %v1996, %v2386
        %v2388 = vpop.f32.mrf.mxu0
        %v2389 = vadd.f32 %v1998, %v2388
        %2390 = vmatmul.bf16.gmra.mxu0 %v1453
        %v2391 = vpop.f32.mrf.mxu0
        %v2392 = vadd.f32 %v2000, %v2391
        %v2393 = vpop.f32.mrf.mxu0
        %v2394 = vadd.f32 %v2002, %v2393
        %2395 = vmatmul.bf16.gmra.mxu0 %v1454
        %v2396 = vpop.f32.mrf.mxu0
        %v2397 = vadd.f32 %v2004, %v2396
        %v2398 = vpop.f32.mrf.mxu0
        %v2399 = vadd.f32 %v2006, %v2398
        %2400 = vmatmul.bf16.gmra.mxu0 %v1455
        %v2401 = vpop.f32.mrf.mxu0
        %v2402 = vadd.f32 %v2008, %v2401
        %v2403 = vpop.f32.mrf.mxu0
        %v2404 = vadd.f32 %v2010, %v2403
        %2405 = vmatmul.bf16.gmra.mxu0 %v1456
        %v2406 = vpop.f32.mrf.mxu0
        %v2407 = vadd.f32 %v2012, %v2406
        %v2408 = vpop.f32.mrf.mxu0
        %v2409 = vadd.f32 %v2014, %v2408
        %2410 = vmatmul.bf16.gmra.mxu0 %v1457
        %v2411 = vpop.f32.mrf.mxu0
        %v2412 = vadd.f32 %v2016, %v2411
        %v2413 = vpop.f32.mrf.mxu0
        %v2414 = vadd.f32 %v2018, %v2413
        %2415 = vmatmul.bf16.gmra.mxu0 %v1458
        %v2416 = vpop.f32.mrf.mxu0
        %v2417 = vadd.f32 %v2020, %v2416
        %v2418 = vpop.f32.mrf.mxu0
        %v2419 = vadd.f32 %v2022, %v2418
        %2420 = vmatmul.bf16.gmra.mxu0 %v1459
        %v2421 = vpop.f32.mrf.mxu0
        %v2422 = vadd.f32 %v2024, %v2421
        %v2423 = vpop.f32.mrf.mxu0
        %v2424 = vadd.f32 %v2026, %v2423
        %2425 = vmatmul.bf16.gmra.mxu0 %v1460
        %v2426 = vpop.f32.mrf.mxu0
        %v2427 = vadd.f32 %v2028, %v2426
        %v2428 = vpop.f32.mrf.mxu0
        %v2429 = vadd.f32 %v2030, %v2428
        %2430 = vmatmul.bf16.gmra.mxu0 %v1461
        %v2431 = vpop.f32.mrf.mxu0
        %v2432 = vadd.f32 %v2032, %v2431
        %v2433 = vpop.f32.mrf.mxu0
        %v2434 = vadd.f32 %v2034, %v2433
        %2435 = vmatmul.bf16.gmra.mxu0 %v1462
        %v2436 = vpop.f32.mrf.mxu0
        %v2437 = vadd.f32 %v2036, %v2436
        %v2438 = vpop.f32.mrf.mxu0
        %v2439 = vadd.f32 %v2038, %v2438
        %2440 = vmatmul.bf16.gmra.mxu0 %v1463
        %v2441 = vpop.f32.mrf.mxu0
        %v2442 = vadd.f32 %v2040, %v2441
        %v2443 = vpop.f32.mrf.mxu0
        %v2444 = vadd.f32 %v2042, %v2443
        %2445 = vmatmul.bf16.gmra.mxu0 %v1464
        %v2446 = vpop.f32.mrf.mxu0
        %v2447 = vadd.f32 %v2044, %v2446
        %v2448 = vpop.f32.mrf.mxu0
        %v2449 = vadd.f32 %v2046, %v2448
        %2450 = vmatmul.bf16.gmra.mxu0 %v1465
        %v2451 = vpop.f32.mrf.mxu0
        %v2452 = vadd.f32 %v2048, %v2451
        %v2453 = vpop.f32.mrf.mxu0
        %v2454 = vadd.f32 %v2050, %v2453
        %2455 = vmatmul.bf16.gmra.mxu0 %v1466
        %v2456 = vpop.f32.mrf.mxu0
        %v2457 = vadd.f32 %v2052, %v2456
        %v2458 = vpop.f32.mrf.mxu0
        %v2459 = vadd.f32 %v2054, %v2458
        %2460 = vmatmul.bf16.gmra.mxu0 %v1467
        %v2461 = vpop.f32.mrf.mxu0
        %v2462 = vadd.f32 %v2056, %v2461
        %v2463 = vpop.f32.mrf.mxu0
        %v2464 = vadd.f32 %v2058, %v2463
        %2465 = vmatmul.bf16.gmra.mxu0 %v1468
        %v2466 = vpop.f32.mrf.mxu0
        %v2467 = vadd.f32 %v2060, %v2466
        %v2468 = vpop.f32.mrf.mxu0
        %v2469 = vadd.f32 %v2062, %v2468
        %2470 = vmatmul.bf16.gmra.mxu0 %v1469
        %v2471 = vpop.f32.mrf.mxu0
        %v2472 = vadd.f32 %v2064, %v2471
        %v2473 = vpop.f32.mrf.mxu0
        %v2474 = vadd.f32 %v2066, %v2473
        %2475 = vmatmul.bf16.gmra.mxu0 %v1470
        %v2476 = vpop.f32.mrf.mxu0
        %v2477 = vadd.f32 %v2068, %v2476
        %v2478 = vpop.f32.mrf.mxu0
        %v2479 = vadd.f32 %v2070, %v2478
        %2480 = vmatmul.bf16.gmra.mxu0 %v1471
        %v2481 = vpop.f32.mrf.mxu0
        %v2482 = vadd.f32 %v2072, %v2481
        %v2483 = vpop.f32.mrf.mxu0
        %v2484 = vadd.f32 %v2074, %v2483
        %2485 = vmatmul.bf16.gmra.mxu0 %v1472
        %v2486 = vpop.f32.mrf.mxu0
        %v2487 = vadd.f32 %v2076, %v2486
        %v2488 = vpop.f32.mrf.mxu0
        %v2489 = vadd.f32 %v2078, %v2488
        %2490 = vmatmul.bf16.gmra.mxu0 %v1473
        %v2491 = vpop.f32.mrf.mxu0
        %v2492 = vadd.f32 %v2080, %v2491
        %v2493 = vpop.f32.mrf.mxu0
        %v2494 = vadd.f32 %v2082, %v2493
        %2495 = vmatmul.bf16.gmra.mxu0 %v1474
        %v2496 = vpop.f32.mrf.mxu0
        %v2497 = vadd.f32 %v2084, %v2496
        %v2498 = vpop.f32.mrf.mxu0
        %v2499 = vadd.f32 %v2086, %v2498
        %2500 = vmatmul.bf16.gmra.mxu0 %v1475
        %v2501 = vpop.f32.mrf.mxu0
        %v2502 = vadd.f32 %v2088, %v2501
        %v2503 = vpop.f32.mrf.mxu0
        %v2504 = vadd.f32 %v2090, %v2503
        %2505 = vmatmul.bf16.gmra.mxu0 %v1476
        %v2506 = vpop.f32.mrf.mxu0
        %v2507 = vadd.f32 %v2092, %v2506
        %v2508 = vpop.f32.mrf.mxu0
        %v2509 = vadd.f32 %v2094, %v2508
        %2510 = vmatmul.bf16.gmra.mxu0 %v1477
        %v2511 = vpop.f32.mrf.mxu0
        %v2512 = vadd.f32 %v2096, %v2511
        %v2513 = vpop.f32.mrf.mxu0
        %v2514 = vadd.f32 %v2098, %v2513
        %2515 = vmatmul.bf16.gmra.mxu0 %v1478
        %v2516 = vpop.f32.mrf.mxu0
        %v2517 = vadd.f32 %v2100, %v2516
        %v2518 = vpop.f32.mrf.mxu0
        %v2519 = vadd.f32 %v2102, %v2518
        %2520 = vdwg.mxu0
        %v2521 = vmax.f32 %v2193, 0.0
        %v2522 = vmax.f32 %v2362, 0.0
        %v2523 = vmax.f32 %v2195, 0.0
        %v2524 = vmax.f32 %v2364, 0.0
        %v2525 = vmax.f32 %v2198, 0.0
        %v2526 = vmax.f32 %v2367, 0.0
        %v2527 = vmax.f32 %v2200, 0.0
        %v2528 = vmax.f32 %v2369, 0.0
        %v2529 = vmax.f32 %v2203, 0.0
        %v2530 = vmax.f32 %v2372, 0.0
        %v2531 = vmax.f32 %v2205, 0.0
        %v2532 = vmax.f32 %v2374, 0.0
        %v2533 = vmax.f32 %v2208, 0.0
        %v2534 = vmax.f32 %v2377, 0.0
        %v2535 = vmax.f32 %v2210, 0.0
        %v2536 = vmax.f32 %v2379, 0.0
        %v2537 = vmax.f32 %v2213, 0.0
        %v2538 = vmax.f32 %v2382, 0.0
        %v2539 = vmax.f32 %v2215, 0.0
        %v2540 = vmax.f32 %v2384, 0.0
        %v2541 = vmax.f32 %v2218, 0.0
        %v2542 = vmax.f32 %v2387, 0.0
        %v2543 = vmax.f32 %v2220, 0.0
        %v2544 = vmax.f32 %v2389, 0.0
        %v2545 = vmax.f32 %v2223, 0.0
        %v2546 = vmax.f32 %v2392, 0.0
        %v2547 = vmax.f32 %v2225, 0.0
        %v2548 = vmax.f32 %v2394, 0.0
        %v2549 = vmax.f32 %v2228, 0.0
        %v2550 = vmax.f32 %v2397, 0.0
        %v2551 = vmax.f32 %v2230, 0.0
        %v2552 = vmax.f32 %v2399, 0.0
        %v2553 = vmax.f32 %v2233, 0.0
        %v2554 = vmax.f32 %v2402, 0.0
        %v2555 = vmax.f32 %v2235, 0.0
        %v2556 = vmax.f32 %v2404, 0.0
        %v2557 = vmax.f32 %v2238, 0.0
        %v2558 = vmax.f32 %v2407, 0.0
        %v2559 = vmax.f32 %v2240, 0.0
        %v2560 = vmax.f32 %v2409, 0.0
        %v2561 = vmax.f32 %v2243, 0.0
        %v2562 = vmax.f32 %v2412, 0.0
        %v2563 = vmax.f32 %v2245, 0.0
        %v2564 = vmax.f32 %v2414, 0.0
        %v2565 = vmax.f32 %v2248, 0.0
        %v2566 = vmax.f32 %v2417, 0.0
        %v2567 = vmax.f32 %v2250, 0.0
        %v2568 = vmax.f32 %v2419, 0.0
        %v2569 = vmax.f32 %v2253, 0.0
        %v2570 = vmax.f32 %v2422, 0.0
        %v2571 = vmax.f32 %v2255, 0.0
        %v2572 = vmax.f32 %v2424, 0.0
        %v2573 = vmax.f32 %v2258, 0.0
        %v2574 = vmax.f32 %v2427, 0.0
        %v2575 = vmax.f32 %v2260, 0.0
        %v2576 = vmax.f32 %v2429, 0.0
        %v2577 = vmax.f32 %v2263, 0.0
        %v2578 = vmax.f32 %v2432, 0.0
        %v2579 = vmax.f32 %v2265, 0.0
        %v2580 = vmax.f32 %v2434, 0.0
        %v2581 = vmax.f32 %v2268, 0.0
        %v2582 = vmax.f32 %v2437, 0.0
        %v2583 = vmax.f32 %v2270, 0.0
        %v2584 = vmax.f32 %v2439, 0.0
        %v2585 = vmax.f32 %v2273, 0.0
        %v2586 = vmax.f32 %v2442, 0.0
        %v2587 = vmax.f32 %v2275, 0.0
        %v2588 = vmax.f32 %v2444, 0.0
        %v2589 = vmax.f32 %v2278, 0.0
        %v2590 = vmax.f32 %v2447, 0.0
        %v2591 = vmax.f32 %v2280, 0.0
        %v2592 = vmax.f32 %v2449, 0.0
        %v2593 = vmax.f32 %v2283, 0.0
        %v2594 = vmax.f32 %v2452, 0.0
        %v2595 = vmax.f32 %v2285, 0.0
        %v2596 = vmax.f32 %v2454, 0.0
        %v2597 = vmax.f32 %v2288, 0.0
        %v2598 = vmax.f32 %v2457, 0.0
        %v2599 = vmax.f32 %v2290, 0.0
        %v2600 = vmax.f32 %v2459, 0.0
        %v2601 = vmax.f32 %v2293, 0.0
        %v2602 = vmax.f32 %v2462, 0.0
        %v2603 = vmax.f32 %v2295, 0.0
        %v2604 = vmax.f32 %v2464, 0.0
        %v2605 = vmax.f32 %v2298, 0.0
        %v2606 = vmax.f32 %v2467, 0.0
        %v2607 = vmax.f32 %v2300, 0.0
        %v2608 = vmax.f32 %v2469, 0.0
        %v2609 = vmax.f32 %v2303, 0.0
        %v2610 = vmax.f32 %v2472, 0.0
        %v2611 = vmax.f32 %v2305, 0.0
        %v2612 = vmax.f32 %v2474, 0.0
        %v2613 = vmax.f32 %v2308, 0.0
        %v2614 = vmax.f32 %v2477, 0.0
        %v2615 = vmax.f32 %v2310, 0.0
        %v2616 = vmax.f32 %v2479, 0.0
        %v2617 = vmax.f32 %v2313, 0.0
        %v2618 = vmax.f32 %v2482, 0.0
        %v2619 = vmax.f32 %v2315, 0.0
        %v2620 = vmax.f32 %v2484, 0.0
        %v2621 = vmax.f32 %v2318, 0.0
        %v2622 = vmax.f32 %v2487, 0.0
        %v2623 = vmax.f32 %v2320, 0.0
        %v2624 = vmax.f32 %v2489, 0.0
        %v2625 = vmax.f32 %v2323, 0.0
        %v2626 = vmax.f32 %v2492, 0.0
        %v2627 = vmax.f32 %v2325, 0.0
        %v2628 = vmax.f32 %v2494, 0.0
        %v2629 = vmax.f32 %v2328, 0.0
        %v2630 = vmax.f32 %v2497, 0.0
        %v2631 = vmax.f32 %v2330, 0.0
        %v2632 = vmax.f32 %v2499, 0.0
        %v2633 = vmax.f32 %v2333, 0.0
        %v2634 = vmax.f32 %v2502, 0.0
        %v2635 = vmax.f32 %v2335, 0.0
        %v2636 = vmax.f32 %v2504, 0.0
        %v2637 = vmax.f32 %v2338, 0.0
        %v2638 = vmax.f32 %v2507, 0.0
        %v2639 = vmax.f32 %v2340, 0.0
        %v2640 = vmax.f32 %v2509, 0.0
        %v2641 = vmax.f32 %v2343, 0.0
        %v2642 = vmax.f32 %v2512, 0.0
        %v2643 = vmax.f32 %v2345, 0.0
        %v2644 = vmax.f32 %v2514, 0.0
        %v2645 = vmax.f32 %v2348, 0.0
        %v2646 = vmax.f32 %v2517, 0.0
        %v2647 = vmax.f32 %v2350, 0.0
        %v2648 = vmax.f32 %v2519, 0.0
        %v2649 = vld [vmem:[#allocation4] sm:$0xff]
        %v2650 = vld [vmem:[#allocation4 + $0x8] sm:$0xff]
        %v2651 = vld [vmem:[#allocation4 + $0x10] sm:$0xff]
        %v2652 = vld [vmem:[#allocation4 + $0x18] sm:$0xff]
        %v2653 = vld [vmem:[#allocation4 + $0x20] sm:$0xff]
        %v2654 = vld [vmem:[#allocation4 + $0x28] sm:$0xff]
        %v2655 = vld [vmem:[#allocation4 + $0x30] sm:$0xff]
        %v2656 = vld [vmem:[#allocation4 + $0x38] sm:$0xff]
        %v2657 = vld [vmem:[#allocation4 + $0x40] sm:$0xff]
        %v2658 = vld [vmem:[#allocation4 + $0x48] sm:$0xff]
        %v2659 = vld [vmem:[#allocation4 + $0x50] sm:$0xff]
        %v2660 = vld [vmem:[#allocation4 + $0x58] sm:$0xff]
        %v2661 = vld [vmem:[#allocation4 + $0x60] sm:$0xff]
        %v2662 = vld [vmem:[#allocation4 + $0x68] sm:$0xff]
        %v2663 = vld [vmem:[#allocation4 + $0x70] sm:$0xff]
        %v2664 = vld [vmem:[#allocation4 + $0x78] sm:$0xff]
        %v2665 = vld [vmem:[#allocation4 + $0x80] sm:$0xff]
        %v2666 = vld [vmem:[#allocation4 + $0x88] sm:$0xff]
        %v2667 = vld [vmem:[#allocation4 + $0x90] sm:$0xff]
        %v2668 = vld [vmem:[#allocation4 + $0x98] sm:$0xff]
        %v2669 = vld [vmem:[#allocation4 + $0xa0] sm:$0xff]
        %v2670 = vld [vmem:[#allocation4 + $0xa8] sm:$0xff]
        %v2671 = vld [vmem:[#allocation4 + $0xb0] sm:$0xff]
        %v2672 = vld [vmem:[#allocation4 + $0xb8] sm:$0xff]
        %v2673 = vld [vmem:[#allocation4 + $0xc0] sm:$0xff]
        %v2674 = vld [vmem:[#allocation4 + $0xc8] sm:$0xff]
        %v2675 = vld [vmem:[#allocation4 + $0xd0] sm:$0xff]
        %v2676 = vld [vmem:[#allocation4 + $0xd8] sm:$0xff]
        %v2677 = vld [vmem:[#allocation4 + $0xe0] sm:$0xff]
        %v2678 = vld [vmem:[#allocation4 + $0xe8] sm:$0xff]
        %v2679 = vld [vmem:[#allocation4 + $0xf0] sm:$0xff]
        %v2680 = vld [vmem:[#allocation4 + $0xf8] sm:$0xff]
        %v2681 = vpack.c.bf16 %v2523, %v2521
        %v2682 = vpack.c.bf16 %v2524, %v2522
        %v2683 = vpack.c.bf16 %v2527, %v2525
        %v2684 = vpack.c.bf16 %v2528, %v2526
        %v2685 = vpack.c.bf16 %v2531, %v2529
        %v2686 = vpack.c.bf16 %v2532, %v2530
        %v2687 = vpack.c.bf16 %v2535, %v2533
        %v2688 = vpack.c.bf16 %v2536, %v2534
        %v2689 = vpack.c.bf16 %v2539, %v2537
        %v2690 = vpack.c.bf16 %v2540, %v2538
        %v2691 = vpack.c.bf16 %v2543, %v2541
        %v2692 = vpack.c.bf16 %v2544, %v2542
        %v2693 = vpack.c.bf16 %v2547, %v2545
        %v2694 = vpack.c.bf16 %v2548, %v2546
        %v2695 = vpack.c.bf16 %v2551, %v2549
        %v2696 = vpack.c.bf16 %v2552, %v2550
        %v2697 = vpack.c.bf16 %v2555, %v2553
        %v2698 = vpack.c.bf16 %v2556, %v2554
        %v2699 = vpack.c.bf16 %v2559, %v2557
        %v2700 = vpack.c.bf16 %v2560, %v2558
        %v2701 = vpack.c.bf16 %v2563, %v2561
        %v2702 = vpack.c.bf16 %v2564, %v2562
        %v2703 = vpack.c.bf16 %v2567, %v2565
        %v2704 = vpack.c.bf16 %v2568, %v2566
        %v2705 = vpack.c.bf16 %v2571, %v2569
        %v2706 = vpack.c.bf16 %v2572, %v2570
        %v2707 = vpack.c.bf16 %v2575, %v2573
        %v2708 = vpack.c.bf16 %v2576, %v2574
        %v2709 = vpack.c.bf16 %v2579, %v2577
        %v2710 = vpack.c.bf16 %v2580, %v2578
        %v2711 = vpack.c.bf16 %v2583, %v2581
        %v2712 = vpack.c.bf16 %v2584, %v2582
        %v2713 = vpack.c.bf16 %v2587, %v2585
        %v2714 = vpack.c.bf16 %v2588, %v2586
        %v2715 = vpack.c.bf16 %v2591, %v2589
        %v2716 = vpack.c.bf16 %v2592, %v2590
        %v2717 = vpack.c.bf16 %v2595, %v2593
        %v2718 = vpack.c.bf16 %v2596, %v2594
        %v2719 = vpack.c.bf16 %v2599, %v2597
        %v2720 = vpack.c.bf16 %v2600, %v2598
        %v2721 = vpack.c.bf16 %v2603, %v2601
        %v2722 = vpack.c.bf16 %v2604, %v2602
        %v2723 = vpack.c.bf16 %v2607, %v2605
        %v2724 = vpack.c.bf16 %v2608, %v2606
        %v2725 = vpack.c.bf16 %v2611, %v2609
        %v2726 = vpack.c.bf16 %v2612, %v2610
        %v2727 = vpack.c.bf16 %v2615, %v2613
        %v2728 = vpack.c.bf16 %v2616, %v2614
        %v2729 = vpack.c.bf16 %v2619, %v2617
        %v2730 = vpack.c.bf16 %v2620, %v2618
        %v2731 = vpack.c.bf16 %v2623, %v2621
        %v2732 = vpack.c.bf16 %v2624, %v2622
        %v2733 = vpack.c.bf16 %v2627, %v2625
        %v2734 = vpack.c.bf16 %v2628, %v2626
        %v2735 = vpack.c.bf16 %v2631, %v2629
        %v2736 = vpack.c.bf16 %v2632, %v2630
        %v2737 = vpack.c.bf16 %v2635, %v2633
        %v2738 = vpack.c.bf16 %v2636, %v2634
        %v2739 = vpack.c.bf16 %v2639, %v2637
        %v2740 = vpack.c.bf16 %v2640, %v2638
        %v2741 = vpack.c.bf16 %v2643, %v2641
        %v2742 = vpack.c.bf16 %v2644, %v2642
        %v2743 = vpack.c.bf16 %v2647, %v2645
        %v2744 = vpack.c.bf16 %v2648, %v2646
        %2745 = vxpose.xlu0.c.b16.start [1/8] %v1927, 128
        %2746 = vxpose.xlu0.c.b16.cont [2/8] %v1928, 128
        %2747 = vxpose.xlu0.c.b16.cont [3/8] %v1929, 128
        %2748 = vxpose.xlu0.c.b16.cont [4/8] %v1930, 128
        %2749 = vxpose.xlu0.c.b16.cont [5/8] %v1931, 128
        %2750 = vxpose.xlu0.c.b16.cont [6/8] %v1932, 128
        %2751 = vxpose.xlu0.c.b16.cont [7/8] %v1933, 128
        %2752 = vxpose.xlu0.c.b16.end [8/8] %v1934, 128
        %v2753 = vpop.trf.xlu0
        %v2754 = vpop.trf.xlu0
        %v2755 = vpop.trf.xlu0
        %v2756 = vpop.trf.xlu0
        %v2757 = vpop.trf.xlu0
        %v2758 = vpop.trf.xlu0
        %v2759 = vpop.trf.xlu0
        %v2760 = vpop.trf.xlu0
        %2761 = vxpose.xlu0.c.b16.start [1/8] %v1935, 128
        %2762 = vxpose.xlu0.c.b16.cont [2/8] %v1936, 128
        %2763 = vxpose.xlu0.c.b16.cont [3/8] %v1937, 128
        %2764 = vxpose.xlu0.c.b16.cont [4/8] %v1938, 128
        %2765 = vxpose.xlu0.c.b16.cont [5/8] %v1939, 128
        %2766 = vxpose.xlu0.c.b16.cont [6/8] %v1940, 128
        %2767 = vxpose.xlu0.c.b16.cont [7/8] %v1941, 128
        %2768 = vxpose.xlu0.c.b16.end [8/8] %v1942, 128
        %v2769 = vpop.trf.xlu0
        %v2770 = vpop.trf.xlu0
        %v2771 = vpop.trf.xlu0
        %v2772 = vpop.trf.xlu0
        %v2773 = vpop.trf.xlu0
        %v2774 = vpop.trf.xlu0
        %v2775 = vpop.trf.xlu0
        %v2776 = vpop.trf.xlu0
        %2777 = vxpose.xlu0.c.b16.start [1/8] %v1943, 128
        %2778 = vxpose.xlu0.c.b16.cont [2/8] %v1944, 128
        %2779 = vxpose.xlu0.c.b16.cont [3/8] %v1945, 128
        %2780 = vxpose.xlu0.c.b16.cont [4/8] %v1946, 128
        %2781 = vxpose.xlu0.c.b16.cont [5/8] %v1947, 128
        %2782 = vxpose.xlu0.c.b16.cont [6/8] %v1948, 128
        %2783 = vxpose.xlu0.c.b16.cont [7/8] %v1949, 128
        %2784 = vxpose.xlu0.c.b16.end [8/8] %v1950, 128
        %v2785 = vpop.trf.xlu0
        %v2786 = vpop.trf.xlu0
        %v2787 = vpop.trf.xlu0
        %v2788 = vpop.trf.xlu0
        %v2789 = vpop.trf.xlu0
        %v2790 = vpop.trf.xlu0
        %v2791 = vpop.trf.xlu0
        %v2792 = vpop.trf.xlu0
        %2793 = vxpose.xlu0.c.b16.start [1/8] %v1951, 128
        %2794 = vxpose.xlu0.c.b16.cont [2/8] %v1952, 128
        %2795 = vxpose.xlu0.c.b16.cont [3/8] %v1953, 128
        %2796 = vxpose.xlu0.c.b16.cont [4/8] %v1954, 128
        %2797 = vxpose.xlu0.c.b16.cont [5/8] %v1955, 128
        %2798 = vxpose.xlu0.c.b16.cont [6/8] %v1956, 128
        %2799 = vxpose.xlu0.c.b16.cont [7/8] %v1957, 128
        %2800 = vxpose.xlu0.c.b16.end [8/8] %v1958, 128
        %v2801 = vpop.trf.xlu0
        %v2802 = vpop.trf.xlu0
        %v2803 = vpop.trf.xlu0
        %v2804 = vpop.trf.xlu0
        %v2805 = vpop.trf.xlu0
        %v2806 = vpop.trf.xlu0
        %v2807 = vpop.trf.xlu0
        %v2808 = vpop.trf.xlu0
        %2809 = vmatpush.bf16.msra.mxu0 %v2695
        %2810 = vmatpush.bf16.msra.mxu0 %v2693
        %2811 = vmatpush.bf16.msra.mxu0 %v2691
        %2812 = vmatpush.bf16.msra.mxu0 %v2689
        %2813 = vmatpush.bf16.msra.mxu0 %v2687
        %2814 = vmatpush.bf16.msra.mxu0 %v2685
        %2815 = vmatpush.bf16.msra.mxu0 %v2683
        %2816 = vmatpush.bf16.msra.mxu0 %v2681
        %2817 = vmatmul.bf16.gmra.mxu0 %v2753
        %v2818 = vpop.f32.mrf.mxu0
        %v2819 = vadd.f32 0.0, %v2818
        %v2820 = vpop.f32.mrf.mxu0
        %v2821 = vadd.f32 0.0, %v2820
        %2822 = vmatmul.bf16.gmra.mxu0 %v2754
        %v2823 = vpop.f32.mrf.mxu0
        %v2824 = vadd.f32 0.0, %v2823
        %v2825 = vpop.f32.mrf.mxu0
        %v2826 = vadd.f32 0.0, %v2825
        %2827 = vmatmul.bf16.gmra.mxu0 %v2755
        %v2828 = vpop.f32.mrf.mxu0
        %v2829 = vadd.f32 0.0, %v2828
        %v2830 = vpop.f32.mrf.mxu0
        %v2831 = vadd.f32 0.0, %v2830
        %2832 = vmatmul.bf16.gmra.mxu0 %v2756
        %v2833 = vpop.f32.mrf.mxu0
        %v2834 = vadd.f32 0.0, %v2833
        %v2835 = vpop.f32.mrf.mxu0
        %v2836 = vadd.f32 0.0, %v2835
        %2837 = vmatmul.bf16.gmra.mxu0 %v2757
        %v2838 = vpop.f32.mrf.mxu0
        %v2839 = vadd.f32 0.0, %v2838
        %v2840 = vpop.f32.mrf.mxu0
        %v2841 = vadd.f32 0.0, %v2840
        %2842 = vmatmul.bf16.gmra.mxu0 %v2758
        %v2843 = vpop.f32.mrf.mxu0
        %v2844 = vadd.f32 0.0, %v2843
        %v2845 = vpop.f32.mrf.mxu0
        %v2846 = vadd.f32 0.0, %v2845
        %2847 = vmatmul.bf16.gmra.mxu0 %v2759
        %v2848 = vpop.f32.mrf.mxu0
        %v2849 = vadd.f32 0.0, %v2848
        %v2850 = vpop.f32.mrf.mxu0
        %v2851 = vadd.f32 0.0, %v2850
        %2852 = vmatmul.bf16.gmra.mxu0 %v2760
        %v2853 = vpop.f32.mrf.mxu0
        %v2854 = vadd.f32 0.0, %v2853
        %v2855 = vpop.f32.mrf.mxu0
        %v2856 = vadd.f32 0.0, %v2855
        %2857 = vdwg.mxu0
        %2858 = vmatpush.bf16.msra.mxu0 %v2711
        %2859 = vmatpush.bf16.msra.mxu0 %v2709
        %2860 = vmatpush.bf16.msra.mxu0 %v2707
        %2861 = vmatpush.bf16.msra.mxu0 %v2705
        %2862 = vmatpush.bf16.msra.mxu0 %v2703
        %2863 = vmatpush.bf16.msra.mxu0 %v2701
        %2864 = vmatpush.bf16.msra.mxu0 %v2699
        %2865 = vmatpush.bf16.msra.mxu0 %v2697
        %2866 = vmatmul.bf16.gmra.mxu0 %v2769
        %v2867 = vpop.f32.mrf.mxu0
        %v2868 = vadd.f32 %v2819, %v2867
        %v2869 = vpop.f32.mrf.mxu0
        %v2870 = vadd.f32 %v2821, %v2869
        %2871 = vmatmul.bf16.gmra.mxu0 %v2770
        %v2872 = vpop.f32.mrf.mxu0
        %v2873 = vadd.f32 %v2824, %v2872
        %v2874 = vpop.f32.mrf.mxu0
        %v2875 = vadd.f32 %v2826, %v2874
        %2876 = vmatmul.bf16.gmra.mxu0 %v2771
        %v2877 = vpop.f32.mrf.mxu0
        %v2878 = vadd.f32 %v2829, %v2877
        %v2879 = vpop.f32.mrf.mxu0
        %v2880 = vadd.f32 %v2831, %v2879
        %2881 = vmatmul.bf16.gmra.mxu0 %v2772
        %v2882 = vpop.f32.mrf.mxu0
        %v2883 = vadd.f32 %v2834, %v2882
        %v2884 = vpop.f32.mrf.mxu0
        %v2885 = vadd.f32 %v2836, %v2884
        %2886 = vmatmul.bf16.gmra.mxu0 %v2773
        %v2887 = vpop.f32.mrf.mxu0
        %v2888 = vadd.f32 %v2839, %v2887
        %v2889 = vpop.f32.mrf.mxu0
        %v2890 = vadd.f32 %v2841, %v2889
        %2891 = vmatmul.bf16.gmra.mxu0 %v2774
        %v2892 = vpop.f32.mrf.mxu0
        %v2893 = vadd.f32 %v2844, %v2892
        %v2894 = vpop.f32.mrf.mxu0
        %v2895 = vadd.f32 %v2846, %v2894
        %2896 = vmatmul.bf16.gmra.mxu0 %v2775
        %v2897 = vpop.f32.mrf.mxu0
        %v2898 = vadd.f32 %v2849, %v2897
        %v2899 = vpop.f32.mrf.mxu0
        %v2900 = vadd.f32 %v2851, %v2899
        %2901 = vmatmul.bf16.gmra.mxu0 %v2776
        %v2902 = vpop.f32.mrf.mxu0
        %v2903 = vadd.f32 %v2854, %v2902
        %v2904 = vpop.f32.mrf.mxu0
        %v2905 = vadd.f32 %v2856, %v2904
        %2906 = vdwg.mxu0
        %2907 = vmatpush.bf16.msra.mxu0 %v2727
        %2908 = vmatpush.bf16.msra.mxu0 %v2725
        %2909 = vmatpush.bf16.msra.mxu0 %v2723
        %2910 = vmatpush.bf16.msra.mxu0 %v2721
        %2911 = vmatpush.bf16.msra.mxu0 %v2719
        %2912 = vmatpush.bf16.msra.mxu0 %v2717
        %2913 = vmatpush.bf16.msra.mxu0 %v2715
        %2914 = vmatpush.bf16.msra.mxu0 %v2713
        %2915 = vmatmul.bf16.gmra.mxu0 %v2785
        %v2916 = vpop.f32.mrf.mxu0
        %v2917 = vadd.f32 %v2868, %v2916
        %v2918 = vpop.f32.mrf.mxu0
        %v2919 = vadd.f32 %v2870, %v2918
        %2920 = vmatmul.bf16.gmra.mxu0 %v2786
        %v2921 = vpop.f32.mrf.mxu0
        %v2922 = vadd.f32 %v2873, %v2921
        %v2923 = vpop.f32.mrf.mxu0
        %v2924 = vadd.f32 %v2875, %v2923
        %2925 = vmatmul.bf16.gmra.mxu0 %v2787
        %v2926 = vpop.f32.mrf.mxu0
        %v2927 = vadd.f32 %v2878, %v2926
        %v2928 = vpop.f32.mrf.mxu0
        %v2929 = vadd.f32 %v2880, %v2928
        %2930 = vmatmul.bf16.gmra.mxu0 %v2788
        %v2931 = vpop.f32.mrf.mxu0
        %v2932 = vadd.f32 %v2883, %v2931
        %v2933 = vpop.f32.mrf.mxu0
        %v2934 = vadd.f32 %v2885, %v2933
        %2935 = vmatmul.bf16.gmra.mxu0 %v2789
        %v2936 = vpop.f32.mrf.mxu0
        %v2937 = vadd.f32 %v2888, %v2936
        %v2938 = vpop.f32.mrf.mxu0
        %v2939 = vadd.f32 %v2890, %v2938
        %2940 = vmatmul.bf16.gmra.mxu0 %v2790
        %v2941 = vpop.f32.mrf.mxu0
        %v2942 = vadd.f32 %v2893, %v2941
        %v2943 = vpop.f32.mrf.mxu0
        %v2944 = vadd.f32 %v2895, %v2943
        %2945 = vmatmul.bf16.gmra.mxu0 %v2791
        %v2946 = vpop.f32.mrf.mxu0
        %v2947 = vadd.f32 %v2898, %v2946
        %v2948 = vpop.f32.mrf.mxu0
        %v2949 = vadd.f32 %v2900, %v2948
        %2950 = vmatmul.bf16.gmra.mxu0 %v2792
        %v2951 = vpop.f32.mrf.mxu0
        %v2952 = vadd.f32 %v2903, %v2951
        %v2953 = vpop.f32.mrf.mxu0
        %v2954 = vadd.f32 %v2905, %v2953
        %2955 = vdwg.mxu0
        %2956 = vmatpush.bf16.msra.mxu0 %v2743
        %2957 = vmatpush.bf16.msra.mxu0 %v2741
        %2958 = vmatpush.bf16.msra.mxu0 %v2739
        %2959 = vmatpush.bf16.msra.mxu0 %v2737
        %2960 = vmatpush.bf16.msra.mxu0 %v2735
        %2961 = vmatpush.bf16.msra.mxu0 %v2733
        %2962 = vmatpush.bf16.msra.mxu0 %v2731
        %2963 = vmatpush.bf16.msra.mxu0 %v2729
        %2964 = vmatmul.bf16.gmra.mxu0 %v2801
        %v2965 = vpop.f32.mrf.mxu0
        %v2966 = vadd.f32 %v2917, %v2965
        %v2967 = vpop.f32.mrf.mxu0
        %v2968 = vadd.f32 %v2919, %v2967
        %2969 = vmatmul.bf16.gmra.mxu0 %v2802
        %v2970 = vpop.f32.mrf.mxu0
        %v2971 = vadd.f32 %v2922, %v2970
        %v2972 = vpop.f32.mrf.mxu0
        %v2973 = vadd.f32 %v2924, %v2972
        %2974 = vmatmul.bf16.gmra.mxu0 %v2803
        %v2975 = vpop.f32.mrf.mxu0
        %v2976 = vadd.f32 %v2927, %v2975
        %v2977 = vpop.f32.mrf.mxu0
        %v2978 = vadd.f32 %v2929, %v2977
        %2979 = vmatmul.bf16.gmra.mxu0 %v2804
        %v2980 = vpop.f32.mrf.mxu0
        %v2981 = vadd.f32 %v2932, %v2980
        %v2982 = vpop.f32.mrf.mxu0
        %v2983 = vadd.f32 %v2934, %v2982
        %2984 = vmatmul.bf16.gmra.mxu0 %v2805
        %v2985 = vpop.f32.mrf.mxu0
        %v2986 = vadd.f32 %v2937, %v2985
        %v2987 = vpop.f32.mrf.mxu0
        %v2988 = vadd.f32 %v2939, %v2987
        %2989 = vmatmul.bf16.gmra.mxu0 %v2806
        %v2990 = vpop.f32.mrf.mxu0
        %v2991 = vadd.f32 %v2942, %v2990
        %v2992 = vpop.f32.mrf.mxu0
        %v2993 = vadd.f32 %v2944, %v2992
        %2994 = vmatmul.bf16.gmra.mxu0 %v2807
        %v2995 = vpop.f32.mrf.mxu0
        %v2996 = vadd.f32 %v2947, %v2995
        %v2997 = vpop.f32.mrf.mxu0
        %v2998 = vadd.f32 %v2949, %v2997
        %2999 = vmatmul.bf16.gmra.mxu0 %v2808
        %v3000 = vpop.f32.mrf.mxu0
        %v3001 = vadd.f32 %v2952, %v3000
        %v3002 = vpop.f32.mrf.mxu0
        %v3003 = vadd.f32 %v2954, %v3002
        %3004 = vdwg.mxu0
        %3005 = vmatpush.bf16.msra.mxu0 %v2696
        %3006 = vmatpush.bf16.msra.mxu0 %v2694
        %3007 = vmatpush.bf16.msra.mxu0 %v2692
        %3008 = vmatpush.bf16.msra.mxu0 %v2690
        %3009 = vmatpush.bf16.msra.mxu0 %v2688
        %3010 = vmatpush.bf16.msra.mxu0 %v2686
        %3011 = vmatpush.bf16.msra.mxu0 %v2684
        %3012 = vmatpush.bf16.msra.mxu0 %v2682
        %3013 = vmatmul.bf16.gmra.mxu0 %v2753
        %v3014 = vpop.f32.mrf.mxu0
        %v3015 = vadd.f32 0.0, %v3014
        %v3016 = vpop.f32.mrf.mxu0
        %v3017 = vadd.f32 0.0, %v3016
        %3018 = vmatmul.bf16.gmra.mxu0 %v2754
        %v3019 = vpop.f32.mrf.mxu0
        %v3020 = vadd.f32 0.0, %v3019
        %v3021 = vpop.f32.mrf.mxu0
        %v3022 = vadd.f32 0.0, %v3021
        %3023 = vmatmul.bf16.gmra.mxu0 %v2755
        %v3024 = vpop.f32.mrf.mxu0
        %v3025 = vadd.f32 0.0, %v3024
        %v3026 = vpop.f32.mrf.mxu0
        %v3027 = vadd.f32 0.0, %v3026
        %3028 = vmatmul.bf16.gmra.mxu0 %v2756
        %v3029 = vpop.f32.mrf.mxu0
        %v3030 = vadd.f32 0.0, %v3029
        %v3031 = vpop.f32.mrf.mxu0
        %v3032 = vadd.f32 0.0, %v3031
        %3033 = vmatmul.bf16.gmra.mxu0 %v2757
        %v3034 = vpop.f32.mrf.mxu0
        %v3035 = vadd.f32 0.0, %v3034
        %v3036 = vpop.f32.mrf.mxu0
        %v3037 = vadd.f32 0.0, %v3036
        %3038 = vmatmul.bf16.gmra.mxu0 %v2758
        %v3039 = vpop.f32.mrf.mxu0
        %v3040 = vadd.f32 0.0, %v3039
        %v3041 = vpop.f32.mrf.mxu0
        %v3042 = vadd.f32 0.0, %v3041
        %3043 = vmatmul.bf16.gmra.mxu0 %v2759
        %v3044 = vpop.f32.mrf.mxu0
        %v3045 = vadd.f32 0.0, %v3044
        %v3046 = vpop.f32.mrf.mxu0
        %v3047 = vadd.f32 0.0, %v3046
        %3048 = vmatmul.bf16.gmra.mxu0 %v2760
        %v3049 = vpop.f32.mrf.mxu0
        %v3050 = vadd.f32 0.0, %v3049
        %v3051 = vpop.f32.mrf.mxu0
        %v3052 = vadd.f32 0.0, %v3051
        %3053 = vdwg.mxu0
        %3054 = vmatpush.bf16.msra.mxu0 %v2712
        %3055 = vmatpush.bf16.msra.mxu0 %v2710
        %3056 = vmatpush.bf16.msra.mxu0 %v2708
        %3057 = vmatpush.bf16.msra.mxu0 %v2706
        %3058 = vmatpush.bf16.msra.mxu0 %v2704
        %3059 = vmatpush.bf16.msra.mxu0 %v2702
        %3060 = vmatpush.bf16.msra.mxu0 %v2700
        %3061 = vmatpush.bf16.msra.mxu0 %v2698
        %3062 = vmatmul.bf16.gmra.mxu0 %v2769
        %v3063 = vpop.f32.mrf.mxu0
        %v3064 = vadd.f32 %v3015, %v3063
        %v3065 = vpop.f32.mrf.mxu0
        %v3066 = vadd.f32 %v3017, %v3065
        %3067 = vmatmul.bf16.gmra.mxu0 %v2770
        %v3068 = vpop.f32.mrf.mxu0
        %v3069 = vadd.f32 %v3020, %v3068
        %v3070 = vpop.f32.mrf.mxu0
        %v3071 = vadd.f32 %v3022, %v3070
        %3072 = vmatmul.bf16.gmra.mxu0 %v2771
        %v3073 = vpop.f32.mrf.mxu0
        %v3074 = vadd.f32 %v3025, %v3073
        %v3075 = vpop.f32.mrf.mxu0
        %v3076 = vadd.f32 %v3027, %v3075
        %3077 = vmatmul.bf16.gmra.mxu0 %v2772
        %v3078 = vpop.f32.mrf.mxu0
        %v3079 = vadd.f32 %v3030, %v3078
        %v3080 = vpop.f32.mrf.mxu0
        %v3081 = vadd.f32 %v3032, %v3080
        %3082 = vmatmul.bf16.gmra.mxu0 %v2773
        %v3083 = vpop.f32.mrf.mxu0
        %v3084 = vadd.f32 %v3035, %v3083
        %v3085 = vpop.f32.mrf.mxu0
        %v3086 = vadd.f32 %v3037, %v3085
        %3087 = vmatmul.bf16.gmra.mxu0 %v2774
        %v3088 = vpop.f32.mrf.mxu0
        %v3089 = vadd.f32 %v3040, %v3088
        %v3090 = vpop.f32.mrf.mxu0
        %v3091 = vadd.f32 %v3042, %v3090
        %3092 = vmatmul.bf16.gmra.mxu0 %v2775
        %v3093 = vpop.f32.mrf.mxu0
        %v3094 = vadd.f32 %v3045, %v3093
        %v3095 = vpop.f32.mrf.mxu0
        %v3096 = vadd.f32 %v3047, %v3095
        %3097 = vmatmul.bf16.gmra.mxu0 %v2776
        %v3098 = vpop.f32.mrf.mxu0
        %v3099 = vadd.f32 %v3050, %v3098
        %v3100 = vpop.f32.mrf.mxu0
        %v3101 = vadd.f32 %v3052, %v3100
        %3102 = vdwg.mxu0
        %3103 = vmatpush.bf16.msra.mxu0 %v2728
        %3104 = vmatpush.bf16.msra.mxu0 %v2726
        %3105 = vmatpush.bf16.msra.mxu0 %v2724
        %3106 = vmatpush.bf16.msra.mxu0 %v2722
        %3107 = vmatpush.bf16.msra.mxu0 %v2720
        %3108 = vmatpush.bf16.msra.mxu0 %v2718
        %3109 = vmatpush.bf16.msra.mxu0 %v2716
        %3110 = vmatpush.bf16.msra.mxu0 %v2714
        %3111 = vmatmul.bf16.gmra.mxu0 %v2785
        %v3112 = vpop.f32.mrf.mxu0
        %v3113 = vadd.f32 %v3064, %v3112
        %v3114 = vpop.f32.mrf.mxu0
        %v3115 = vadd.f32 %v3066, %v3114
        %3116 = vmatmul.bf16.gmra.mxu0 %v2786
        %v3117 = vpop.f32.mrf.mxu0
        %v3118 = vadd.f32 %v3069, %v3117
        %v3119 = vpop.f32.mrf.mxu0
        %v3120 = vadd.f32 %v3071, %v3119
        %3121 = vmatmul.bf16.gmra.mxu0 %v2787
        %v3122 = vpop.f32.mrf.mxu0
        %v3123 = vadd.f32 %v3074, %v3122
        %v3124 = vpop.f32.mrf.mxu0
        %v3125 = vadd.f32 %v3076, %v3124
        %3126 = vmatmul.bf16.gmra.mxu0 %v2788
        %v3127 = vpop.f32.mrf.mxu0
        %v3128 = vadd.f32 %v3079, %v3127
        %v3129 = vpop.f32.mrf.mxu0
        %v3130 = vadd.f32 %v3081, %v3129
        %3131 = vmatmul.bf16.gmra.mxu0 %v2789
        %v3132 = vpop.f32.mrf.mxu0
        %v3133 = vadd.f32 %v3084, %v3132
        %v3134 = vpop.f32.mrf.mxu0
        %v3135 = vadd.f32 %v3086, %v3134
        %3136 = vmatmul.bf16.gmra.mxu0 %v2790
        %v3137 = vpop.f32.mrf.mxu0
        %v3138 = vadd.f32 %v3089, %v3137
        %v3139 = vpop.f32.mrf.mxu0
        %v3140 = vadd.f32 %v3091, %v3139
        %3141 = vmatmul.bf16.gmra.mxu0 %v2791
        %v3142 = vpop.f32.mrf.mxu0
        %v3143 = vadd.f32 %v3094, %v3142
        %v3144 = vpop.f32.mrf.mxu0
        %v3145 = vadd.f32 %v3096, %v3144
        %3146 = vmatmul.bf16.gmra.mxu0 %v2792
        %v3147 = vpop.f32.mrf.mxu0
        %v3148 = vadd.f32 %v3099, %v3147
        %v3149 = vpop.f32.mrf.mxu0
        %v3150 = vadd.f32 %v3101, %v3149
        %3151 = vdwg.mxu0
        %3152 = vmatpush.bf16.msra.mxu0 %v2744
        %3153 = vmatpush.bf16.msra.mxu0 %v2742
        %3154 = vmatpush.bf16.msra.mxu0 %v2740
        %3155 = vmatpush.bf16.msra.mxu0 %v2738
        %3156 = vmatpush.bf16.msra.mxu0 %v2736
        %3157 = vmatpush.bf16.msra.mxu0 %v2734
        %3158 = vmatpush.bf16.msra.mxu0 %v2732
        %3159 = vmatpush.bf16.msra.mxu0 %v2730
        %3160 = vmatmul.bf16.gmra.mxu0 %v2801
        %v3161 = vpop.f32.mrf.mxu0
        %v3162 = vadd.f32 %v3113, %v3161
        %v3163 = vpop.f32.mrf.mxu0
        %v3164 = vadd.f32 %v3115, %v3163
        %3165 = vmatmul.bf16.gmra.mxu0 %v2802
        %v3166 = vpop.f32.mrf.mxu0
        %v3167 = vadd.f32 %v3118, %v3166
        %v3168 = vpop.f32.mrf.mxu0
        %v3169 = vadd.f32 %v3120, %v3168
        %3170 = vmatmul.bf16.gmra.mxu0 %v2803
        %v3171 = vpop.f32.mrf.mxu0
        %v3172 = vadd.f32 %v3123, %v3171
        %v3173 = vpop.f32.mrf.mxu0
        %v3174 = vadd.f32 %v3125, %v3173
        %3175 = vmatmul.bf16.gmra.mxu0 %v2804
        %v3176 = vpop.f32.mrf.mxu0
        %v3177 = vadd.f32 %v3128, %v3176
        %v3178 = vpop.f32.mrf.mxu0
        %v3179 = vadd.f32 %v3130, %v3178
        %3180 = vmatmul.bf16.gmra.mxu0 %v2805
        %v3181 = vpop.f32.mrf.mxu0
        %v3182 = vadd.f32 %v3133, %v3181
        %v3183 = vpop.f32.mrf.mxu0
        %v3184 = vadd.f32 %v3135, %v3183
        %3185 = vmatmul.bf16.gmra.mxu0 %v2806
        %v3186 = vpop.f32.mrf.mxu0
        %v3187 = vadd.f32 %v3138, %v3186
        %v3188 = vpop.f32.mrf.mxu0
        %v3189 = vadd.f32 %v3140, %v3188
        %3190 = vmatmul.bf16.gmra.mxu0 %v2807
        %v3191 = vpop.f32.mrf.mxu0
        %v3192 = vadd.f32 %v3143, %v3191
        %v3193 = vpop.f32.mrf.mxu0
        %v3194 = vadd.f32 %v3145, %v3193
        %3195 = vmatmul.bf16.gmra.mxu0 %v2808
        %v3196 = vpop.f32.mrf.mxu0
        %v3197 = vadd.f32 %v3148, %v3196
        %v3198 = vpop.f32.mrf.mxu0
        %v3199 = vadd.f32 %v3150, %v3198
        %3200 = vdwg.mxu0
        %v3201 = vadd.f32 %v2649, %v2966
        %v3202 = vadd.f32 %v2650, %v3162
        %v3203 = vadd.f32 %v2651, %v2968
        %v3204 = vadd.f32 %v2652, %v3164
        %v3205 = vadd.f32 %v2653, %v2971
        %v3206 = vadd.f32 %v2654, %v3167
        %v3207 = vadd.f32 %v2655, %v2973
        %v3208 = vadd.f32 %v2656, %v3169
        %v3209 = vadd.f32 %v2657, %v2976
        %v3210 = vadd.f32 %v2658, %v3172
        %v3211 = vadd.f32 %v2659, %v2978
        %v3212 = vadd.f32 %v2660, %v3174
        %v3213 = vadd.f32 %v2661, %v2981
        %v3214 = vadd.f32 %v2662, %v3177
        %v3215 = vadd.f32 %v2663, %v2983
        %v3216 = vadd.f32 %v2664, %v3179
        %v3217 = vadd.f32 %v2665, %v2986
        %v3218 = vadd.f32 %v2666, %v3182
        %v3219 = vadd.f32 %v2667, %v2988
        %v3220 = vadd.f32 %v2668, %v3184
        %v3221 = vadd.f32 %v2669, %v2991
        %v3222 = vadd.f32 %v2670, %v3187
        %v3223 = vadd.f32 %v2671, %v2993
        %v3224 = vadd.f32 %v2672, %v3189
        %v3225 = vadd.f32 %v2673, %v2996
        %v3226 = vadd.f32 %v2674, %v3192
        %v3227 = vadd.f32 %v2675, %v2998
        %v3228 = vadd.f32 %v2676, %v3194
        %v3229 = vadd.f32 %v2677, %v3001
        %v3230 = vadd.f32 %v2678, %v3197
        %v3231 = vadd.f32 %v2679, %v3003
        %v3232 = vadd.f32 %v2680, %v3199
        %3233 = vst [vmem:[#allocation4] sm:$0xff] %v3201
        %3234 = vst [vmem:[#allocation4 + $0x8] sm:$0xff] %v3202
        %3235 = vst [vmem:[#allocation4 + $0x10] sm:$0xff] %v3203
        %3236 = vst [vmem:[#allocation4 + $0x18] sm:$0xff] %v3204
        %3237 = vst [vmem:[#allocation4 + $0x20] sm:$0xff] %v3205
        %3238 = vst [vmem:[#allocation4 + $0x28] sm:$0xff] %v3206
        %3239 = vst [vmem:[#allocation4 + $0x30] sm:$0xff] %v3207
        %3240 = vst [vmem:[#allocation4 + $0x38] sm:$0xff] %v3208
        %3241 = vst [vmem:[#allocation4 + $0x40] sm:$0xff] %v3209
        %3242 = vst [vmem:[#allocation4 + $0x48] sm:$0xff] %v3210
        %3243 = vst [vmem:[#allocation4 + $0x50] sm:$0xff] %v3211
        %3244 = vst [vmem:[#allocation4 + $0x58] sm:$0xff] %v3212
        %3245 = vst [vmem:[#allocation4 + $0x60] sm:$0xff] %v3213
        %3246 = vst [vmem:[#allocation4 + $0x68] sm:$0xff] %v3214
        %3247 = vst [vmem:[#allocation4 + $0x70] sm:$0xff] %v3215
        %3248 = vst [vmem:[#allocation4 + $0x78] sm:$0xff] %v3216
        %3249 = vst [vmem:[#allocation4 + $0x80] sm:$0xff] %v3217
        %3250 = vst [vmem:[#allocation4 + $0x88] sm:$0xff] %v3218
        %3251 = vst [vmem:[#allocation4 + $0x90] sm:$0xff] %v3219
        %3252 = vst [vmem:[#allocation4 + $0x98] sm:$0xff] %v3220
        %3253 = vst [vmem:[#allocation4 + $0xa0] sm:$0xff] %v3221
        %3254 = vst [vmem:[#allocation4 + $0xa8] sm:$0xff] %v3222
        %3255 = vst [vmem:[#allocation4 + $0xb0] sm:$0xff] %v3223
        %3256 = vst [vmem:[#allocation4 + $0xb8] sm:$0xff] %v3224
        %3257 = vst [vmem:[#allocation4 + $0xc0] sm:$0xff] %v3225
        %3258 = vst [vmem:[#allocation4 + $0xc8] sm:$0xff] %v3226
        %3259 = vst [vmem:[#allocation4 + $0xd0] sm:$0xff] %v3227
        %3260 = vst [vmem:[#allocation4 + $0xd8] sm:$0xff] %v3228
        %3261 = vst [vmem:[#allocation4 + $0xe0] sm:$0xff] %v3229
        %3262 = vst [vmem:[#allocation4 + $0xe8] sm:$0xff] %v3230
        %3263 = vst [vmem:[#allocation4 + $0xf0] sm:$0xff] %v3231
        %3264 = vst [vmem:[#allocation4 + $0xf8] sm:$0xff] %v3232
        // Predicated region
        $region93: #{tpu_custom_call.1} parent=71 // pred_check
          %p3265 = pneg %p624
        $region94: #{tpu_custom_call.1} parent=71 // pred_check_branch
          %3267 = sbr.rel (%p3265) target = $region96
        $region95: #{tpu_custom_call.1} parent=71 // pred_region
          %v3268 = vld [vmem:[#allocation2] sm:$0xff]
          %v3269 = vld [vmem:[#allocation2 + $0x8] sm:$0xff]
          %v3270 = vld [vmem:[#allocation2 + $0x10] sm:$0xff]
          %v3271 = vld [vmem:[#allocation2 + $0x18] sm:$0xff]
          %v3272 = vld [vmem:[#allocation2 + $0x20] sm:$0xff]
          %v3273 = vld [vmem:[#allocation2 + $0x28] sm:$0xff]
          %v3274 = vld [vmem:[#allocation2 + $0x30] sm:$0xff]
          %v3275 = vld [vmem:[#allocation2 + $0x38] sm:$0xff]
          %v3276 = vld [vmem:[#allocation2 + $0x40] sm:$0xff]
          %v3277 = vld [vmem:[#allocation2 + $0x48] sm:$0xff]
          %v3278 = vld [vmem:[#allocation2 + $0x50] sm:$0xff]
          %v3279 = vld [vmem:[#allocation2 + $0x58] sm:$0xff]
          %v3280 = vld [vmem:[#allocation2 + $0x60] sm:$0xff]
          %v3281 = vld [vmem:[#allocation2 + $0x68] sm:$0xff]
          %v3282 = vld [vmem:[#allocation2 + $0x70] sm:$0xff]
          %v3283 = vld [vmem:[#allocation2 + $0x78] sm:$0xff]
          %v3284 = vld [vmem:[#allocation2 + $0x80] sm:$0xff]
          %v3285 = vld [vmem:[#allocation2 + $0x88] sm:$0xff]
          %v3286 = vld [vmem:[#allocation2 + $0x90] sm:$0xff]
          %v3287 = vld [vmem:[#allocation2 + $0x98] sm:$0xff]
          %v3288 = vld [vmem:[#allocation2 + $0xa0] sm:$0xff]
          %v3289 = vld [vmem:[#allocation2 + $0xa8] sm:$0xff]
          %v3290 = vld [vmem:[#allocation2 + $0xb0] sm:$0xff]
          %v3291 = vld [vmem:[#allocation2 + $0xb8] sm:$0xff]
          %v3292 = vld [vmem:[#allocation2 + $0xc0] sm:$0xff]
          %v3293 = vld [vmem:[#allocation2 + $0xc8] sm:$0xff]
          %v3294 = vld [vmem:[#allocation2 + $0xd0] sm:$0xff]
          %v3295 = vld [vmem:[#allocation2 + $0xd8] sm:$0xff]
          %v3296 = vld [vmem:[#allocation2 + $0xe0] sm:$0xff]
          %v3297 = vld [vmem:[#allocation2 + $0xe8] sm:$0xff]
          %v3298 = vld [vmem:[#allocation2 + $0xf0] sm:$0xff]
          %v3299 = vld [vmem:[#allocation2 + $0xf8] sm:$0xff]
          %v3300 = vld [vmem:[#allocation4] sm:$0xff]
          %v3301 = vld [vmem:[#allocation4 + $0x8] sm:$0xff]
          %v3302 = vld [vmem:[#allocation4 + $0x10] sm:$0xff]
          %v3303 = vld [vmem:[#allocation4 + $0x18] sm:$0xff]
          %v3304 = vld [vmem:[#allocation4 + $0x20] sm:$0xff]
          %v3305 = vld [vmem:[#allocation4 + $0x28] sm:$0xff]
          %v3306 = vld [vmem:[#allocation4 + $0x30] sm:$0xff]
          %v3307 = vld [vmem:[#allocation4 + $0x38] sm:$0xff]
          %v3308 = vld [vmem:[#allocation4 + $0x40] sm:$0xff]
          %v3309 = vld [vmem:[#allocation4 + $0x48] sm:$0xff]
          %v3310 = vld [vmem:[#allocation4 + $0x50] sm:$0xff]
          %v3311 = vld [vmem:[#allocation4 + $0x58] sm:$0xff]
          %v3312 = vld [vmem:[#allocation4 + $0x60] sm:$0xff]
          %v3313 = vld [vmem:[#allocation4 + $0x68] sm:$0xff]
          %v3314 = vld [vmem:[#allocation4 + $0x70] sm:$0xff]
          %v3315 = vld [vmem:[#allocation4 + $0x78] sm:$0xff]
          %v3316 = vld [vmem:[#allocation4 + $0x80] sm:$0xff]
          %v3317 = vld [vmem:[#allocation4 + $0x88] sm:$0xff]
          %v3318 = vld [vmem:[#allocation4 + $0x90] sm:$0xff]
          %v3319 = vld [vmem:[#allocation4 + $0x98] sm:$0xff]
          %v3320 = vld [vmem:[#allocation4 + $0xa0] sm:$0xff]
          %v3321 = vld [vmem:[#allocation4 + $0xa8] sm:$0xff]
          %v3322 = vld [vmem:[#allocation4 + $0xb0] sm:$0xff]
          %v3323 = vld [vmem:[#allocation4 + $0xb8] sm:$0xff]
          %v3324 = vld [vmem:[#allocation4 + $0xc0] sm:$0xff]
          %v3325 = vld [vmem:[#allocation4 + $0xc8] sm:$0xff]
          %v3326 = vld [vmem:[#allocation4 + $0xd0] sm:$0xff]
          %v3327 = vld [vmem:[#allocation4 + $0xd8] sm:$0xff]
          %v3328 = vld [vmem:[#allocation4 + $0xe0] sm:$0xff]
          %v3329 = vld [vmem:[#allocation4 + $0xe8] sm:$0xff]
          %v3330 = vld [vmem:[#allocation4 + $0xf0] sm:$0xff]
          %v3331 = vld [vmem:[#allocation4 + $0xf8] sm:$0xff]
          %v3332 = vadd.f32 %v3268, %v3300
          %v3333 = vadd.f32 %v3269, %v3301
          %v3334 = vadd.f32 %v3270, %v3302
          %v3335 = vadd.f32 %v3271, %v3303
          %v3336 = vadd.f32 %v3272, %v3304
          %v3337 = vadd.f32 %v3273, %v3305
          %v3338 = vadd.f32 %v3274, %v3306
          %v3339 = vadd.f32 %v3275, %v3307
          %v3340 = vadd.f32 %v3276, %v3308
          %v3341 = vadd.f32 %v3277, %v3309
          %v3342 = vadd.f32 %v3278, %v3310
          %v3343 = vadd.f32 %v3279, %v3311
          %v3344 = vadd.f32 %v3280, %v3312
          %v3345 = vadd.f32 %v3281, %v3313
          %v3346 = vadd.f32 %v3282, %v3314
          %v3347 = vadd.f32 %v3283, %v3315
          %v3348 = vadd.f32 %v3284, %v3316
          %v3349 = vadd.f32 %v3285, %v3317
          %v3350 = vadd.f32 %v3286, %v3318
          %v3351 = vadd.f32 %v3287, %v3319
          %v3352 = vadd.f32 %v3288, %v3320
          %v3353 = vadd.f32 %v3289, %v3321
          %v3354 = vadd.f32 %v3290, %v3322
          %v3355 = vadd.f32 %v3291, %v3323
          %v3356 = vadd.f32 %v3292, %v3324
          %v3357 = vadd.f32 %v3293, %v3325
          %v3358 = vadd.f32 %v3294, %v3326
          %v3359 = vadd.f32 %v3295, %v3327
          %v3360 = vadd.f32 %v3296, %v3328
          %v3361 = vadd.f32 %v3297, %v3329
          %v3362 = vadd.f32 %v3298, %v3330
          %v3363 = vadd.f32 %v3299, %v3331
          %v3364 = vld [vmem:[%s513] sm:$0xff]
          %v3365 = vld [vmem:[%s513 + $0x8] sm:$0xff]
          %v3366 = vld [vmem:[%s513 + $0x10] sm:$0xff]
          %v3367 = vld [vmem:[%s513 + $0x18] sm:$0xff]
          %v3368 = vld [vmem:[%s513 + $0x20] sm:$0xff]
          %v3369 = vld [vmem:[%s513 + $0x28] sm:$0xff]
          %v3370 = vld [vmem:[%s513 + $0x30] sm:$0xff]
          %v3371 = vld [vmem:[%s513 + $0x38] sm:$0xff]
          %v3372 = vld [vmem:[%s513 + $0x40] sm:$0xff]
          %v3373 = vld [vmem:[%s513 + $0x48] sm:$0xff]
          %v3374 = vld [vmem:[%s513 + $0x50] sm:$0xff]
          %v3375 = vld [vmem:[%s513 + $0x58] sm:$0xff]
          %v3376 = vld [vmem:[%s513 + $0x60] sm:$0xff]
          %v3377 = vld [vmem:[%s513 + $0x68] sm:$0xff]
          %v3378 = vld [vmem:[%s513 + $0x70] sm:$0xff]
          %v3379 = vld [vmem:[%s513 + $0x78] sm:$0xff]
          %v3380 = vld [vmem:[%s513 + $0x80] sm:$0xff]
          %v3381 = vld [vmem:[%s513 + $0x88] sm:$0xff]
          %v3382 = vld [vmem:[%s513 + $0x90] sm:$0xff]
          %v3383 = vld [vmem:[%s513 + $0x98] sm:$0xff]
          %v3384 = vld [vmem:[%s513 + $0xa0] sm:$0xff]
          %v3385 = vld [vmem:[%s513 + $0xa8] sm:$0xff]
          %v3386 = vld [vmem:[%s513 + $0xb0] sm:$0xff]
          %v3387 = vld [vmem:[%s513 + $0xb8] sm:$0xff]
          %v3388 = vld [vmem:[%s513 + $0xc0] sm:$0xff]
          %v3389 = vld [vmem:[%s513 + $0xc8] sm:$0xff]
          %v3390 = vld [vmem:[%s513 + $0xd0] sm:$0xff]
          %v3391 = vld [vmem:[%s513 + $0xd8] sm:$0xff]
          %v3392 = vld [vmem:[%s513 + $0xe0] sm:$0xff]
          %v3393 = vld [vmem:[%s513 + $0xe8] sm:$0xff]
          %v3394 = vld [vmem:[%s513 + $0xf0] sm:$0xff]
          %v3395 = vld [vmem:[%s513 + $0xf8] sm:$0xff]
          %v3396 = vld [vmem:[%s513 + $0x100] sm:$0xff]
          %v3397 = vld [vmem:[%s513 + $0x108] sm:$0xff]
          %v3398 = vld [vmem:[%s513 + $0x110] sm:$0xff]
          %v3399 = vld [vmem:[%s513 + $0x118] sm:$0xff]
          %v3400 = vld [vmem:[%s513 + $0x120] sm:$0xff]
          %v3401 = vld [vmem:[%s513 + $0x128] sm:$0xff]
          %v3402 = vld [vmem:[%s513 + $0x130] sm:$0xff]
          %v3403 = vld [vmem:[%s513 + $0x138] sm:$0xff]
          %v3404 = vld [vmem:[%s513 + $0x140] sm:$0xff]
          %v3405 = vld [vmem:[%s513 + $0x148] sm:$0xff]
          %v3406 = vld [vmem:[%s513 + $0x150] sm:$0xff]
          %v3407 = vld [vmem:[%s513 + $0x158] sm:$0xff]
          %v3408 = vld [vmem:[%s513 + $0x160] sm:$0xff]
          %v3409 = vld [vmem:[%s513 + $0x168] sm:$0xff]
          %v3410 = vld [vmem:[%s513 + $0x170] sm:$0xff]
          %v3411 = vld [vmem:[%s513 + $0x178] sm:$0xff]
          %v3412 = vld [vmem:[%s513 + $0x180] sm:$0xff]
          %v3413 = vld [vmem:[%s513 + $0x188] sm:$0xff]
          %v3414 = vld [vmem:[%s513 + $0x190] sm:$0xff]
          %v3415 = vld [vmem:[%s513 + $0x198] sm:$0xff]
          %v3416 = vld [vmem:[%s513 + $0x1a0] sm:$0xff]
          %v3417 = vld [vmem:[%s513 + $0x1a8] sm:$0xff]
          %v3418 = vld [vmem:[%s513 + $0x1b0] sm:$0xff]
          %v3419 = vld [vmem:[%s513 + $0x1b8] sm:$0xff]
          %v3420 = vld [vmem:[%s513 + $0x1c0] sm:$0xff]
          %v3421 = vld [vmem:[%s513 + $0x1c8] sm:$0xff]
          %v3422 = vld [vmem:[%s513 + $0x1d0] sm:$0xff]
          %v3423 = vld [vmem:[%s513 + $0x1d8] sm:$0xff]
          %v3424 = vld [vmem:[%s513 + $0x1e0] sm:$0xff]
          %v3425 = vld [vmem:[%s513 + $0x1e8] sm:$0xff]
          %v3426 = vld [vmem:[%s513 + $0x1f0] sm:$0xff]
          %v3427 = vld [vmem:[%s513 + $0x1f8] sm:$0xff]
          %v3428 = vld [vmem:[%s618] sm:$0x3]
          %v3430 = vperm.slane %v3428, 0
          %v3431 = vperm.slane %v3428, 1
          %3434 = vmatpush.msra.mxu0 %v3394
          %3435 = vmatpush.msra.mxu0 %v3392
          %3436 = vmatpush.msra.mxu0 %v3390
          %3437 = vmatpush.msra.mxu0 %v3388
          %3438 = vmatpush.msra.mxu0 %v3386
          %3439 = vmatpush.msra.mxu0 %v3384
          %3440 = vmatpush.msra.mxu0 %v3382
          %3441 = vmatpush.msra.mxu0 %v3380
          %3442 = vmatpush.msra.mxu0 %v3378
          %3443 = vmatpush.msra.mxu0 %v3376
          %3444 = vmatpush.msra.mxu0 %v3374
          %3445 = vmatpush.msra.mxu0 %v3372
          %3446 = vmatpush.msra.mxu0 %v3370
          %3447 = vmatpush.msra.mxu0 %v3368
          %3448 = vmatpush.msra.mxu0 %v3366
          %3449 = vmatpush.msra.mxu0 %v3364
          %3450 = vmatmul.f32.gmra.mxu0 %v3332
          %v3451 = vpop.f32.mrf.mxu0
          %v3452 = vadd.f32 %v3430, %v3451
          %3453 = vmatmul.f32.gmra.mxu0 %v3334
          %v3454 = vpop.f32.mrf.mxu0
          %v3455 = vadd.f32 %v3430, %v3454
          %3456 = vmatmul.f32.gmra.mxu0 %v3336
          %v3457 = vpop.f32.mrf.mxu0
          %v3458 = vadd.f32 %v3430, %v3457
          %3459 = vmatmul.f32.gmra.mxu0 %v3338
          %v3460 = vpop.f32.mrf.mxu0
          %v3461 = vadd.f32 %v3430, %v3460
          %3462 = vmatmul.f32.gmra.mxu0 %v3340
          %v3463 = vpop.f32.mrf.mxu0
          %v3464 = vadd.f32 %v3430, %v3463
          %3465 = vmatmul.f32.gmra.mxu0 %v3342
          %v3466 = vpop.f32.mrf.mxu0
          %v3467 = vadd.f32 %v3430, %v3466
          %3468 = vmatmul.f32.gmra.mxu0 %v3344
          %v3469 = vpop.f32.mrf.mxu0
          %v3470 = vadd.f32 %v3430, %v3469
          %3471 = vmatmul.f32.gmra.mxu0 %v3346
          %v3472 = vpop.f32.mrf.mxu0
          %v3473 = vadd.f32 %v3430, %v3472
          %3474 = vmatmul.f32.gmra.mxu0 %v3348
          %v3475 = vpop.f32.mrf.mxu0
          %v3476 = vadd.f32 %v3430, %v3475
          %3477 = vmatmul.f32.gmra.mxu0 %v3350
          %v3478 = vpop.f32.mrf.mxu0
          %v3479 = vadd.f32 %v3430, %v3478
          %3480 = vmatmul.f32.gmra.mxu0 %v3352
          %v3481 = vpop.f32.mrf.mxu0
          %v3482 = vadd.f32 %v3430, %v3481
          %3483 = vmatmul.f32.gmra.mxu0 %v3354
          %v3484 = vpop.f32.mrf.mxu0
          %v3485 = vadd.f32 %v3430, %v3484
          %3486 = vmatmul.f32.gmra.mxu0 %v3356
          %v3487 = vpop.f32.mrf.mxu0
          %v3488 = vadd.f32 %v3430, %v3487
          %3489 = vmatmul.f32.gmra.mxu0 %v3358
          %v3490 = vpop.f32.mrf.mxu0
          %v3491 = vadd.f32 %v3430, %v3490
          %3492 = vmatmul.f32.gmra.mxu0 %v3360
          %v3493 = vpop.f32.mrf.mxu0
          %v3494 = vadd.f32 %v3430, %v3493
          %3495 = vmatmul.f32.gmra.mxu0 %v3362
          %v3496 = vpop.f32.mrf.mxu0
          %v3497 = vadd.f32 %v3430, %v3496
          %3498 = vdwg.mxu0
          %3499 = vmatpush.msra.mxu0 %v3426
          %3500 = vmatpush.msra.mxu0 %v3424
          %3501 = vmatpush.msra.mxu0 %v3422
          %3502 = vmatpush.msra.mxu0 %v3420
          %3503 = vmatpush.msra.mxu0 %v3418
          %3504 = vmatpush.msra.mxu0 %v3416
          %3505 = vmatpush.msra.mxu0 %v3414
          %3506 = vmatpush.msra.mxu0 %v3412
          %3507 = vmatpush.msra.mxu0 %v3410
          %3508 = vmatpush.msra.mxu0 %v3408
          %3509 = vmatpush.msra.mxu0 %v3406
          %3510 = vmatpush.msra.mxu0 %v3404
          %3511 = vmatpush.msra.mxu0 %v3402
          %3512 = vmatpush.msra.mxu0 %v3400
          %3513 = vmatpush.msra.mxu0 %v3398
          %3514 = vmatpush.msra.mxu0 %v3396
          %3515 = vmatmul.f32.gmra.mxu0 %v3333
          %v3516 = vpop.f32.mrf.mxu0
          %v3517 = vadd.f32 %v3452, %v3516
          %3518 = vmatmul.f32.gmra.mxu0 %v3335
          %v3519 = vpop.f32.mrf.mxu0
          %v3520 = vadd.f32 %v3455, %v3519
          %3521 = vmatmul.f32.gmra.mxu0 %v3337
          %v3522 = vpop.f32.mrf.mxu0
          %v3523 = vadd.f32 %v3458, %v3522
          %3524 = vmatmul.f32.gmra.mxu0 %v3339
          %v3525 = vpop.f32.mrf.mxu0
          %v3526 = vadd.f32 %v3461, %v3525
          %3527 = vmatmul.f32.gmra.mxu0 %v3341
          %v3528 = vpop.f32.mrf.mxu0
          %v3529 = vadd.f32 %v3464, %v3528
          %3530 = vmatmul.f32.gmra.mxu0 %v3343
          %v3531 = vpop.f32.mrf.mxu0
          %v3532 = vadd.f32 %v3467, %v3531
          %3533 = vmatmul.f32.gmra.mxu0 %v3345
          %v3534 = vpop.f32.mrf.mxu0
          %v3535 = vadd.f32 %v3470, %v3534
          %3536 = vmatmul.f32.gmra.mxu0 %v3347
          %v3537 = vpop.f32.mrf.mxu0
          %v3538 = vadd.f32 %v3473, %v3537
          %3539 = vmatmul.f32.gmra.mxu0 %v3349
          %v3540 = vpop.f32.mrf.mxu0
          %v3541 = vadd.f32 %v3476, %v3540
          %3542 = vmatmul.f32.gmra.mxu0 %v3351
          %v3543 = vpop.f32.mrf.mxu0
          %v3544 = vadd.f32 %v3479, %v3543
          %3545 = vmatmul.f32.gmra.mxu0 %v3353
          %v3546 = vpop.f32.mrf.mxu0
          %v3547 = vadd.f32 %v3482, %v3546
          %3548 = vmatmul.f32.gmra.mxu0 %v3355
          %v3549 = vpop.f32.mrf.mxu0
          %v3550 = vadd.f32 %v3485, %v3549
          %3551 = vmatmul.f32.gmra.mxu0 %v3357
          %v3552 = vpop.f32.mrf.mxu0
          %v3553 = vadd.f32 %v3488, %v3552
          %3554 = vmatmul.f32.gmra.mxu0 %v3359
          %v3555 = vpop.f32.mrf.mxu0
          %v3556 = vadd.f32 %v3491, %v3555
          %3557 = vmatmul.f32.gmra.mxu0 %v3361
          %v3558 = vpop.f32.mrf.mxu0
          %v3559 = vadd.f32 %v3494, %v3558
          %3560 = vmatmul.f32.gmra.mxu0 %v3363
          %v3561 = vpop.f32.mrf.mxu0
          %v3562 = vadd.f32 %v3497, %v3561
          %3563 = vdwg.mxu0
          %3564 = vmatpush.msra.mxu0 %v3395
          %3565 = vmatpush.msra.mxu0 %v3393
          %3566 = vmatpush.msra.mxu0 %v3391
          %3567 = vmatpush.msra.mxu0 %v3389
          %3568 = vmatpush.msra.mxu0 %v3387
          %3569 = vmatpush.msra.mxu0 %v3385
          %3570 = vmatpush.msra.mxu0 %v3383
          %3571 = vmatpush.msra.mxu0 %v3381
          %3572 = vmatpush.msra.mxu0 %v3379
          %3573 = vmatpush.msra.mxu0 %v3377
          %3574 = vmatpush.msra.mxu0 %v3375
          %3575 = vmatpush.msra.mxu0 %v3373
          %3576 = vmatpush.msra.mxu0 %v3371
          %3577 = vmatpush.msra.mxu0 %v3369
          %3578 = vmatpush.msra.mxu0 %v3367
          %3579 = vmatpush.msra.mxu0 %v3365
          %3580 = vmatmul.f32.gmra.mxu0 %v3332
          %v3581 = vpop.f32.mrf.mxu0
          %v3582 = vadd.f32 %v3431, %v3581
          %3583 = vmatmul.f32.gmra.mxu0 %v3334
          %v3584 = vpop.f32.mrf.mxu0
          %v3585 = vadd.f32 %v3431, %v3584
          %3586 = vmatmul.f32.gmra.mxu0 %v3336
          %v3587 = vpop.f32.mrf.mxu0
          %v3588 = vadd.f32 %v3431, %v3587
          %3589 = vmatmul.f32.gmra.mxu0 %v3338
          %v3590 = vpop.f32.mrf.mxu0
          %v3591 = vadd.f32 %v3431, %v3590
          %3592 = vmatmul.f32.gmra.mxu0 %v3340
          %v3593 = vpop.f32.mrf.mxu0
          %v3594 = vadd.f32 %v3431, %v3593
          %3595 = vmatmul.f32.gmra.mxu0 %v3342
          %v3596 = vpop.f32.mrf.mxu0
          %v3597 = vadd.f32 %v3431, %v3596
          %3598 = vmatmul.f32.gmra.mxu0 %v3344
          %v3599 = vpop.f32.mrf.mxu0
          %v3600 = vadd.f32 %v3431, %v3599
          %3601 = vmatmul.f32.gmra.mxu0 %v3346
          %v3602 = vpop.f32.mrf.mxu0
          %v3603 = vadd.f32 %v3431, %v3602
          %3604 = vmatmul.f32.gmra.mxu0 %v3348
          %v3605 = vpop.f32.mrf.mxu0
          %v3606 = vadd.f32 %v3431, %v3605
          %3607 = vmatmul.f32.gmra.mxu0 %v3350
          %v3608 = vpop.f32.mrf.mxu0
          %v3609 = vadd.f32 %v3431, %v3608
          %3610 = vmatmul.f32.gmra.mxu0 %v3352
          %v3611 = vpop.f32.mrf.mxu0
          %v3612 = vadd.f32 %v3431, %v3611
          %3613 = vmatmul.f32.gmra.mxu0 %v3354
          %v3614 = vpop.f32.mrf.mxu0
          %v3615 = vadd.f32 %v3431, %v3614
          %3616 = vmatmul.f32.gmra.mxu0 %v3356
          %v3617 = vpop.f32.mrf.mxu0
          %v3618 = vadd.f32 %v3431, %v3617
          %3619 = vmatmul.f32.gmra.mxu0 %v3358
          %v3620 = vpop.f32.mrf.mxu0
          %v3621 = vadd.f32 %v3431, %v3620
          %3622 = vmatmul.f32.gmra.mxu0 %v3360
          %v3623 = vpop.f32.mrf.mxu0
          %v3624 = vadd.f32 %v3431, %v3623
          %3625 = vmatmul.f32.gmra.mxu0 %v3362
          %v3626 = vpop.f32.mrf.mxu0
          %v3627 = vadd.f32 %v3431, %v3626
          %3628 = vdwg.mxu0
          %3629 = vmatpush.msra.mxu0 %v3427
          %3630 = vmatpush.msra.mxu0 %v3425
          %3631 = vmatpush.msra.mxu0 %v3423
          %3632 = vmatpush.msra.mxu0 %v3421
          %3633 = vmatpush.msra.mxu0 %v3419
          %3634 = vmatpush.msra.mxu0 %v3417
          %3635 = vmatpush.msra.mxu0 %v3415
          %3636 = vmatpush.msra.mxu0 %v3413
          %3637 = vmatpush.msra.mxu0 %v3411
          %3638 = vmatpush.msra.mxu0 %v3409
          %3639 = vmatpush.msra.mxu0 %v3407
          %3640 = vmatpush.msra.mxu0 %v3405
          %3641 = vmatpush.msra.mxu0 %v3403
          %3642 = vmatpush.msra.mxu0 %v3401
          %3643 = vmatpush.msra.mxu0 %v3399
          %3644 = vmatpush.msra.mxu0 %v3397
          %3645 = vmatmul.f32.gmra.mxu0 %v3333
          %v3646 = vpop.f32.mrf.mxu0
          %v3647 = vadd.f32 %v3582, %v3646
          %3648 = vmatmul.f32.gmra.mxu0 %v3335
          %v3649 = vpop.f32.mrf.mxu0
          %v3650 = vadd.f32 %v3585, %v3649
          %3651 = vmatmul.f32.gmra.mxu0 %v3337
          %v3652 = vpop.f32.mrf.mxu0
          %v3653 = vadd.f32 %v3588, %v3652
          %3654 = vmatmul.f32.gmra.mxu0 %v3339
          %v3655 = vpop.f32.mrf.mxu0
          %v3656 = vadd.f32 %v3591, %v3655
          %3657 = vmatmul.f32.gmra.mxu0 %v3341
          %v3658 = vpop.f32.mrf.mxu0
          %v3659 = vadd.f32 %v3594, %v3658
          %3660 = vmatmul.f32.gmra.mxu0 %v3343
          %v3661 = vpop.f32.mrf.mxu0
          %v3662 = vadd.f32 %v3597, %v3661
          %3663 = vmatmul.f32.gmra.mxu0 %v3345
          %v3664 = vpop.f32.mrf.mxu0
          %v3665 = vadd.f32 %v3600, %v3664
          %3666 = vmatmul.f32.gmra.mxu0 %v3347
          %v3667 = vpop.f32.mrf.mxu0
          %v3668 = vadd.f32 %v3603, %v3667
          %3669 = vmatmul.f32.gmra.mxu0 %v3349
          %v3670 = vpop.f32.mrf.mxu0
          %v3671 = vadd.f32 %v3606, %v3670
          %3672 = vmatmul.f32.gmra.mxu0 %v3351
          %v3673 = vpop.f32.mrf.mxu0
          %v3674 = vadd.f32 %v3609, %v3673
          %3675 = vmatmul.f32.gmra.mxu0 %v3353
          %v3676 = vpop.f32.mrf.mxu0
          %v3677 = vadd.f32 %v3612, %v3676
          %3678 = vmatmul.f32.gmra.mxu0 %v3355
          %v3679 = vpop.f32.mrf.mxu0
          %v3680 = vadd.f32 %v3615, %v3679
          %3681 = vmatmul.f32.gmra.mxu0 %v3357
          %v3682 = vpop.f32.mrf.mxu0
          %v3683 = vadd.f32 %v3618, %v3682
          %3684 = vmatmul.f32.gmra.mxu0 %v3359
          %v3685 = vpop.f32.mrf.mxu0
          %v3686 = vadd.f32 %v3621, %v3685
          %3687 = vmatmul.f32.gmra.mxu0 %v3361
          %v3688 = vpop.f32.mrf.mxu0
          %v3689 = vadd.f32 %v3624, %v3688
          %3690 = vmatmul.f32.gmra.mxu0 %v3363
          %v3691 = vpop.f32.mrf.mxu0
          %v3692 = vadd.f32 %v3627, %v3691
          %3693 = vdwg.mxu0
          %v3694 = vmax.f32 %v3517, 0.0
          %v3695 = vmax.f32 %v3647, 0.0
          %v3696 = vmax.f32 %v3520, 0.0
          %v3697 = vmax.f32 %v3650, 0.0
          %v3698 = vmax.f32 %v3523, 0.0
          %v3699 = vmax.f32 %v3653, 0.0
          %v3700 = vmax.f32 %v3526, 0.0
          %v3701 = vmax.f32 %v3656, 0.0
          %v3702 = vmax.f32 %v3529, 0.0
          %v3703 = vmax.f32 %v3659, 0.0
          %v3704 = vmax.f32 %v3532, 0.0
          %v3705 = vmax.f32 %v3662, 0.0
          %v3706 = vmax.f32 %v3535, 0.0
          %v3707 = vmax.f32 %v3665, 0.0
          %v3708 = vmax.f32 %v3538, 0.0
          %v3709 = vmax.f32 %v3668, 0.0
          %v3710 = vmax.f32 %v3541, 0.0
          %v3711 = vmax.f32 %v3671, 0.0
          %v3712 = vmax.f32 %v3544, 0.0
          %v3713 = vmax.f32 %v3674, 0.0
          %v3714 = vmax.f32 %v3547, 0.0
          %v3715 = vmax.f32 %v3677, 0.0
          %v3716 = vmax.f32 %v3550, 0.0
          %v3717 = vmax.f32 %v3680, 0.0
          %v3718 = vmax.f32 %v3553, 0.0
          %v3719 = vmax.f32 %v3683, 0.0
          %v3720 = vmax.f32 %v3556, 0.0
          %v3721 = vmax.f32 %v3686, 0.0
          %v3722 = vmax.f32 %v3559, 0.0
          %v3723 = vmax.f32 %v3689, 0.0
          %v3724 = vmax.f32 %v3562, 0.0
          %v3725 = vmax.f32 %v3692, 0.0
          %v3726 = vld [vmem:[%s523] sm:$0xff]
          %v3727 = vld [vmem:[%s523 + $0x8] sm:$0xff]
          %v3728 = vld [vmem:[%s523 + $0x10] sm:$0xff]
          %v3729 = vld [vmem:[%s523 + $0x18] sm:$0xff]
          %v3730 = vld [vmem:[%s523 + $0x20] sm:$0xff]
          %v3731 = vld [vmem:[%s523 + $0x28] sm:$0xff]
          %v3732 = vld [vmem:[%s523 + $0x30] sm:$0xff]
          %v3733 = vld [vmem:[%s523 + $0x38] sm:$0xff]
          %v3734 = vld [vmem:[%s523 + $0x40] sm:$0xff]
          %v3735 = vld [vmem:[%s523 + $0x48] sm:$0xff]
          %v3736 = vld [vmem:[%s523 + $0x50] sm:$0xff]
          %v3737 = vld [vmem:[%s523 + $0x58] sm:$0xff]
          %v3738 = vld [vmem:[%s523 + $0x60] sm:$0xff]
          %v3739 = vld [vmem:[%s523 + $0x68] sm:$0xff]
          %v3740 = vld [vmem:[%s523 + $0x70] sm:$0xff]
          %v3741 = vld [vmem:[%s523 + $0x78] sm:$0xff]
          %v3742 = vld [vmem:[%s523 + $0x80] sm:$0xff]
          %v3743 = vld [vmem:[%s523 + $0x88] sm:$0xff]
          %v3744 = vld [vmem:[%s523 + $0x90] sm:$0xff]
          %v3745 = vld [vmem:[%s523 + $0x98] sm:$0xff]
          %v3746 = vld [vmem:[%s523 + $0xa0] sm:$0xff]
          %v3747 = vld [vmem:[%s523 + $0xa8] sm:$0xff]
          %v3748 = vld [vmem:[%s523 + $0xb0] sm:$0xff]
          %v3749 = vld [vmem:[%s523 + $0xb8] sm:$0xff]
          %v3750 = vld [vmem:[%s523 + $0xc0] sm:$0xff]
          %v3751 = vld [vmem:[%s523 + $0xc8] sm:$0xff]
          %v3752 = vld [vmem:[%s523 + $0xd0] sm:$0xff]
          %v3753 = vld [vmem:[%s523 + $0xd8] sm:$0xff]
          %v3754 = vld [vmem:[%s523 + $0xe0] sm:$0xff]
          %v3755 = vld [vmem:[%s523 + $0xe8] sm:$0xff]
          %v3756 = vld [vmem:[%s523 + $0xf0] sm:$0xff]
          %v3757 = vld [vmem:[%s523 + $0xf8] sm:$0xff]
          %v3758 = vld [vmem:[%s523 + $0x100] sm:$0xff]
          %v3759 = vld [vmem:[%s523 + $0x108] sm:$0xff]
          %v3760 = vld [vmem:[%s523 + $0x110] sm:$0xff]
          %v3761 = vld [vmem:[%s523 + $0x118] sm:$0xff]
          %v3762 = vld [vmem:[%s523 + $0x120] sm:$0xff]
          %v3763 = vld [vmem:[%s523 + $0x128] sm:$0xff]
          %v3764 = vld [vmem:[%s523 + $0x130] sm:$0xff]
          %v3765 = vld [vmem:[%s523 + $0x138] sm:$0xff]
          %v3766 = vld [vmem:[%s523 + $0x140] sm:$0xff]
          %v3767 = vld [vmem:[%s523 + $0x148] sm:$0xff]
          %v3768 = vld [vmem:[%s523 + $0x150] sm:$0xff]
          %v3769 = vld [vmem:[%s523 + $0x158] sm:$0xff]
          %v3770 = vld [vmem:[%s523 + $0x160] sm:$0xff]
          %v3771 = vld [vmem:[%s523 + $0x168] sm:$0xff]
          %v3772 = vld [vmem:[%s523 + $0x170] sm:$0xff]
          %v3773 = vld [vmem:[%s523 + $0x178] sm:$0xff]
          %v3774 = vld [vmem:[%s523 + $0x180] sm:$0xff]
          %v3775 = vld [vmem:[%s523 + $0x188] sm:$0xff]
          %v3776 = vld [vmem:[%s523 + $0x190] sm:$0xff]
          %v3777 = vld [vmem:[%s523 + $0x198] sm:$0xff]
          %v3778 = vld [vmem:[%s523 + $0x1a0] sm:$0xff]
          %v3779 = vld [vmem:[%s523 + $0x1a8] sm:$0xff]
          %v3780 = vld [vmem:[%s523 + $0x1b0] sm:$0xff]
          %v3781 = vld [vmem:[%s523 + $0x1b8] sm:$0xff]
          %v3782 = vld [vmem:[%s523 + $0x1c0] sm:$0xff]
          %v3783 = vld [vmem:[%s523 + $0x1c8] sm:$0xff]
          %v3784 = vld [vmem:[%s523 + $0x1d0] sm:$0xff]
          %v3785 = vld [vmem:[%s523 + $0x1d8] sm:$0xff]
          %v3786 = vld [vmem:[%s523 + $0x1e0] sm:$0xff]
          %v3787 = vld [vmem:[%s523 + $0x1e8] sm:$0xff]
          %v3788 = vld [vmem:[%s523 + $0x1f0] sm:$0xff]
          %v3789 = vld [vmem:[%s523 + $0x1f8] sm:$0xff]
          %v3790 = vld [vmem:[%s622] sm:$0x3]
          %v3792 = vperm.slane %v3790, 0
          %v3793 = vperm.slane %v3790, 1
          %3796 = vmatpush.msra.mxu0 %v3756
          %3797 = vmatpush.msra.mxu0 %v3754
          %3798 = vmatpush.msra.mxu0 %v3752
          %3799 = vmatpush.msra.mxu0 %v3750
          %3800 = vmatpush.msra.mxu0 %v3748
          %3801 = vmatpush.msra.mxu0 %v3746
          %3802 = vmatpush.msra.mxu0 %v3744
          %3803 = vmatpush.msra.mxu0 %v3742
          %3804 = vmatpush.msra.mxu0 %v3740
          %3805 = vmatpush.msra.mxu0 %v3738
          %3806 = vmatpush.msra.mxu0 %v3736
          %3807 = vmatpush.msra.mxu0 %v3734
          %3808 = vmatpush.msra.mxu0 %v3732
          %3809 = vmatpush.msra.mxu0 %v3730
          %3810 = vmatpush.msra.mxu0 %v3728
          %3811 = vmatpush.msra.mxu0 %v3726
          %3812 = vmatmul.f32.gmra.mxu0 %v3694
          %v3813 = vpop.f32.mrf.mxu0
          %v3814 = vadd.f32 %v3792, %v3813
          %3815 = vmatmul.f32.gmra.mxu0 %v3696
          %v3816 = vpop.f32.mrf.mxu0
          %v3817 = vadd.f32 %v3792, %v3816
          %3818 = vmatmul.f32.gmra.mxu0 %v3698
          %v3819 = vpop.f32.mrf.mxu0
          %v3820 = vadd.f32 %v3792, %v3819
          %3821 = vmatmul.f32.gmra.mxu0 %v3700
          %v3822 = vpop.f32.mrf.mxu0
          %v3823 = vadd.f32 %v3792, %v3822
          %3824 = vmatmul.f32.gmra.mxu0 %v3702
          %v3825 = vpop.f32.mrf.mxu0
          %v3826 = vadd.f32 %v3792, %v3825
          %3827 = vmatmul.f32.gmra.mxu0 %v3704
          %v3828 = vpop.f32.mrf.mxu0
          %v3829 = vadd.f32 %v3792, %v3828
          %3830 = vmatmul.f32.gmra.mxu0 %v3706
          %v3831 = vpop.f32.mrf.mxu0
          %v3832 = vadd.f32 %v3792, %v3831
          %3833 = vmatmul.f32.gmra.mxu0 %v3708
          %v3834 = vpop.f32.mrf.mxu0
          %v3835 = vadd.f32 %v3792, %v3834
          %3836 = vmatmul.f32.gmra.mxu0 %v3710
          %v3837 = vpop.f32.mrf.mxu0
          %v3838 = vadd.f32 %v3792, %v3837
          %3839 = vmatmul.f32.gmra.mxu0 %v3712
          %v3840 = vpop.f32.mrf.mxu0
          %v3841 = vadd.f32 %v3792, %v3840
          %3842 = vmatmul.f32.gmra.mxu0 %v3714
          %v3843 = vpop.f32.mrf.mxu0
          %v3844 = vadd.f32 %v3792, %v3843
          %3845 = vmatmul.f32.gmra.mxu0 %v3716
          %v3846 = vpop.f32.mrf.mxu0
          %v3847 = vadd.f32 %v3792, %v3846
          %3848 = vmatmul.f32.gmra.mxu0 %v3718
          %v3849 = vpop.f32.mrf.mxu0
          %v3850 = vadd.f32 %v3792, %v3849
          %3851 = vmatmul.f32.gmra.mxu0 %v3720
          %v3852 = vpop.f32.mrf.mxu0
          %v3853 = vadd.f32 %v3792, %v3852
          %3854 = vmatmul.f32.gmra.mxu0 %v3722
          %v3855 = vpop.f32.mrf.mxu0
          %v3856 = vadd.f32 %v3792, %v3855
          %3857 = vmatmul.f32.gmra.mxu0 %v3724
          %v3858 = vpop.f32.mrf.mxu0
          %v3859 = vadd.f32 %v3792, %v3858
          %3860 = vdwg.mxu0
          %3861 = vmatpush.msra.mxu0 %v3788
          %3862 = vmatpush.msra.mxu0 %v3786
          %3863 = vmatpush.msra.mxu0 %v3784
          %3864 = vmatpush.msra.mxu0 %v3782
          %3865 = vmatpush.msra.mxu0 %v3780
          %3866 = vmatpush.msra.mxu0 %v3778
          %3867 = vmatpush.msra.mxu0 %v3776
          %3868 = vmatpush.msra.mxu0 %v3774
          %3869 = vmatpush.msra.mxu0 %v3772
          %3870 = vmatpush.msra.mxu0 %v3770
          %3871 = vmatpush.msra.mxu0 %v3768
          %3872 = vmatpush.msra.mxu0 %v3766
          %3873 = vmatpush.msra.mxu0 %v3764
          %3874 = vmatpush.msra.mxu0 %v3762
          %3875 = vmatpush.msra.mxu0 %v3760
          %3876 = vmatpush.msra.mxu0 %v3758
          %3877 = vmatmul.f32.gmra.mxu0 %v3695
          %v3878 = vpop.f32.mrf.mxu0
          %v3879 = vadd.f32 %v3814, %v3878
          %3880 = vmatmul.f32.gmra.mxu0 %v3697
          %v3881 = vpop.f32.mrf.mxu0
          %v3882 = vadd.f32 %v3817, %v3881
          %3883 = vmatmul.f32.gmra.mxu0 %v3699
          %v3884 = vpop.f32.mrf.mxu0
          %v3885 = vadd.f32 %v3820, %v3884
          %3886 = vmatmul.f32.gmra.mxu0 %v3701
          %v3887 = vpop.f32.mrf.mxu0
          %v3888 = vadd.f32 %v3823, %v3887
          %3889 = vmatmul.f32.gmra.mxu0 %v3703
          %v3890 = vpop.f32.mrf.mxu0
          %v3891 = vadd.f32 %v3826, %v3890
          %3892 = vmatmul.f32.gmra.mxu0 %v3705
          %v3893 = vpop.f32.mrf.mxu0
          %v3894 = vadd.f32 %v3829, %v3893
          %3895 = vmatmul.f32.gmra.mxu0 %v3707
          %v3896 = vpop.f32.mrf.mxu0
          %v3897 = vadd.f32 %v3832, %v3896
          %3898 = vmatmul.f32.gmra.mxu0 %v3709
          %v3899 = vpop.f32.mrf.mxu0
          %v3900 = vadd.f32 %v3835, %v3899
          %3901 = vmatmul.f32.gmra.mxu0 %v3711
          %v3902 = vpop.f32.mrf.mxu0
          %v3903 = vadd.f32 %v3838, %v3902
          %3904 = vmatmul.f32.gmra.mxu0 %v3713
          %v3905 = vpop.f32.mrf.mxu0
          %v3906 = vadd.f32 %v3841, %v3905
          %3907 = vmatmul.f32.gmra.mxu0 %v3715
          %v3908 = vpop.f32.mrf.mxu0
          %v3909 = vadd.f32 %v3844, %v3908
          %3910 = vmatmul.f32.gmra.mxu0 %v3717
          %v3911 = vpop.f32.mrf.mxu0
          %v3912 = vadd.f32 %v3847, %v3911
          %3913 = vmatmul.f32.gmra.mxu0 %v3719
          %v3914 = vpop.f32.mrf.mxu0
          %v3915 = vadd.f32 %v3850, %v3914
          %3916 = vmatmul.f32.gmra.mxu0 %v3721
          %v3917 = vpop.f32.mrf.mxu0
          %v3918 = vadd.f32 %v3853, %v3917
          %3919 = vmatmul.f32.gmra.mxu0 %v3723
          %v3920 = vpop.f32.mrf.mxu0
          %v3921 = vadd.f32 %v3856, %v3920
          %3922 = vmatmul.f32.gmra.mxu0 %v3725
          %v3923 = vpop.f32.mrf.mxu0
          %v3924 = vadd.f32 %v3859, %v3923
          %3925 = vdwg.mxu0
          %3926 = vmatpush.msra.mxu0 %v3757
          %3927 = vmatpush.msra.mxu0 %v3755
          %3928 = vmatpush.msra.mxu0 %v3753
          %3929 = vmatpush.msra.mxu0 %v3751
          %3930 = vmatpush.msra.mxu0 %v3749
          %3931 = vmatpush.msra.mxu0 %v3747
          %3932 = vmatpush.msra.mxu0 %v3745
          %3933 = vmatpush.msra.mxu0 %v3743
          %3934 = vmatpush.msra.mxu0 %v3741
          %3935 = vmatpush.msra.mxu0 %v3739
          %3936 = vmatpush.msra.mxu0 %v3737
          %3937 = vmatpush.msra.mxu0 %v3735
          %3938 = vmatpush.msra.mxu0 %v3733
          %3939 = vmatpush.msra.mxu0 %v3731
          %3940 = vmatpush.msra.mxu0 %v3729
          %3941 = vmatpush.msra.mxu0 %v3727
          %3942 = vmatmul.f32.gmra.mxu0 %v3694
          %v3943 = vpop.f32.mrf.mxu0
          %v3944 = vadd.f32 %v3793, %v3943
          %3945 = vmatmul.f32.gmra.mxu0 %v3696
          %v3946 = vpop.f32.mrf.mxu0
          %v3947 = vadd.f32 %v3793, %v3946
          %3948 = vmatmul.f32.gmra.mxu0 %v3698
          %v3949 = vpop.f32.mrf.mxu0
          %v3950 = vadd.f32 %v3793, %v3949
          %3951 = vmatmul.f32.gmra.mxu0 %v3700
          %v3952 = vpop.f32.mrf.mxu0
          %v3953 = vadd.f32 %v3793, %v3952
          %3954 = vmatmul.f32.gmra.mxu0 %v3702
          %v3955 = vpop.f32.mrf.mxu0
          %v3956 = vadd.f32 %v3793, %v3955
          %3957 = vmatmul.f32.gmra.mxu0 %v3704
          %v3958 = vpop.f32.mrf.mxu0
          %v3959 = vadd.f32 %v3793, %v3958
          %3960 = vmatmul.f32.gmra.mxu0 %v3706
          %v3961 = vpop.f32.mrf.mxu0
          %v3962 = vadd.f32 %v3793, %v3961
          %3963 = vmatmul.f32.gmra.mxu0 %v3708
          %v3964 = vpop.f32.mrf.mxu0
          %v3965 = vadd.f32 %v3793, %v3964
          %3966 = vmatmul.f32.gmra.mxu0 %v3710
          %v3967 = vpop.f32.mrf.mxu0
          %v3968 = vadd.f32 %v3793, %v3967
          %3969 = vmatmul.f32.gmra.mxu0 %v3712
          %v3970 = vpop.f32.mrf.mxu0
          %v3971 = vadd.f32 %v3793, %v3970
          %3972 = vmatmul.f32.gmra.mxu0 %v3714
          %v3973 = vpop.f32.mrf.mxu0
          %v3974 = vadd.f32 %v3793, %v3973
          %3975 = vmatmul.f32.gmra.mxu0 %v3716
          %v3976 = vpop.f32.mrf.mxu0
          %v3977 = vadd.f32 %v3793, %v3976
          %3978 = vmatmul.f32.gmra.mxu0 %v3718
          %v3979 = vpop.f32.mrf.mxu0
          %v3980 = vadd.f32 %v3793, %v3979
          %3981 = vmatmul.f32.gmra.mxu0 %v3720
          %v3982 = vpop.f32.mrf.mxu0
          %v3983 = vadd.f32 %v3793, %v3982
          %3984 = vmatmul.f32.gmra.mxu0 %v3722
          %v3985 = vpop.f32.mrf.mxu0
          %v3986 = vadd.f32 %v3793, %v3985
          %3987 = vmatmul.f32.gmra.mxu0 %v3724
          %v3988 = vpop.f32.mrf.mxu0
          %v3989 = vadd.f32 %v3793, %v3988
          %3990 = vdwg.mxu0
          %3991 = vmatpush.msra.mxu0 %v3789
          %3992 = vmatpush.msra.mxu0 %v3787
          %3993 = vmatpush.msra.mxu0 %v3785
          %3994 = vmatpush.msra.mxu0 %v3783
          %3995 = vmatpush.msra.mxu0 %v3781
          %3996 = vmatpush.msra.mxu0 %v3779
          %3997 = vmatpush.msra.mxu0 %v3777
          %3998 = vmatpush.msra.mxu0 %v3775
          %3999 = vmatpush.msra.mxu0 %v3773
          %4000 = vmatpush.msra.mxu0 %v3771
          %4001 = vmatpush.msra.mxu0 %v3769
          %4002 = vmatpush.msra.mxu0 %v3767
          %4003 = vmatpush.msra.mxu0 %v3765
          %4004 = vmatpush.msra.mxu0 %v3763
          %4005 = vmatpush.msra.mxu0 %v3761
          %4006 = vmatpush.msra.mxu0 %v3759
          %4007 = vmatmul.f32.gmra.mxu0 %v3695
          %v4008 = vpop.f32.mrf.mxu0
          %v4009 = vadd.f32 %v3944, %v4008
          %4010 = vmatmul.f32.gmra.mxu0 %v3697
          %v4011 = vpop.f32.mrf.mxu0
          %v4012 = vadd.f32 %v3947, %v4011
          %4013 = vmatmul.f32.gmra.mxu0 %v3699
          %v4014 = vpop.f32.mrf.mxu0
          %v4015 = vadd.f32 %v3950, %v4014
          %4016 = vmatmul.f32.gmra.mxu0 %v3701
          %v4017 = vpop.f32.mrf.mxu0
          %v4018 = vadd.f32 %v3953, %v4017
          %4019 = vmatmul.f32.gmra.mxu0 %v3703
          %v4020 = vpop.f32.mrf.mxu0
          %v4021 = vadd.f32 %v3956, %v4020
          %4022 = vmatmul.f32.gmra.mxu0 %v3705
          %v4023 = vpop.f32.mrf.mxu0
          %v4024 = vadd.f32 %v3959, %v4023
          %4025 = vmatmul.f32.gmra.mxu0 %v3707
          %v4026 = vpop.f32.mrf.mxu0
          %v4027 = vadd.f32 %v3962, %v4026
          %4028 = vmatmul.f32.gmra.mxu0 %v3709
          %v4029 = vpop.f32.mrf.mxu0
          %v4030 = vadd.f32 %v3965, %v4029
          %4031 = vmatmul.f32.gmra.mxu0 %v3711
          %v4032 = vpop.f32.mrf.mxu0
          %v4033 = vadd.f32 %v3968, %v4032
          %4034 = vmatmul.f32.gmra.mxu0 %v3713
          %v4035 = vpop.f32.mrf.mxu0
          %v4036 = vadd.f32 %v3971, %v4035
          %4037 = vmatmul.f32.gmra.mxu0 %v3715
          %v4038 = vpop.f32.mrf.mxu0
          %v4039 = vadd.f32 %v3974, %v4038
          %4040 = vmatmul.f32.gmra.mxu0 %v3717
          %v4041 = vpop.f32.mrf.mxu0
          %v4042 = vadd.f32 %v3977, %v4041
          %4043 = vmatmul.f32.gmra.mxu0 %v3719
          %v4044 = vpop.f32.mrf.mxu0
          %v4045 = vadd.f32 %v3980, %v4044
          %4046 = vmatmul.f32.gmra.mxu0 %v3721
          %v4047 = vpop.f32.mrf.mxu0
          %v4048 = vadd.f32 %v3983, %v4047
          %4049 = vmatmul.f32.gmra.mxu0 %v3723
          %v4050 = vpop.f32.mrf.mxu0
          %v4051 = vadd.f32 %v3986, %v4050
          %4052 = vmatmul.f32.gmra.mxu0 %v3725
          %v4053 = vpop.f32.mrf.mxu0
          %v4054 = vadd.f32 %v3989, %v4053
          %4055 = vdwg.mxu0
          %p4056 = scmp.lt.s32.totalorder %s36, 2
          // Predicated region
          $region97: #{tpu_custom_call.1} parent=95 // pred_check
            %p4057 = pneg %p4056
          $region98: #{tpu_custom_call.1} parent=95 // pred_check_branch
            %4059 = sbr.rel (%p4057) target = $region100
          $region99: #{tpu_custom_call.1} parent=95 // pred_region
            %v4060 = vmax.f32 %v3879, 0.0
            %v4061 = vmax.f32 %v4009, 0.0
            %v4062 = vmax.f32 %v3882, 0.0
            %v4063 = vmax.f32 %v4012, 0.0
            %v4064 = vmax.f32 %v3885, 0.0
            %v4065 = vmax.f32 %v4015, 0.0
            %v4066 = vmax.f32 %v3888, 0.0
            %v4067 = vmax.f32 %v4018, 0.0
            %v4068 = vmax.f32 %v3891, 0.0
            %v4069 = vmax.f32 %v4021, 0.0
            %v4070 = vmax.f32 %v3894, 0.0
            %v4071 = vmax.f32 %v4024, 0.0
            %v4072 = vmax.f32 %v3897, 0.0
            %v4073 = vmax.f32 %v4027, 0.0
            %v4074 = vmax.f32 %v3900, 0.0
            %v4075 = vmax.f32 %v4030, 0.0
            %v4076 = vmax.f32 %v3903, 0.0
            %v4077 = vmax.f32 %v4033, 0.0
            %v4078 = vmax.f32 %v3906, 0.0
            %v4079 = vmax.f32 %v4036, 0.0
            %v4080 = vmax.f32 %v3909, 0.0
            %v4081 = vmax.f32 %v4039, 0.0
            %v4082 = vmax.f32 %v3912, 0.0
            %v4083 = vmax.f32 %v4042, 0.0
            %v4084 = vmax.f32 %v3915, 0.0
            %v4085 = vmax.f32 %v4045, 0.0
            %v4086 = vmax.f32 %v3918, 0.0
            %v4087 = vmax.f32 %v4048, 0.0
            %v4088 = vmax.f32 %v3921, 0.0
            %v4089 = vmax.f32 %v4051, 0.0
            %v4090 = vmax.f32 %v3924, 0.0
            %v4091 = vmax.f32 %v4054, 0.0
            %4092 = vst [vmem:[#allocation2] sm:$0xff] %v4060
            %4093 = vst [vmem:[#allocation2 + $0x8] sm:$0xff] %v4061
            %4094 = vst [vmem:[#allocation2 + $0x10] sm:$0xff] %v4062
            %4095 = vst [vmem:[#allocation2 + $0x18] sm:$0xff] %v4063
            %4096 = vst [vmem:[#allocation2 + $0x20] sm:$0xff] %v4064
            %4097 = vst [vmem:[#allocation2 + $0x28] sm:$0xff] %v4065
            %4098 = vst [vmem:[#allocation2 + $0x30] sm:$0xff] %v4066
            %4099 = vst [vmem:[#allocation2 + $0x38] sm:$0xff] %v4067
            %4100 = vst [vmem:[#allocation2 + $0x40] sm:$0xff] %v4068
            %4101 = vst [vmem:[#allocation2 + $0x48] sm:$0xff] %v4069
            %4102 = vst [vmem:[#allocation2 + $0x50] sm:$0xff] %v4070
            %4103 = vst [vmem:[#allocation2 + $0x58] sm:$0xff] %v4071
            %4104 = vst [vmem:[#allocation2 + $0x60] sm:$0xff] %v4072
            %4105 = vst [vmem:[#allocation2 + $0x68] sm:$0xff] %v4073
            %4106 = vst [vmem:[#allocation2 + $0x70] sm:$0xff] %v4074
            %4107 = vst [vmem:[#allocation2 + $0x78] sm:$0xff] %v4075
            %4108 = vst [vmem:[#allocation2 + $0x80] sm:$0xff] %v4076
            %4109 = vst [vmem:[#allocation2 + $0x88] sm:$0xff] %v4077
            %4110 = vst [vmem:[#allocation2 + $0x90] sm:$0xff] %v4078
            %4111 = vst [vmem:[#allocation2 + $0x98] sm:$0xff] %v4079
            %4112 = vst [vmem:[#allocation2 + $0xa0] sm:$0xff] %v4080
            %4113 = vst [vmem:[#allocation2 + $0xa8] sm:$0xff] %v4081
            %4114 = vst [vmem:[#allocation2 + $0xb0] sm:$0xff] %v4082
            %4115 = vst [vmem:[#allocation2 + $0xb8] sm:$0xff] %v4083
            %4116 = vst [vmem:[#allocation2 + $0xc0] sm:$0xff] %v4084
            %4117 = vst [vmem:[#allocation2 + $0xc8] sm:$0xff] %v4085
            %4118 = vst [vmem:[#allocation2 + $0xd0] sm:$0xff] %v4086
            %4119 = vst [vmem:[#allocation2 + $0xd8] sm:$0xff] %v4087
            %4120 = vst [vmem:[#allocation2 + $0xe0] sm:$0xff] %v4088
            %4121 = vst [vmem:[#allocation2 + $0xe8] sm:$0xff] %v4089
            %4122 = vst [vmem:[#allocation2 + $0xf0] sm:$0xff] %v4090
            %4123 = vst [vmem:[#allocation2 + $0xf8] sm:$0xff] %v4091
          $region100: #{tpu_custom_call.1} parent=95 // pred_fallthru
            _
          %p4124 = scmp.eq.s32.totalorder %s36, 2
          // Predicated region
          $region101: #{tpu_custom_call.1} parent=95 // pred_check
            %p4125 = pneg %p4124
          $region102: #{tpu_custom_call.1} parent=95 // pred_check_branch
            %4127 = sbr.rel (%p4125) target = $region104
          $region103: #{tpu_custom_call.1} parent=95 // pred_region
            %v4128 = vadd.f32 %v3879, %v3882
            %v4129 = vadd.f32 %v4128, %v3885
            %v4130 = vadd.f32 %v4129, %v3888
            %v4131 = vadd.f32 %v4130, %v3891
            %v4132 = vadd.f32 %v4131, %v3894
            %v4133 = vadd.f32 %v4132, %v3897
            %v4134 = vadd.f32 %v4133, %v3900
            %v4135 = vadd.f32 %v4134, %v3903
            %v4136 = vadd.f32 %v4135, %v3906
            %v4137 = vadd.f32 %v4136, %v3909
            %v4138 = vadd.f32 %v4137, %v3912
            %v4139 = vadd.f32 %v4138, %v3915
            %v4140 = vadd.f32 %v4139, %v3918
            %v4141 = vadd.f32 %v4140, %v3921
            %v4142 = vadd.f32 %v4141, %v3924
            %v4143 = vrot.slane %v4142, 4
            %v4144 = vadd.f32 %v4142, %v4143
            %v4145 = vrot.slane %v4144, 2
            %v4146 = vadd.f32 %v4144, %v4145
            %v4147 = vrot.slane %v4146, 1
            %v4148 = vadd.f32 %v4146, %v4147
            %v4149 = vadd.f32 %v4009, %v4012
            %v4150 = vadd.f32 %v4149, %v4015
            %v4151 = vadd.f32 %v4150, %v4018
            %v4152 = vadd.f32 %v4151, %v4021
            %v4153 = vadd.f32 %v4152, %v4024
            %v4154 = vadd.f32 %v4153, %v4027
            %v4155 = vadd.f32 %v4154, %v4030
            %v4156 = vadd.f32 %v4155, %v4033
            %v4157 = vadd.f32 %v4156, %v4036
            %v4158 = vadd.f32 %v4157, %v4039
            %v4159 = vadd.f32 %v4158, %v4042
            %v4160 = vadd.f32 %v4159, %v4045
            %v4161 = vadd.f32 %v4160, %v4048
            %v4162 = vadd.f32 %v4161, %v4051
            %v4163 = vadd.f32 %v4162, %v4054
            %v4164 = vrot.slane %v4163, 4
            %v4165 = vadd.f32 %v4163, %v4164
            %v4166 = vrot.slane %v4165, 2
            %v4167 = vadd.f32 %v4165, %v4166
            %v4168 = vrot.slane %v4167, 1
            %v4169 = vadd.f32 %v4167, %v4168
            %v4170 = vrcp.pop 128.0
            %v4171 = vmul.f32 128.0, %v4170
            %v4172 = vsub.f32 1.0, %v4171
            %v4173 = vmul.f32 %v4170, %v4172
            %v4174 = vadd.f32 %v4170, %v4173
            %vm4175 = vweird.f32 %v4170
            %v4176 = vsel %vm4175, %v4170, %v4174
            %v4177 = vmul.f32 %v4148, %v4176
            %v4178 = vmul.f32 %v4169, %v4176
            %v4179 = vld [vmem:[#allocation11] sm:$0xff]
            %v4180 = vld [vmem:[#allocation11 + $0x8] sm:$0xff]
            %v4181 = vld [vmem:[#allocation11 + $0x10] sm:$0xff]
            %v4182 = vld [vmem:[#allocation11 + $0x18] sm:$0xff]
            %v4183 = vld [vmem:[#allocation11 + $0x20] sm:$0xff]
            %v4184 = vld [vmem:[#allocation11 + $0x28] sm:$0xff]
            %v4185 = vld [vmem:[#allocation11 + $0x30] sm:$0xff]
            %v4186 = vld [vmem:[#allocation11 + $0x38] sm:$0xff]
            %v4187 = vld [vmem:[#allocation11 + $0x40] sm:$0xff]
            %v4188 = vld [vmem:[#allocation11 + $0x48] sm:$0xff]
            %v4189 = vld [vmem:[#allocation11 + $0x50] sm:$0xff]
            %v4190 = vld [vmem:[#allocation11 + $0x58] sm:$0xff]
            %v4191 = vld [vmem:[#allocation11 + $0x60] sm:$0xff]
            %v4192 = vld [vmem:[#allocation11 + $0x68] sm:$0xff]
            %v4193 = vld [vmem:[#allocation11 + $0x70] sm:$0xff]
            %v4194 = vld [vmem:[#allocation11 + $0x78] sm:$0xff]
            %v4195 = vld [vmem:[#allocation11 + $0x80] sm:$0xff]
            %v4196 = vld [vmem:[#allocation11 + $0x88] sm:$0xff]
            %v4197 = vld [vmem:[#allocation11 + $0x90] sm:$0xff]
            %v4198 = vld [vmem:[#allocation11 + $0x98] sm:$0xff]
            %v4199 = vld [vmem:[#allocation11 + $0xa0] sm:$0xff]
            %v4200 = vld [vmem:[#allocation11 + $0xa8] sm:$0xff]
            %v4201 = vld [vmem:[#allocation11 + $0xb0] sm:$0xff]
            %v4202 = vld [vmem:[#allocation11 + $0xb8] sm:$0xff]
            %v4203 = vld [vmem:[#allocation11 + $0xc0] sm:$0xff]
            %v4204 = vld [vmem:[#allocation11 + $0xc8] sm:$0xff]
            %v4205 = vld [vmem:[#allocation11 + $0xd0] sm:$0xff]
            %v4206 = vld [vmem:[#allocation11 + $0xd8] sm:$0xff]
            %v4207 = vld [vmem:[#allocation11 + $0xe0] sm:$0xff]
            %v4208 = vld [vmem:[#allocation11 + $0xe8] sm:$0xff]
            %v4209 = vld [vmem:[#allocation11 + $0xf0] sm:$0xff]
            %v4210 = vld [vmem:[#allocation11 + $0xf8] sm:$0xff]
            %v4211 = vld [vmem:[#allocation11 + $0x100] sm:$0xff]
            %v4212 = vld [vmem:[#allocation11 + $0x108] sm:$0xff]
            %v4213 = vld [vmem:[#allocation11 + $0x110] sm:$0xff]
            %v4214 = vld [vmem:[#allocation11 + $0x118] sm:$0xff]
            %v4215 = vld [vmem:[#allocation11 + $0x120] sm:$0xff]
            %v4216 = vld [vmem:[#allocation11 + $0x128] sm:$0xff]
            %v4217 = vld [vmem:[#allocation11 + $0x130] sm:$0xff]
            %v4218 = vld [vmem:[#allocation11 + $0x138] sm:$0xff]
            %v4219 = vld [vmem:[#allocation11 + $0x140] sm:$0xff]
            %v4220 = vld [vmem:[#allocation11 + $0x148] sm:$0xff]
            %v4221 = vld [vmem:[#allocation11 + $0x150] sm:$0xff]
            %v4222 = vld [vmem:[#allocation11 + $0x158] sm:$0xff]
            %v4223 = vld [vmem:[#allocation11 + $0x160] sm:$0xff]
            %v4224 = vld [vmem:[#allocation11 + $0x168] sm:$0xff]
            %v4225 = vld [vmem:[#allocation11 + $0x170] sm:$0xff]
            %v4226 = vld [vmem:[#allocation11 + $0x178] sm:$0xff]
            %v4227 = vld [vmem:[#allocation11 + $0x180] sm:$0xff]
            %v4228 = vld [vmem:[#allocation11 + $0x188] sm:$0xff]
            %v4229 = vld [vmem:[#allocation11 + $0x190] sm:$0xff]
            %v4230 = vld [vmem:[#allocation11 + $0x198] sm:$0xff]
            %v4231 = vld [vmem:[#allocation11 + $0x1a0] sm:$0xff]
            %v4232 = vld [vmem:[#allocation11 + $0x1a8] sm:$0xff]
            %v4233 = vld [vmem:[#allocation11 + $0x1b0] sm:$0xff]
            %v4234 = vld [vmem:[#allocation11 + $0x1b8] sm:$0xff]
            %v4235 = vld [vmem:[#allocation11 + $0x1c0] sm:$0xff]
            %v4236 = vld [vmem:[#allocation11 + $0x1c8] sm:$0xff]
            %v4237 = vld [vmem:[#allocation11 + $0x1d0] sm:$0xff]
            %v4238 = vld [vmem:[#allocation11 + $0x1d8] sm:$0xff]
            %v4239 = vld [vmem:[#allocation11 + $0x1e0] sm:$0xff]
            %v4240 = vld [vmem:[#allocation11 + $0x1e8] sm:$0xff]
            %v4241 = vld [vmem:[#allocation11 + $0x1f0] sm:$0xff]
            %v4242 = vld [vmem:[#allocation11 + $0x1f8] sm:$0xff]
            %v4243 = vld [vmem:[%s11] sm:$0x3]
            %v4245 = vperm.slane %v4243, 0
            %v4246 = vperm.slane %v4243, 1
            %4249 = vmatpush.msra.mxu0 %v4209
            %4250 = vmatpush.msra.mxu0 %v4207
            %4251 = vmatpush.msra.mxu0 %v4205
            %4252 = vmatpush.msra.mxu0 %v4203
            %4253 = vmatpush.msra.mxu0 %v4201
            %4254 = vmatpush.msra.mxu0 %v4199
            %4255 = vmatpush.msra.mxu0 %v4197
            %4256 = vmatpush.msra.mxu0 %v4195
            %4257 = vmatpush.msra.mxu0 %v4193
            %4258 = vmatpush.msra.mxu0 %v4191
            %4259 = vmatpush.msra.mxu0 %v4189
            %4260 = vmatpush.msra.mxu0 %v4187
            %4261 = vmatpush.msra.mxu0 %v4185
            %4262 = vmatpush.msra.mxu0 %v4183
            %4263 = vmatpush.msra.mxu0 %v4181
            %4264 = vmatpush.msra.mxu0 %v4179
            %4265 = vmatmul.f32.gmra.mxu0 %v4177
            %v4266 = vpop.f32.mrf.mxu0
            %v4267 = vadd.f32 %v4245, %v4266
            %4268 = vdwg.mxu0
            %4269 = vmatpush.msra.mxu0 %v4241
            %4270 = vmatpush.msra.mxu0 %v4239
            %4271 = vmatpush.msra.mxu0 %v4237
            %4272 = vmatpush.msra.mxu0 %v4235
            %4273 = vmatpush.msra.mxu0 %v4233
            %4274 = vmatpush.msra.mxu0 %v4231
            %4275 = vmatpush.msra.mxu0 %v4229
            %4276 = vmatpush.msra.mxu0 %v4227
            %4277 = vmatpush.msra.mxu0 %v4225
            %4278 = vmatpush.msra.mxu0 %v4223
            %4279 = vmatpush.msra.mxu0 %v4221
            %4280 = vmatpush.msra.mxu0 %v4219
            %4281 = vmatpush.msra.mxu0 %v4217
            %4282 = vmatpush.msra.mxu0 %v4215
            %4283 = vmatpush.msra.mxu0 %v4213
            %4284 = vmatpush.msra.mxu0 %v4211
            %4285 = vmatmul.f32.gmra.mxu0 %v4178
            %v4286 = vpop.f32.mrf.mxu0
            %v4287 = vadd.f32 %v4267, %v4286
            %4288 = vdwg.mxu0
            %4289 = vmatpush.msra.mxu0 %v4210
            %4290 = vmatpush.msra.mxu0 %v4208
            %4291 = vmatpush.msra.mxu0 %v4206
            %4292 = vmatpush.msra.mxu0 %v4204
            %4293 = vmatpush.msra.mxu0 %v4202
            %4294 = vmatpush.msra.mxu0 %v4200
            %4295 = vmatpush.msra.mxu0 %v4198
            %4296 = vmatpush.msra.mxu0 %v4196
            %4297 = vmatpush.msra.mxu0 %v4194
            %4298 = vmatpush.msra.mxu0 %v4192
            %4299 = vmatpush.msra.mxu0 %v4190
            %4300 = vmatpush.msra.mxu0 %v4188
            %4301 = vmatpush.msra.mxu0 %v4186
            %4302 = vmatpush.msra.mxu0 %v4184
            %4303 = vmatpush.msra.mxu0 %v4182
            %4304 = vmatpush.msra.mxu0 %v4180
            %4305 = vmatmul.f32.gmra.mxu0 %v4177
            %v4306 = vpop.f32.mrf.mxu0
            %v4307 = vadd.f32 %v4246, %v4306
            %4308 = vdwg.mxu0
            %4309 = vmatpush.msra.mxu0 %v4242
            %4310 = vmatpush.msra.mxu0 %v4240
            %4311 = vmatpush.msra.mxu0 %v4238
            %4312 = vmatpush.msra.mxu0 %v4236
            %4313 = vmatpush.msra.mxu0 %v4234
            %4314 = vmatpush.msra.mxu0 %v4232
            %4315 = vmatpush.msra.mxu0 %v4230
            %4316 = vmatpush.msra.mxu0 %v4228
            %4317 = vmatpush.msra.mxu0 %v4226
            %4318 = vmatpush.msra.mxu0 %v4224
            %4319 = vmatpush.msra.mxu0 %v4222
            %4320 = vmatpush.msra.mxu0 %v4220
            %4321 = vmatpush.msra.mxu0 %v4218
            %4322 = vmatpush.msra.mxu0 %v4216
            %4323 = vmatpush.msra.mxu0 %v4214
            %4324 = vmatpush.msra.mxu0 %v4212
            %4325 = vmatmul.f32.gmra.mxu0 %v4178
            %v4326 = vpop.f32.mrf.mxu0
            %v4327 = vadd.f32 %v4307, %v4326
            %4328 = vdwg.mxu0
            %s4329 = sld [smem:[#allocation5]]
            %vm4330 = vcmp.ge.f32.partialorder %v4287, 0.0
            %vm4331 = vcmp.ge.f32.partialorder %v4327, 0.0
            %v4332 = vstv %s4329
            %v4333 = vmul.f32 %v4332, %v4287
            %v4334 = vmul.f32 %v4332, %v4327
            %v4335 = vsel %vm4330, %v4287, %v4333
            %v4336 = vsel %vm4331, %v4327, %v4334
            %v4339 = vrot.slane %v4336, 7
            %vm4340 = vcmask 1040384
            %v4341 = vsel %vm4340, %v4335, %v4339
            %v4343 = vlaneseq
            %vm4344 = vcmp.ge.s32.totalorder %v4343, 0
            %vm4345 = vcmp.lt.s32.totalorder %v4343, 256
            %vm4346 = vmand %vm4344, %vm4345
            %4347 = vst.msk [vmem:[#allocation12] sm:$0x3] %vm4346, %v4341
          $region104: #{tpu_custom_call.1} parent=95 // pred_fallthru
            _
        $region96: #{tpu_custom_call.1} parent=71 // pred_fallthru
          _
        // Predicated region
        $region105: #{tpu_custom_call.1} parent=71 // pred_check
          %p4348 = pneg %p365
        $region106: #{tpu_custom_call.1} parent=71 // pred_check_branch
          %4350 = sbr.rel (%p4348) target = $region108
        $region107: #{tpu_custom_call.1} parent=71 // pred_region
          %4352 = vsyncadd [#allocation8], 0
          %s4354 = sshll.u32 [#allocation12], 4
          %s4355 = int_to_ptr.vmem [resolvable:$true] %s4354
          %s4356 = sshll.u32 %s13, 4
          %s4357 = int_to_ptr.hbm [resolvable:$true] %s4356
          %4359 = dma.vmem_to_hbm [thread:$0]  %s4355, 32, %s4357, [#allocation8]
        $region108: #{tpu_custom_call.1} parent=71 // pred_fallthru
          _
        // Predicated region
        $region109: #{tpu_custom_call.1} parent=71 // pred_check
          %p4360 = pneg %p365
        $region110: #{tpu_custom_call.1} parent=71 // pred_check_branch
          %4362 = sbr.rel (%p4360) target = $region112
        $region111: #{tpu_custom_call.1} parent=71 // pred_region
          %4364 = dma.done [#allocation8], 32
        $region112: #{tpu_custom_call.1} parent=71 // pred_fallthru
          _
      $region72: #{tpu_custom_call.1} parent=5 // pred_fallthru
        _
      %p4365 = scmp.le.s32.totalorder 2, %s27
      // Predicated region
      $region113: #{tpu_custom_call.1} parent=5 // pred_check
        %p4366 = pneg %p4365
      $region114: #{tpu_custom_call.1} parent=5 // pred_check_branch
        %4368 = sbr.rel (%p4366) target = $region116
      $region115: #{tpu_custom_call.1} parent=5 // pred_region
        %s4369 = ssub.s32 %s27, 2
      $region116: #{tpu_custom_call.1} parent=5 // pred_fallthru
        _
    $region6: #{tpu_custom_call.1} parent=1 // loop_footer
      %s31 = sadd.s32 1, %s27
    $region7: #{tpu_custom_call.1} parent=1 // loop_footer_branch
      %26 = sbr.rel target = $region3
    $region8: #{tpu_custom_call.1} parent=1 // loop_exit
      _
    %4370 = vsyncpa [#allocation7], 1
    %s4371 = scalar_lea.sflag [#allocation7], 1
    %4372 = vsyncpa %s4371, 1
    %4373 = vsyncpa [#allocation10], 1
    %s4374 = scalar_lea.sflag [#allocation10], 1
    %4375 = vsyncpa %s4374, 1
    %4376 = vsyncpa [#allocation8], 1
    %s4377 = scalar_lea.sflag [#allocation8], 1
    %4378 = vsyncpa %s4377, 1

</llo_original>
